<compile_context>
chip_gen: v7x
topology: tpu7x:2x2x1
jax: 0.10.0
libtpu: 0.0.40
codegen_flags: <defaults>
</compile_context>

<pallas_src>
import functools

import jax
import jax.numpy as jnp
from jax.experimental import pallas as pl
from jax.experimental.pallas import tpu as pltpu


# ----------------------------------------------------------------------------
# Padding helpers (wrapper-side layout plumbing).
# ----------------------------------------------------------------------------
def _round_up(x, m):
    return ((x + m - 1) // m) * m


def _pad_to(a, shape):
    return jnp.pad(a, [(0, s - d) for d, s in zip(a.shape, shape)])


def _pad_gate_matrix(w, din_pad, h, h_pad):
    # (din, 3h) gate order [r|z|n]  ->  (din_pad, 3*h_pad),
    # each gate in its own lane-aligned 128-wide slab (zero padded).
    parts = [_pad_to(w[:, g * h:(g + 1) * h], (din_pad, h_pad)) for g in range(3)]
    return jnp.concatenate(parts, axis=1)


def _pad_gate_bias(b, h, h_pad):
    parts = [_pad_to(b[:, g * h:(g + 1) * h], (1, h_pad)) for g in range(3)]
    return jnp.concatenate(parts, axis=1)


# ----------------------------------------------------------------------------
# Fused kernel: n_layers GRU layers + f0 head + speaker head, one pallas_call.
# ----------------------------------------------------------------------------
def _make_fused_kernel(n_layers, T, Bp, Hp):

    def gru_layer(src_ref, dst_ref, wih_ref, whh_ref, bih_ref, bhh_ref, gx_scr):
        din = src_ref.shape[-1]

        # Hoisted input projection for ALL timesteps: one big MXU matmul.
        # (T, Bp, din) -> (T*Bp, din) is a tile-aligned collapse (Bp=8, din%128==0).
        x_all = src_ref[...].reshape(T * Bp, din)
        gx = jnp.dot(x_all, wih_ref[...],
                     preferred_element_type=jnp.float32) + bih_ref[...]
        gx_scr[...] = gx.reshape(T, Bp, 3 * Hp)

        # Hoisted recurrent-bias broadcast (JAX does not CSE broadcast_in_dim).
        bhh_b = jnp.broadcast_to(bhh_ref[...], (Bp, 3 * Hp))
        h0 = jnp.zeros((Bp, Hp), jnp.float32)

        def step(t, h):
            gx_t = gx_scr[t]                                        # (Bp, 3Hp)
            gh = jnp.dot(h, whh_ref[...],
                         preferred_element_type=jnp.float32) + bhh_b
            # Gate slabs are 128-lane aligned -> whole-vreg VPU/EUP ops.
            r = jax.nn.sigmoid(gx_t[:, 0:Hp] + gh[:, 0:Hp])
            z = jax.nn.sigmoid(gx_t[:, Hp:2 * Hp] + gh[:, Hp:2 * Hp])
            n = jnp.tanh(gx_t[:, 2 * Hp:] + r * gh[:, 2 * Hp:])
            h_new = (1.0 - z) * n + z * h
            dst_ref[t] = h_new
            return h_new

        if T <= 16:
            # Fully unrolled with static store indices (best scheduler visibility).
            h = h0
            for t in range(T):
                h = step(t, h)
        else:
            jax.lax.fori_loop(0, T, step, h0, unroll=8)

    def kernel(*refs):
        x_ref = refs[0]
        layer_refs = refs[1:1 + 4 * n_layers]
        wf_ref, bf_ref, ws_ref, bs_ref = refs[1 + 4 * n_layers:5 + 4 * n_layers]
        f0_ref, spk_ref = refs[5 + 4 * n_layers:7 + 4 * n_layers]
        act_a, act_b, gx_scr = refs[7 + 4 * n_layers:]

        # GRU stack: ping-pong activations between the two VMEM scratch buffers.
        acts = (act_a, act_b)
        src = x_ref
        for layer in range(n_layers):
            wih, whh, bih, bhh = layer_refs[4 * layer:4 * layer + 4]
            dst = acts[layer % 2]
            gru_layer(src, dst, wih, whh, bih, bhh, gx_scr)
            src = dst

        # Heads (batched, lane-dense, padded outputs -> unmasked stores).
        h_all = src[...]                               # (T, Bp, Hp)
        h2 = h_all.reshape(T * Bp, Hp)                 # tile-aligned collapse
        f0 = jnp.dot(h2, wf_ref[...],
                     preferred_element_type=jnp.float32) + bf_ref[...]
        f0_ref[...] = f0.reshape(T, Bp, -1)
        mean_h = jnp.mean(h_all, axis=0)               # (Bp, Hp)
        spk_ref[...] = jnp.dot(mean_h, ws_ref[...],
                               preferred_element_type=jnp.float32) + bs_ref[...]

    return kernel


# ----------------------------------------------------------------------------
# Forward pass wrapper: pad to TPU-friendly layout, run fused kernel, un-pad.
# ----------------------------------------------------------------------------
@jax.jit
def rnn_finder_forward(params, spectrograms):
    # spectrograms: (B, T, input_width), batch_first like the PyTorch module.
    B, T, Din = spectrograms.shape
    n_layers = len(params["gru"])
    H = params["gru"][0]["whh"].shape[0]
    F = params["f0_w"].shape[1]
    S = params["spk_w"].shape[1]

    Bp = _round_up(max(B, 8), 8)       # sublane occupancy
    Hp = _round_up(H, 128)             # lane-aligned gates / hidden
    Dp = _round_up(Din, 128)
    Fp = _round_up(F, 128)
    Sp = _round_up(S, 128)

    # Time-major layout so the recurrence indexes the leading axis.
    x = jnp.transpose(spectrograms, (1, 0, 2)).astype(jnp.float32)   # (T, B, Din)
    x = _pad_to(x, (T, Bp, Dp))

    flat_inputs = [x]
    for i, lp in enumerate(params["gru"]):
        dinp = Dp if i == 0 else Hp
        flat_inputs += [
            _pad_gate_matrix(lp["wih"].astype(jnp.float32), dinp, H, Hp),
            _pad_gate_matrix(lp["whh"].astype(jnp.float32), Hp, H, Hp),
            _pad_gate_bias(lp["bih"].astype(jnp.float32), H, Hp),
            _pad_gate_bias(lp["bhh"].astype(jnp.float32), H, Hp),
        ]
    flat_inputs += [
        _pad_to(params["f0_w"].astype(jnp.float32), (Hp, Fp)),
        _pad_to(params["f0_b"].astype(jnp.float32), (1, Fp)),
        _pad_to(params["spk_w"].astype(jnp.float32), (Hp, Sp)),
        _pad_to(params["spk_b"].astype(jnp.float32), (1, Sp)),
    ]

    kernel = _make_fused_kernel(n_layers, T, Bp, Hp)
    n_in = len(flat_inputs)

    # TODO(synk): for large B on v7x, add a batch grid axis with
    # dimension_semantics=("parallel",) to use both TensorCores; at B=2 it is moot.
    f0_pad, spk_pad = pl.pallas_call(
        kernel,
        out_shape=(jax.ShapeDtypeStruct((T, Bp, Fp), jnp.float32),
                   jax.ShapeDtypeStruct((Bp, Sp), jnp.float32)),
        in_specs=[pl.BlockSpec(memory_space=pltpu.MemorySpace.VMEM)] * n_in,
        out_specs=(pl.BlockSpec(memory_space=pltpu.MemorySpace.VMEM),
                   pl.BlockSpec(memory_space=pltpu.MemorySpace.VMEM)),
        scratch_shapes=[
            pltpu.VMEM((T, Bp, Hp), jnp.float32),       # activations (ping)
            pltpu.VMEM((T, Bp, Hp), jnp.float32),       # activations (pong)
            pltpu.VMEM((T, Bp, 3 * Hp), jnp.float32),   # hoisted gate inputs gx
        ],
    )(*flat_inputs)

    # Un-pad and restore batch_first layout.
    f0_prediction = jnp.transpose(f0_pad[:, :B, :F], (1, 0, 2))   # (B, T, f0_bins)
    speaker_prediction = spk_pad[:B, :S][:, None, :]              # (B, 1, n_speakers)
    return f0_prediction, speaker_prediction


# ----------------------------------------------------------------------------
# Parameter construction (deterministic, synthetic, PyTorch-like layout).
# ----------------------------------------------------------------------------
def make_params(key, input_width, interior_size, f0_bins, n_speakers, n_layers):
    H = interior_size
    params = {"gru": []}
    scale = 1.0 / jnp.sqrt(jnp.float32(H))
    for layer in range(n_layers):
        din = input_width if layer == 0 else H
        key, k1, k2, k3, k4 = jax.random.split(key, 5)
        params["gru"].append({
            "wih": jax.random.uniform(k1, (din, 3 * H), jnp.float32, -scale, scale),
            "whh": jax.random.uniform(k2, (H, 3 * H), jnp.float32, -scale, scale),
            "bih": jax.random.uniform(k3, (1, 3 * H), jnp.float32, -scale, scale),
            "bhh": jax.random.uniform(k4, (1, 3 * H), jnp.float32, -scale, scale),
        })
    key, k1, k2, k3, k4 = jax.random.split(key, 5)
    params["f0_w"] = jax.random.uniform(k1, (H, f0_bins), jnp.float32, -scale, scale)
    params["f0_b"] = jax.random.uniform(k2, (1, f0_bins), jnp.float32, -scale, scale)
    params["spk_w"] = jax.random.uniform(k3, (H, n_speakers), jnp.float32, -scale, scale)
    params["spk_b"] = jax.random.uniform(k4, (1, n_speakers), jnp.float32, -scale, scale)
    return params


# ----------------------------------------------------------------------------
# Pure-JAX reference for correctness check (unpadded, straightforward).
# ----------------------------------------------------------------------------
def reference_forward(params, spectrograms):
    x = jnp.transpose(spectrograms, (1, 0, 2)).astype(jnp.float32)  # (T, B, D)
    T, B, _ = x.shape
    for lp in params["gru"]:
        H = lp["whh"].shape[0]
        h = jnp.zeros((B, H), jnp.float32)
        outs = []
        for t in range(T):
            gx = x[t] @ lp["wih"] + lp["bih"]
            gh = h @ lp["whh"] + lp["bhh"]
            r = jax.nn.sigmoid(gx[:, :H] + gh[:, :H])
            z = jax.nn.sigmoid(gx[:, H:2 * H] + gh[:, H:2 * H])
            n = jnp.tanh(gx[:, 2 * H:] + r * gh[:, 2 * H:])
            h = (1.0 - z) * n + z * h
            outs.append(h)
        x = jnp.stack(outs, axis=0)
    f0 = x @ params["f0_w"] + params["f0_b"]                 # (T, B, F)
    spk = jnp.mean(x, axis=0) @ params["spk_w"] + params["spk_b"]
    return jnp.transpose(f0, (1, 0, 2)), spk[:, None, :]


if __name__ == "__main__":
    # Small, module-consistent shapes.
    B, T = 2, 8
    input_width = 16
    interior_size = 32
    f0_bins = 24
    n_speakers = 6
    n_layers = 2

    key = jax.random.PRNGKey(0)
    kp, kx = jax.random.split(key)
    params = make_params(kp, input_width, interior_size, f0_bins, n_speakers, n_layers)
    spectrograms = jax.random.normal(kx, (B, T, input_width), jnp.float32)

    f0_pred, spk_pred = rnn_finder_forward(params, spectrograms)
    f0_pred = jax.block_until_ready(f0_pred)
    spk_pred = jax.block_until_ready(spk_pred)

    assert f0_pred.shape == (B, T, f0_bins)
    assert spk_pred.shape == (B, 1, n_speakers)

    f0_ref, spk_ref = reference_forward(params, spectrograms)
    assert jnp.allclose(f0_pred, f0_ref, atol=1e-5, rtol=1e-5), (
        float(jnp.max(jnp.abs(f0_pred - f0_ref))))
    assert jnp.allclose(spk_pred, spk_ref, atol=1e-5, rtol=1e-5), (
        float(jnp.max(jnp.abs(spk_pred - spk_ref))))

    print("KERNEL_OK")
</pallas_src>

<mosaic_0001>
module attributes {stable_mosaic.version = 11 : i64} {
  func.func @kernel(%arg0: memref<8x8x128xf32, #tpu.memory_space<vmem>>, %arg1: memref<128x384xf32, #tpu.memory_space<vmem>>, %arg2: memref<128x384xf32, #tpu.memory_space<vmem>>, %arg3: memref<1x384xf32, #tpu.memory_space<vmem>>, %arg4: memref<1x384xf32, #tpu.memory_space<vmem>>, %arg5: memref<128x384xf32, #tpu.memory_space<vmem>>, %arg6: memref<128x384xf32, #tpu.memory_space<vmem>>, %arg7: memref<1x384xf32, #tpu.memory_space<vmem>>, %arg8: memref<1x384xf32, #tpu.memory_space<vmem>>, %arg9: memref<128x128xf32, #tpu.memory_space<vmem>>, %arg10: memref<1x128xf32, #tpu.memory_space<vmem>>, %arg11: memref<128x128xf32, #tpu.memory_space<vmem>>, %arg12: memref<1x128xf32, #tpu.memory_space<vmem>>, %arg13: memref<8x8x128xf32, #tpu.memory_space<vmem>>, %arg14: memref<8x128xf32, #tpu.memory_space<vmem>>, %arg15: memref<8x8x128xf32, #tpu.memory_space<vmem>>, %arg16: memref<8x8x128xf32, #tpu.memory_space<vmem>>, %arg17: memref<8x8x384xf32, #tpu.memory_space<vmem>>) attributes {dimension_semantics = [], scalar_prefetch = 0 : i64, scratch_operands = 3 : i64, tpu.core_type = #tpu.core_type<tc>} {
    %c0 = arith.constant 0 : index
    %c0_0 = arith.constant 0 : index
    %c0_1 = arith.constant 0 : index
    %0 = vector.load %arg0[%c0, %c0_0, %c0_1] : memref<8x8x128xf32, #tpu.memory_space<vmem>>, vector<8x8x128xf32>
    %1 = vector.shape_cast %0 : vector<8x8x128xf32> to vector<64x128xf32>
    %c0_2 = arith.constant 0 : index
    %c0_3 = arith.constant 0 : index
    %2 = vector.load %arg1[%c0_2, %c0_3] : memref<128x384xf32, #tpu.memory_space<vmem>>, vector<128x384xf32>
    %cst = arith.constant dense<0.000000e+00> : vector<64x384xf32>
    %3 = tpu.matmul %1, %2, %cst {dimension_numbers = #tpu.dot_dimension_numbers<[1], [0], [0], [1], [0, 0, 1, 1], [], []>} : vector<64x128xf32>, vector<128x384xf32>, vector<64x384xf32> -> vector<64x384xf32>
    %c0_4 = arith.constant 0 : index
    %c0_5 = arith.constant 0 : index
    %4 = vector.load %arg3[%c0_4, %c0_5] : memref<1x384xf32, #tpu.memory_space<vmem>>, vector<1x384xf32>
    %5 = vector.broadcast %4 : vector<1x384xf32> to vector<64x384xf32>
    %6 = arith.addf %3, %5 : vector<64x384xf32>
    %7 = vector.shape_cast %6 : vector<64x384xf32> to vector<8x8x384xf32>
    %c0_6 = arith.constant 0 : index
    %c0_7 = arith.constant 0 : index
    %c0_8 = arith.constant 0 : index
    %8 = vector.load %arg17[%c0_6, %c0_7, %c0_8] : memref<8x8x384xf32, #tpu.memory_space<vmem>>, vector<8x8x384xf32>
    tpu.vector_store %arg17[%c0_6, %c0_7, %c0_8], %7 {strides = array<i32>} : memref<8x8x384xf32, #tpu.memory_space<vmem>>, vector<8x8x384xf32>,
    %c0_9 = arith.constant 0 : index
    %c0_10 = arith.constant 0 : index
    %9 = vector.load %arg4[%c0_9, %c0_10] : memref<1x384xf32, #tpu.memory_space<vmem>>, vector<1x384xf32>
    %10 = vector.shape_cast %9 : vector<1x384xf32> to vector<1x384xf32>
    %11 = vector.broadcast %10 : vector<1x384xf32> to vector<8x384xf32>
    %cst_11 = arith.constant 0.000000e+00 : f32
    %12 = vector.broadcast %cst_11 : f32 to vector<8x128xf32>
    %c0_12 = arith.constant 0 : index
    %c0_13 = arith.constant 0 : index
    %c0_14 = arith.constant 0 : index
    %13 = vector.load %arg17[%c0_12, %c0_13, %c0_14] : memref<8x8x384xf32, #tpu.memory_space<vmem>>, vector<1x8x384xf32>
    %14 = vector.shape_cast %13 : vector<1x8x384xf32> to vector<8x384xf32>
    %c0_15 = arith.constant 0 : index
    %c0_16 = arith.constant 0 : index
    %15 = vector.load %arg2[%c0_15, %c0_16] : memref<128x384xf32, #tpu.memory_space<vmem>>, vector<128x384xf32>
    %cst_17 = arith.constant dense<0.000000e+00> : vector<8x384xf32>
    %16 = tpu.matmul %12, %15, %cst_17 {dimension_numbers = #tpu.dot_dimension_numbers<[1], [0], [0], [1], [0, 0, 1, 1], [], []>} : vector<8x128xf32>, vector<128x384xf32>, vector<8x384xf32> -> vector<8x384xf32>
    %17 = arith.addf %16, %11 : vector<8x384xf32>
    %18 = vector.extract_strided_slice %14 {offsets = [0, 0], sizes = [8, 128], strides = [1, 1]} : vector<8x384xf32> to vector<8x128xf32>
    %19 = vector.extract_strided_slice %17 {offsets = [0, 0], sizes = [8, 128], strides = [1, 1]} : vector<8x384xf32> to vector<8x128xf32>
    %20 = arith.addf %18, %19 : vector<8x128xf32>
    %21 = arith.negf %20 : vector<8x128xf32>
    %22 = math.exp %21 : vector<8x128xf32>
    %cst_18 = arith.constant 1.000000e+00 : f32
    %23 = vector.broadcast %cst_18 : f32 to vector<8x128xf32>
    %24 = arith.addf %23, %22 : vector<8x128xf32>
    %25 = arith.divf %23, %24 : vector<8x128xf32>
    %26 = vector.extract_strided_slice %14 {offsets = [0, 128], sizes = [8, 128], strides = [1, 1]} : vector<8x384xf32> to vector<8x128xf32>
    %27 = vector.extract_strided_slice %17 {offsets = [0, 128], sizes = [8, 128], strides = [1, 1]} : vector<8x384xf32> to vector<8x128xf32>
    %28 = arith.addf %26, %27 : vector<8x128xf32>
    %29 = arith.negf %28 : vector<8x128xf32>
    %30 = math.exp %29 : vector<8x128xf32>
    %cst_19 = arith.constant 1.000000e+00 : f32
    %31 = vector.broadcast %cst_19 : f32 to vector<8x128xf32>
    %32 = arith.addf %31, %30 : vector<8x128xf32>
    %33 = arith.divf %31, %32 : vector<8x128xf32>
    %34 = vector.extract_strided_slice %14 {offsets = [0, 256], sizes = [8, 128], strides = [1, 1]} : vector<8x384xf32> to vector<8x128xf32>
    %35 = vector.extract_strided_slice %17 {offsets = [0, 256], sizes = [8, 128], strides = [1, 1]} : vector<8x384xf32> to vector<8x128xf32>
    %36 = arith.mulf %25, %35 : vector<8x128xf32>
    %37 = arith.addf %34, %36 : vector<8x128xf32>
    %38 = math.tanh %37 : vector<8x128xf32>
    %cst_20 = arith.constant 1.000000e+00 : f32
    %39 = vector.broadcast %cst_20 : f32 to vector<8x128xf32>
    %40 = arith.subf %39, %33 : vector<8x128xf32>
    %41 = arith.mulf %40, %38 : vector<8x128xf32>
    %42 = arith.mulf %33, %12 : vector<8x128xf32>
    %43 = arith.addf %41, %42 : vector<8x128xf32>
    %c0_21 = arith.constant 0 : index
    %c0_22 = arith.constant 0 : index
    %c0_23 = arith.constant 0 : index
    %44 = vector.load %arg15[%c0_21, %c0_22, %c0_23] : memref<8x8x128xf32, #tpu.memory_space<vmem>>, vector<1x8x128xf32>
    %45 = vector.shape_cast %44 : vector<1x8x128xf32> to vector<8x128xf32>
    %46 = vector.shape_cast %43 : vector<8x128xf32> to vector<1x8x128xf32>
    tpu.vector_store %arg15[%c0_21, %c0_22, %c0_23], %46 {strides = array<i32>} : memref<8x8x128xf32, #tpu.memory_space<vmem>>, vector<1x8x128xf32>,
    %c1 = arith.constant 1 : index
    %c0_24 = arith.constant 0 : index
    %c0_25 = arith.constant 0 : index
    %47 = vector.load %arg17[%c1, %c0_24, %c0_25] : memref<8x8x384xf32, #tpu.memory_space<vmem>>, vector<1x8x384xf32>
    %48 = vector.shape_cast %47 : vector<1x8x384xf32> to vector<8x384xf32>
    %c0_26 = arith.constant 0 : index
    %c0_27 = arith.constant 0 : index
    %49 = vector.load %arg2[%c0_26, %c0_27] : memref<128x384xf32, #tpu.memory_space<vmem>>, vector<128x384xf32>
    %cst_28 = arith.constant dense<0.000000e+00> : vector<8x384xf32>
    %50 = tpu.matmul %43, %49, %cst_28 {dimension_numbers = #tpu.dot_dimension_numbers<[1], [0], [0], [1], [0, 0, 1, 1], [], []>} : vector<8x128xf32>, vector<128x384xf32>, vector<8x384xf32> -> vector<8x384xf32>
    %51 = arith.addf %50, %11 : vector<8x384xf32>
    %52 = vector.extract_strided_slice %48 {offsets = [0, 0], sizes = [8, 128], strides = [1, 1]} : vector<8x384xf32> to vector<8x128xf32>
    %53 = vector.extract_strided_slice %51 {offsets = [0, 0], sizes = [8, 128], strides = [1, 1]} : vector<8x384xf32> to vector<8x128xf32>
    %54 = arith.addf %52, %53 : vector<8x128xf32>
    %55 = arith.negf %54 : vector<8x128xf32>
    %56 = math.exp %55 : vector<8x128xf32>
    %cst_29 = arith.constant 1.000000e+00 : f32
    %57 = vector.broadcast %cst_29 : f32 to vector<8x128xf32>
    %58 = arith.addf %57, %56 : vector<8x128xf32>
    %59 = arith.divf %57, %58 : vector<8x128xf32>
    %60 = vector.extract_strided_slice %48 {offsets = [0, 128], sizes = [8, 128], strides = [1, 1]} : vector<8x384xf32> to vector<8x128xf32>
    %61 = vector.extract_strided_slice %51 {offsets = [0, 128], sizes = [8, 128], strides = [1, 1]} : vector<8x384xf32> to vector<8x128xf32>
    %62 = arith.addf %60, %61 : vector<8x128xf32>
    %63 = arith.negf %62 : vector<8x128xf32>
    %64 = math.exp %63 : vector<8x128xf32>
    %cst_30 = arith.constant 1.000000e+00 : f32
    %65 = vector.broadcast %cst_30 : f32 to vector<8x128xf32>
    %66 = arith.addf %65, %64 : vector<8x128xf32>
    %67 = arith.divf %65, %66 : vector<8x128xf32>
    %68 = vector.extract_strided_slice %48 {offsets = [0, 256], sizes = [8, 128], strides = [1, 1]} : vector<8x384xf32> to vector<8x128xf32>
    %69 = vector.extract_strided_slice %51 {offsets = [0, 256], sizes = [8, 128], strides = [1, 1]} : vector<8x384xf32> to vector<8x128xf32>
    %70 = arith.mulf %59, %69 : vector<8x128xf32>
    %71 = arith.addf %68, %70 : vector<8x128xf32>
    %72 = math.tanh %71 : vector<8x128xf32>
    %cst_31 = arith.constant 1.000000e+00 : f32
    %73 = vector.broadcast %cst_31 : f32 to vector<8x128xf32>
    %74 = arith.subf %73, %67 : vector<8x128xf32>
    %75 = arith.mulf %74, %72 : vector<8x128xf32>
    %76 = arith.mulf %67, %43 : vector<8x128xf32>
    %77 = arith.addf %75, %76 : vector<8x128xf32>
    %c1_32 = arith.constant 1 : index
    %c0_33 = arith.constant 0 : index
    %c0_34 = arith.constant 0 : index
    %78 = vector.load %arg15[%c1_32, %c0_33, %c0_34] : memref<8x8x128xf32, #tpu.memory_space<vmem>>, vector<1x8x128xf32>
    %79 = vector.shape_cast %78 : vector<1x8x128xf32> to vector<8x128xf32>
    %80 = vector.shape_cast %77 : vector<8x128xf32> to vector<1x8x128xf32>
    tpu.vector_store %arg15[%c1_32, %c0_33, %c0_34], %80 {strides = array<i32>} : memref<8x8x128xf32, #tpu.memory_space<vmem>>, vector<1x8x128xf32>,
    %c2 = arith.constant 2 : index
    %c0_35 = arith.constant 0 : index
    %c0_36 = arith.constant 0 : index
    %81 = vector.load %arg17[%c2, %c0_35, %c0_36] : memref<8x8x384xf32, #tpu.memory_space<vmem>>, vector<1x8x384xf32>
    %82 = vector.shape_cast %81 : vector<1x8x384xf32> to vector<8x384xf32>
    %c0_37 = arith.constant 0 : index
    %c0_38 = arith.constant 0 : index
    %83 = vector.load %arg2[%c0_37, %c0_38] : memref<128x384xf32, #tpu.memory_space<vmem>>, vector<128x384xf32>
    %cst_39 = arith.constant dense<0.000000e+00> : vector<8x384xf32>
    %84 = tpu.matmul %77, %83, %cst_39 {dimension_numbers = #tpu.dot_dimension_numbers<[1], [0], [0], [1], [0, 0, 1, 1], [], []>} : vector<8x128xf32>, vector<128x384xf32>, vector<8x384xf32> -> vector<8x384xf32>
    %85 = arith.addf %84, %11 : vector<8x384xf32>
    %86 = vector.extract_strided_slice %82 {offsets = [0, 0], sizes = [8, 128], strides = [1, 1]} : vector<8x384xf32> to vector<8x128xf32>
    %87 = vector.extract_strided_slice %85 {offsets = [0, 0], sizes = [8, 128], strides = [1, 1]} : vector<8x384xf32> to vector<8x128xf32>
    %88 = arith.addf %86, %87 : vector<8x128xf32>
    %89 = arith.negf %88 : vector<8x128xf32>
    %90 = math.exp %89 : vector<8x128xf32>
    %cst_40 = arith.constant 1.000000e+00 : f32
    %91 = vector.broadcast %cst_40 : f32 to vector<8x128xf32>
    %92 = arith.addf %91, %90 : vector<8x128xf32>
    %93 = arith.divf %91, %92 : vector<8x128xf32>
    %94 = vector.extract_strided_slice %82 {offsets = [0, 128], sizes = [8, 128], strides = [1, 1]} : vector<8x384xf32> to vector<8x128xf32>
    %95 = vector.extract_strided_slice %85 {offsets = [0, 128], sizes = [8, 128], strides = [1, 1]} : vector<8x384xf32> to vector<8x128xf32>
    %96 = arith.addf %94, %95 : vector<8x128xf32>
    %97 = arith.negf %96 : vector<8x128xf32>
    %98 = math.exp %97 : vector<8x128xf32>
    %cst_41 = arith.constant 1.000000e+00 : f32
    %99 = vector.broadcast %cst_41 : f32 to vector<8x128xf32>
    %100 = arith.addf %99, %98 : vector<8x128xf32>
    %101 = arith.divf %99, %100 : vector<8x128xf32>
    %102 = vector.extract_strided_slice %82 {offsets = [0, 256], sizes = [8, 128], strides = [1, 1]} : vector<8x384xf32> to vector<8x128xf32>
    %103 = vector.extract_strided_slice %85 {offsets = [0, 256], sizes = [8, 128], strides = [1, 1]} : vector<8x384xf32> to vector<8x128xf32>
    %104 = arith.mulf %93, %103 : vector<8x128xf32>
    %105 = arith.addf %102, %104 : vector<8x128xf32>
    %106 = math.tanh %105 : vector<8x128xf32>
    %cst_42 = arith.constant 1.000000e+00 : f32
    %107 = vector.broadcast %cst_42 : f32 to vector<8x128xf32>
    %108 = arith.subf %107, %101 : vector<8x128xf32>
    %109 = arith.mulf %108, %106 : vector<8x128xf32>
    %110 = arith.mulf %101, %77 : vector<8x128xf32>
    %111 = arith.addf %109, %110 : vector<8x128xf32>
    %c2_43 = arith.constant 2 : index
    %c0_44 = arith.constant 0 : index
    %c0_45 = arith.constant 0 : index
    %112 = vector.load %arg15[%c2_43, %c0_44, %c0_45] : memref<8x8x128xf32, #tpu.memory_space<vmem>>, vector<1x8x128xf32>
    %113 = vector.shape_cast %112 : vector<1x8x128xf32> to vector<8x128xf32>
    %114 = vector.shape_cast %111 : vector<8x128xf32> to vector<1x8x128xf32>
    tpu.vector_store %arg15[%c2_43, %c0_44, %c0_45], %114 {strides = array<i32>} : memref<8x8x128xf32, #tpu.memory_space<vmem>>, vector<1x8x128xf32>,
    %c3 = arith.constant 3 : index
    %c0_46 = arith.constant 0 : index
    %c0_47 = arith.constant 0 : index
    %115 = vector.load %arg17[%c3, %c0_46, %c0_47] : memref<8x8x384xf32, #tpu.memory_space<vmem>>, vector<1x8x384xf32>
    %116 = vector.shape_cast %115 : vector<1x8x384xf32> to vector<8x384xf32>
    %c0_48 = arith.constant 0 : index
    %c0_49 = arith.constant 0 : index
    %117 = vector.load %arg2[%c0_48, %c0_49] : memref<128x384xf32, #tpu.memory_space<vmem>>, vector<128x384xf32>
    %cst_50 = arith.constant dense<0.000000e+00> : vector<8x384xf32>
    %118 = tpu.matmul %111, %117, %cst_50 {dimension_numbers = #tpu.dot_dimension_numbers<[1], [0], [0], [1], [0, 0, 1, 1], [], []>} : vector<8x128xf32>, vector<128x384xf32>, vector<8x384xf32> -> vector<8x384xf32>
    %119 = arith.addf %118, %11 : vector<8x384xf32>
    %120 = vector.extract_strided_slice %116 {offsets = [0, 0], sizes = [8, 128], strides = [1, 1]} : vector<8x384xf32> to vector<8x128xf32>
    %121 = vector.extract_strided_slice %119 {offsets = [0, 0], sizes = [8, 128], strides = [1, 1]} : vector<8x384xf32> to vector<8x128xf32>
    %122 = arith.addf %120, %121 : vector<8x128xf32>
    %123 = arith.negf %122 : vector<8x128xf32>
    %124 = math.exp %123 : vector<8x128xf32>
    %cst_51 = arith.constant 1.000000e+00 : f32
    %125 = vector.broadcast %cst_51 : f32 to vector<8x128xf32>
    %126 = arith.addf %125, %124 : vector<8x128xf32>
    %127 = arith.divf %125, %126 : vector<8x128xf32>
    %128 = vector.extract_strided_slice %116 {offsets = [0, 128], sizes = [8, 128], strides = [1, 1]} : vector<8x384xf32> to vector<8x128xf32>
    %129 = vector.extract_strided_slice %119 {offsets = [0, 128], sizes = [8, 128], strides = [1, 1]} : vector<8x384xf32> to vector<8x128xf32>
    %130 = arith.addf %128, %129 : vector<8x128xf32>
    %131 = arith.negf %130 : vector<8x128xf32>
    %132 = math.exp %131 : vector<8x128xf32>
    %cst_52 = arith.constant 1.000000e+00 : f32
    %133 = vector.broadcast %cst_52 : f32 to vector<8x128xf32>
    %134 = arith.addf %133, %132 : vector<8x128xf32>
    %135 = arith.divf %133, %134 : vector<8x128xf32>
    %136 = vector.extract_strided_slice %116 {offsets = [0, 256], sizes = [8, 128], strides = [1, 1]} : vector<8x384xf32> to vector<8x128xf32>
    %137 = vector.extract_strided_slice %119 {offsets = [0, 256], sizes = [8, 128], strides = [1, 1]} : vector<8x384xf32> to vector<8x128xf32>
    %138 = arith.mulf %127, %137 : vector<8x128xf32>
    %139 = arith.addf %136, %138 : vector<8x128xf32>
    %140 = math.tanh %139 : vector<8x128xf32>
    %cst_53 = arith.constant 1.000000e+00 : f32
    %141 = vector.broadcast %cst_53 : f32 to vector<8x128xf32>
    %142 = arith.subf %141, %135 : vector<8x128xf32>
    %143 = arith.mulf %142, %140 : vector<8x128xf32>
    %144 = arith.mulf %135, %111 : vector<8x128xf32>
    %145 = arith.addf %143, %144 : vector<8x128xf32>
    %c3_54 = arith.constant 3 : index
    %c0_55 = arith.constant 0 : index
    %c0_56 = arith.constant 0 : index
    %146 = vector.load %arg15[%c3_54, %c0_55, %c0_56] : memref<8x8x128xf32, #tpu.memory_space<vmem>>, vector<1x8x128xf32>
    %147 = vector.shape_cast %146 : vector<1x8x128xf32> to vector<8x128xf32>
    %148 = vector.shape_cast %145 : vector<8x128xf32> to vector<1x8x128xf32>
    tpu.vector_store %arg15[%c3_54, %c0_55, %c0_56], %148 {strides = array<i32>} : memref<8x8x128xf32, #tpu.memory_space<vmem>>, vector<1x8x128xf32>,
    %c4 = arith.constant 4 : index
    %c0_57 = arith.constant 0 : index
    %c0_58 = arith.constant 0 : index
    %149 = vector.load %arg17[%c4, %c0_57, %c0_58] : memref<8x8x384xf32, #tpu.memory_space<vmem>>, vector<1x8x384xf32>
    %150 = vector.shape_cast %149 : vector<1x8x384xf32> to vector<8x384xf32>
    %c0_59 = arith.constant 0 : index
    %c0_60 = arith.constant 0 : index
    %151 = vector.load %arg2[%c0_59, %c0_60] : memref<128x384xf32, #tpu.memory_space<vmem>>, vector<128x384xf32>
    %cst_61 = arith.constant dense<0.000000e+00> : vector<8x384xf32>
    %152 = tpu.matmul %145, %151, %cst_61 {dimension_numbers = #tpu.dot_dimension_numbers<[1], [0], [0], [1], [0, 0, 1, 1], [], []>} : vector<8x128xf32>, vector<128x384xf32>, vector<8x384xf32> -> vector<8x384xf32>
    %153 = arith.addf %152, %11 : vector<8x384xf32>
    %154 = vector.extract_strided_slice %150 {offsets = [0, 0], sizes = [8, 128], strides = [1, 1]} : vector<8x384xf32> to vector<8x128xf32>
    %155 = vector.extract_strided_slice %153 {offsets = [0, 0], sizes = [8, 128], strides = [1, 1]} : vector<8x384xf32> to vector<8x128xf32>
    %156 = arith.addf %154, %155 : vector<8x128xf32>
    %157 = arith.negf %156 : vector<8x128xf32>
    %158 = math.exp %157 : vector<8x128xf32>
    %cst_62 = arith.constant 1.000000e+00 : f32
    %159 = vector.broadcast %cst_62 : f32 to vector<8x128xf32>
    %160 = arith.addf %159, %158 : vector<8x128xf32>
    %161 = arith.divf %159, %160 : vector<8x128xf32>
    %162 = vector.extract_strided_slice %150 {offsets = [0, 128], sizes = [8, 128], strides = [1, 1]} : vector<8x384xf32> to vector<8x128xf32>
    %163 = vector.extract_strided_slice %153 {offsets = [0, 128], sizes = [8, 128], strides = [1, 1]} : vector<8x384xf32> to vector<8x128xf32>
    %164 = arith.addf %162, %163 : vector<8x128xf32>
    %165 = arith.negf %164 : vector<8x128xf32>
    %166 = math.exp %165 : vector<8x128xf32>
    %cst_63 = arith.constant 1.000000e+00 : f32
    %167 = vector.broadcast %cst_63 : f32 to vector<8x128xf32>
    %168 = arith.addf %167, %166 : vector<8x128xf32>
    %169 = arith.divf %167, %168 : vector<8x128xf32>
    %170 = vector.extract_strided_slice %150 {offsets = [0, 256], sizes = [8, 128], strides = [1, 1]} : vector<8x384xf32> to vector<8x128xf32>
    %171 = vector.extract_strided_slice %153 {offsets = [0, 256], sizes = [8, 128], strides = [1, 1]} : vector<8x384xf32> to vector<8x128xf32>
    %172 = arith.mulf %161, %171 : vector<8x128xf32>
    %173 = arith.addf %170, %172 : vector<8x128xf32>
    %174 = math.tanh %173 : vector<8x128xf32>
    %cst_64 = arith.constant 1.000000e+00 : f32
    %175 = vector.broadcast %cst_64 : f32 to vector<8x128xf32>
    %176 = arith.subf %175, %169 : vector<8x128xf32>
    %177 = arith.mulf %176, %174 : vector<8x128xf32>
    %178 = arith.mulf %169, %145 : vector<8x128xf32>
    %179 = arith.addf %177, %178 : vector<8x128xf32>
    %c4_65 = arith.constant 4 : index
    %c0_66 = arith.constant 0 : index
    %c0_67 = arith.constant 0 : index
    %180 = vector.load %arg15[%c4_65, %c0_66, %c0_67] : memref<8x8x128xf32, #tpu.memory_space<vmem>>, vector<1x8x128xf32>
    %181 = vector.shape_cast %180 : vector<1x8x128xf32> to vector<8x128xf32>
    %182 = vector.shape_cast %179 : vector<8x128xf32> to vector<1x8x128xf32>
    tpu.vector_store %arg15[%c4_65, %c0_66, %c0_67], %182 {strides = array<i32>} : memref<8x8x128xf32, #tpu.memory_space<vmem>>, vector<1x8x128xf32>,
    %c5 = arith.constant 5 : index
    %c0_68 = arith.constant 0 : index
    %c0_69 = arith.constant 0 : index
    %183 = vector.load %arg17[%c5, %c0_68, %c0_69] : memref<8x8x384xf32, #tpu.memory_space<vmem>>, vector<1x8x384xf32>
    %184 = vector.shape_cast %183 : vector<1x8x384xf32> to vector<8x384xf32>
    %c0_70 = arith.constant 0 : index
    %c0_71 = arith.constant 0 : index
    %185 = vector.load %arg2[%c0_70, %c0_71] : memref<128x384xf32, #tpu.memory_space<vmem>>, vector<128x384xf32>
    %cst_72 = arith.constant dense<0.000000e+00> : vector<8x384xf32>
    %186 = tpu.matmul %179, %185, %cst_72 {dimension_numbers = #tpu.dot_dimension_numbers<[1], [0], [0], [1], [0, 0, 1, 1], [], []>} : vector<8x128xf32>, vector<128x384xf32>, vector<8x384xf32> -> vector<8x384xf32>
    %187 = arith.addf %186, %11 : vector<8x384xf32>
    %188 = vector.extract_strided_slice %184 {offsets = [0, 0], sizes = [8, 128], strides = [1, 1]} : vector<8x384xf32> to vector<8x128xf32>
    %189 = vector.extract_strided_slice %187 {offsets = [0, 0], sizes = [8, 128], strides = [1, 1]} : vector<8x384xf32> to vector<8x128xf32>
    %190 = arith.addf %188, %189 : vector<8x128xf32>
    %191 = arith.negf %190 : vector<8x128xf32>
    %192 = math.exp %191 : vector<8x128xf32>
    %cst_73 = arith.constant 1.000000e+00 : f32
    %193 = vector.broadcast %cst_73 : f32 to vector<8x128xf32>
    %194 = arith.addf %193, %192 : vector<8x128xf32>
    %195 = arith.divf %193, %194 : vector<8x128xf32>
    %196 = vector.extract_strided_slice %184 {offsets = [0, 128], sizes = [8, 128], strides = [1, 1]} : vector<8x384xf32> to vector<8x128xf32>
    %197 = vector.extract_strided_slice %187 {offsets = [0, 128], sizes = [8, 128], strides = [1, 1]} : vector<8x384xf32> to vector<8x128xf32>
    %198 = arith.addf %196, %197 : vector<8x128xf32>
    %199 = arith.negf %198 : vector<8x128xf32>
    %200 = math.exp %199 : vector<8x128xf32>
    %cst_74 = arith.constant 1.000000e+00 : f32
    %201 = vector.broadcast %cst_74 : f32 to vector<8x128xf32>
    %202 = arith.addf %201, %200 : vector<8x128xf32>
    %203 = arith.divf %201, %202 : vector<8x128xf32>
    %204 = vector.extract_strided_slice %184 {offsets = [0, 256], sizes = [8, 128], strides = [1, 1]} : vector<8x384xf32> to vector<8x128xf32>
    %205 = vector.extract_strided_slice %187 {offsets = [0, 256], sizes = [8, 128], strides = [1, 1]} : vector<8x384xf32> to vector<8x128xf32>
    %206 = arith.mulf %195, %205 : vector<8x128xf32>
    %207 = arith.addf %204, %206 : vector<8x128xf32>
    %208 = math.tanh %207 : vector<8x128xf32>
    %cst_75 = arith.constant 1.000000e+00 : f32
    %209 = vector.broadcast %cst_75 : f32 to vector<8x128xf32>
    %210 = arith.subf %209, %203 : vector<8x128xf32>
    %211 = arith.mulf %210, %208 : vector<8x128xf32>
    %212 = arith.mulf %203, %179 : vector<8x128xf32>
    %213 = arith.addf %211, %212 : vector<8x128xf32>
    %c5_76 = arith.constant 5 : index
    %c0_77 = arith.constant 0 : index
    %c0_78 = arith.constant 0 : index
    %214 = vector.load %arg15[%c5_76, %c0_77, %c0_78] : memref<8x8x128xf32, #tpu.memory_space<vmem>>, vector<1x8x128xf32>
    %215 = vector.shape_cast %214 : vector<1x8x128xf32> to vector<8x128xf32>
    %216 = vector.shape_cast %213 : vector<8x128xf32> to vector<1x8x128xf32>
    tpu.vector_store %arg15[%c5_76, %c0_77, %c0_78], %216 {strides = array<i32>} : memref<8x8x128xf32, #tpu.memory_space<vmem>>, vector<1x8x128xf32>,
    %c6 = arith.constant 6 : index
    %c0_79 = arith.constant 0 : index
    %c0_80 = arith.constant 0 : index
    %217 = vector.load %arg17[%c6, %c0_79, %c0_80] : memref<8x8x384xf32, #tpu.memory_space<vmem>>, vector<1x8x384xf32>
    %218 = vector.shape_cast %217 : vector<1x8x384xf32> to vector<8x384xf32>
    %c0_81 = arith.constant 0 : index
    %c0_82 = arith.constant 0 : index
    %219 = vector.load %arg2[%c0_81, %c0_82] : memref<128x384xf32, #tpu.memory_space<vmem>>, vector<128x384xf32>
    %cst_83 = arith.constant dense<0.000000e+00> : vector<8x384xf32>
    %220 = tpu.matmul %213, %219, %cst_83 {dimension_numbers = #tpu.dot_dimension_numbers<[1], [0], [0], [1], [0, 0, 1, 1], [], []>} : vector<8x128xf32>, vector<128x384xf32>, vector<8x384xf32> -> vector<8x384xf32>
    %221 = arith.addf %220, %11 : vector<8x384xf32>
    %222 = vector.extract_strided_slice %218 {offsets = [0, 0], sizes = [8, 128], strides = [1, 1]} : vector<8x384xf32> to vector<8x128xf32>
    %223 = vector.extract_strided_slice %221 {offsets = [0, 0], sizes = [8, 128], strides = [1, 1]} : vector<8x384xf32> to vector<8x128xf32>
    %224 = arith.addf %222, %223 : vector<8x128xf32>
    %225 = arith.negf %224 : vector<8x128xf32>
    %226 = math.exp %225 : vector<8x128xf32>
    %cst_84 = arith.constant 1.000000e+00 : f32
    %227 = vector.broadcast %cst_84 : f32 to vector<8x128xf32>
    %228 = arith.addf %227, %226 : vector<8x128xf32>
    %229 = arith.divf %227, %228 : vector<8x128xf32>
    %230 = vector.extract_strided_slice %218 {offsets = [0, 128], sizes = [8, 128], strides = [1, 1]} : vector<8x384xf32> to vector<8x128xf32>
    %231 = vector.extract_strided_slice %221 {offsets = [0, 128], sizes = [8, 128], strides = [1, 1]} : vector<8x384xf32> to vector<8x128xf32>
    %232 = arith.addf %230, %231 : vector<8x128xf32>
    %233 = arith.negf %232 : vector<8x128xf32>
    %234 = math.exp %233 : vector<8x128xf32>
    %cst_85 = arith.constant 1.000000e+00 : f32
    %235 = vector.broadcast %cst_85 : f32 to vector<8x128xf32>
    %236 = arith.addf %235, %234 : vector<8x128xf32>
    %237 = arith.divf %235, %236 : vector<8x128xf32>
    %238 = vector.extract_strided_slice %218 {offsets = [0, 256], sizes = [8, 128], strides = [1, 1]} : vector<8x384xf32> to vector<8x128xf32>
    %239 = vector.extract_strided_slice %221 {offsets = [0, 256], sizes = [8, 128], strides = [1, 1]} : vector<8x384xf32> to vector<8x128xf32>
    %240 = arith.mulf %229, %239 : vector<8x128xf32>
    %241 = arith.addf %238, %240 : vector<8x128xf32>
    %242 = math.tanh %241 : vector<8x128xf32>
    %cst_86 = arith.constant 1.000000e+00 : f32
    %243 = vector.broadcast %cst_86 : f32 to vector<8x128xf32>
    %244 = arith.subf %243, %237 : vector<8x128xf32>
    %245 = arith.mulf %244, %242 : vector<8x128xf32>
    %246 = arith.mulf %237, %213 : vector<8x128xf32>
    %247 = arith.addf %245, %246 : vector<8x128xf32>
    %c6_87 = arith.constant 6 : index
    %c0_88 = arith.constant 0 : index
    %c0_89 = arith.constant 0 : index
    %248 = vector.load %arg15[%c6_87, %c0_88, %c0_89] : memref<8x8x128xf32, #tpu.memory_space<vmem>>, vector<1x8x128xf32>
    %249 = vector.shape_cast %248 : vector<1x8x128xf32> to vector<8x128xf32>
    %250 = vector.shape_cast %247 : vector<8x128xf32> to vector<1x8x128xf32>
    tpu.vector_store %arg15[%c6_87, %c0_88, %c0_89], %250 {strides = array<i32>} : memref<8x8x128xf32, #tpu.memory_space<vmem>>, vector<1x8x128xf32>,
    %c7 = arith.constant 7 : index
    %c0_90 = arith.constant 0 : index
    %c0_91 = arith.constant 0 : index
    %251 = vector.load %arg17[%c7, %c0_90, %c0_91] : memref<8x8x384xf32, #tpu.memory_space<vmem>>, vector<1x8x384xf32>
    %252 = vector.shape_cast %251 : vector<1x8x384xf32> to vector<8x384xf32>
    %c0_92 = arith.constant 0 : index
    %c0_93 = arith.constant 0 : index
    %253 = vector.load %arg2[%c0_92, %c0_93] : memref<128x384xf32, #tpu.memory_space<vmem>>, vector<128x384xf32>
    %cst_94 = arith.constant dense<0.000000e+00> : vector<8x384xf32>
    %254 = tpu.matmul %247, %253, %cst_94 {dimension_numbers = #tpu.dot_dimension_numbers<[1], [0], [0], [1], [0, 0, 1, 1], [], []>} : vector<8x128xf32>, vector<128x384xf32>, vector<8x384xf32> -> vector<8x384xf32>
    %255 = arith.addf %254, %11 : vector<8x384xf32>
    %256 = vector.extract_strided_slice %252 {offsets = [0, 0], sizes = [8, 128], strides = [1, 1]} : vector<8x384xf32> to vector<8x128xf32>
    %257 = vector.extract_strided_slice %255 {offsets = [0, 0], sizes = [8, 128], strides = [1, 1]} : vector<8x384xf32> to vector<8x128xf32>
    %258 = arith.addf %256, %257 : vector<8x128xf32>
    %259 = arith.negf %258 : vector<8x128xf32>
    %260 = math.exp %259 : vector<8x128xf32>
    %cst_95 = arith.constant 1.000000e+00 : f32
    %261 = vector.broadcast %cst_95 : f32 to vector<8x128xf32>
    %262 = arith.addf %261, %260 : vector<8x128xf32>
    %263 = arith.divf %261, %262 : vector<8x128xf32>
    %264 = vector.extract_strided_slice %252 {offsets = [0, 128], sizes = [8, 128], strides = [1, 1]} : vector<8x384xf32> to vector<8x128xf32>
    %265 = vector.extract_strided_slice %255 {offsets = [0, 128], sizes = [8, 128], strides = [1, 1]} : vector<8x384xf32> to vector<8x128xf32>
    %266 = arith.addf %264, %265 : vector<8x128xf32>
    %267 = arith.negf %266 : vector<8x128xf32>
    %268 = math.exp %267 : vector<8x128xf32>
    %cst_96 = arith.constant 1.000000e+00 : f32
    %269 = vector.broadcast %cst_96 : f32 to vector<8x128xf32>
    %270 = arith.addf %269, %268 : vector<8x128xf32>
    %271 = arith.divf %269, %270 : vector<8x128xf32>
    %272 = vector.extract_strided_slice %252 {offsets = [0, 256], sizes = [8, 128], strides = [1, 1]} : vector<8x384xf32> to vector<8x128xf32>
    %273 = vector.extract_strided_slice %255 {offsets = [0, 256], sizes = [8, 128], strides = [1, 1]} : vector<8x384xf32> to vector<8x128xf32>
    %274 = arith.mulf %263, %273 : vector<8x128xf32>
    %275 = arith.addf %272, %274 : vector<8x128xf32>
    %276 = math.tanh %275 : vector<8x128xf32>
    %cst_97 = arith.constant 1.000000e+00 : f32
    %277 = vector.broadcast %cst_97 : f32 to vector<8x128xf32>
    %278 = arith.subf %277, %271 : vector<8x128xf32>
    %279 = arith.mulf %278, %276 : vector<8x128xf32>
    %280 = arith.mulf %271, %247 : vector<8x128xf32>
    %281 = arith.addf %279, %280 : vector<8x128xf32>
    %c7_98 = arith.constant 7 : index
    %c0_99 = arith.constant 0 : index
    %c0_100 = arith.constant 0 : index
    %282 = vector.load %arg15[%c7_98, %c0_99, %c0_100] : memref<8x8x128xf32, #tpu.memory_space<vmem>>, vector<1x8x128xf32>
    %283 = vector.shape_cast %282 : vector<1x8x128xf32> to vector<8x128xf32>
    %284 = vector.shape_cast %281 : vector<8x128xf32> to vector<1x8x128xf32>
    tpu.vector_store %arg15[%c7_98, %c0_99, %c0_100], %284 {strides = array<i32>} : memref<8x8x128xf32, #tpu.memory_space<vmem>>, vector<1x8x128xf32>,
    %c0_101 = arith.constant 0 : index
    %c0_102 = arith.constant 0 : index
    %c0_103 = arith.constant 0 : index
    %285 = vector.load %arg15[%c0_101, %c0_102, %c0_103] : memref<8x8x128xf32, #tpu.memory_space<vmem>>, vector<8x8x128xf32>
    %286 = vector.shape_cast %285 : vector<8x8x128xf32> to vector<64x128xf32>
    %c0_104 = arith.constant 0 : index
    %c0_105 = arith.constant 0 : index
    %287 = vector.load %arg5[%c0_104, %c0_105] : memref<128x384xf32, #tpu.memory_space<vmem>>, vector<128x384xf32>
    %cst_106 = arith.constant dense<0.000000e+00> : vector<64x384xf32>
    %288 = tpu.matmul %286, %287, %cst_106 {dimension_numbers = #tpu.dot_dimension_numbers<[1], [0], [0], [1], [0, 0, 1, 1], [], []>} : vector<64x128xf32>, vector<128x384xf32>, vector<64x384xf32> -> vector<64x384xf32>
    %c0_107 = arith.constant 0 : index
    %c0_108 = arith.constant 0 : index
    %289 = vector.load %arg7[%c0_107, %c0_108] : memref<1x384xf32, #tpu.memory_space<vmem>>, vector<1x384xf32>
    %290 = vector.broadcast %289 : vector<1x384xf32> to vector<64x384xf32>
    %291 = arith.addf %288, %290 : vector<64x384xf32>
    %292 = vector.shape_cast %291 : vector<64x384xf32> to vector<8x8x384xf32>
    %c0_109 = arith.constant 0 : index
    %c0_110 = arith.constant 0 : index
    %c0_111 = arith.constant 0 : index
    %293 = vector.load %arg17[%c0_109, %c0_110, %c0_111] : memref<8x8x384xf32, #tpu.memory_space<vmem>>, vector<8x8x384xf32>
    tpu.vector_store %arg17[%c0_109, %c0_110, %c0_111], %292 {strides = array<i32>} : memref<8x8x384xf32, #tpu.memory_space<vmem>>, vector<8x8x384xf32>,
    %c0_112 = arith.constant 0 : index
    %c0_113 = arith.constant 0 : index
    %294 = vector.load %arg8[%c0_112, %c0_113] : memref<1x384xf32, #tpu.memory_space<vmem>>, vector<1x384xf32>
    %295 = vector.shape_cast %294 : vector<1x384xf32> to vector<1x384xf32>
    %296 = vector.broadcast %295 : vector<1x384xf32> to vector<8x384xf32>
    %cst_114 = arith.constant 0.000000e+00 : f32
    %297 = vector.broadcast %cst_114 : f32 to vector<8x128xf32>
    %c0_115 = arith.constant 0 : index
    %c0_116 = arith.constant 0 : index
    %c0_117 = arith.constant 0 : index
    %298 = vector.load %arg17[%c0_115, %c0_116, %c0_117] : memref<8x8x384xf32, #tpu.memory_space<vmem>>, vector<1x8x384xf32>
    %299 = vector.shape_cast %298 : vector<1x8x384xf32> to vector<8x384xf32>
    %c0_118 = arith.constant 0 : index
    %c0_119 = arith.constant 0 : index
    %300 = vector.load %arg6[%c0_118, %c0_119] : memref<128x384xf32, #tpu.memory_space<vmem>>, vector<128x384xf32>
    %cst_120 = arith.constant dense<0.000000e+00> : vector<8x384xf32>
    %301 = tpu.matmul %297, %300, %cst_120 {dimension_numbers = #tpu.dot_dimension_numbers<[1], [0], [0], [1], [0, 0, 1, 1], [], []>} : vector<8x128xf32>, vector<128x384xf32>, vector<8x384xf32> -> vector<8x384xf32>
    %302 = arith.addf %301, %296 : vector<8x384xf32>
    %303 = vector.extract_strided_slice %299 {offsets = [0, 0], sizes = [8, 128], strides = [1, 1]} : vector<8x384xf32> to vector<8x128xf32>
    %304 = vector.extract_strided_slice %302 {offsets = [0, 0], sizes = [8, 128], strides = [1, 1]} : vector<8x384xf32> to vector<8x128xf32>
    %305 = arith.addf %303, %304 : vector<8x128xf32>
    %306 = arith.negf %305 : vector<8x128xf32>
    %307 = math.exp %306 : vector<8x128xf32>
    %cst_121 = arith.constant 1.000000e+00 : f32
    %308 = vector.broadcast %cst_121 : f32 to vector<8x128xf32>
    %309 = arith.addf %308, %307 : vector<8x128xf32>
    %310 = arith.divf %308, %309 : vector<8x128xf32>
    %311 = vector.extract_strided_slice %299 {offsets = [0, 128], sizes = [8, 128], strides = [1, 1]} : vector<8x384xf32> to vector<8x128xf32>
    %312 = vector.extract_strided_slice %302 {offsets = [0, 128], sizes = [8, 128], strides = [1, 1]} : vector<8x384xf32> to vector<8x128xf32>
    %313 = arith.addf %311, %312 : vector<8x128xf32>
    %314 = arith.negf %313 : vector<8x128xf32>
    %315 = math.exp %314 : vector<8x128xf32>
    %cst_122 = arith.constant 1.000000e+00 : f32
    %316 = vector.broadcast %cst_122 : f32 to vector<8x128xf32>
    %317 = arith.addf %316, %315 : vector<8x128xf32>
    %318 = arith.divf %316, %317 : vector<8x128xf32>
    %319 = vector.extract_strided_slice %299 {offsets = [0, 256], sizes = [8, 128], strides = [1, 1]} : vector<8x384xf32> to vector<8x128xf32>
    %320 = vector.extract_strided_slice %302 {offsets = [0, 256], sizes = [8, 128], strides = [1, 1]} : vector<8x384xf32> to vector<8x128xf32>
    %321 = arith.mulf %310, %320 : vector<8x128xf32>
    %322 = arith.addf %319, %321 : vector<8x128xf32>
    %323 = math.tanh %322 : vector<8x128xf32>
    %cst_123 = arith.constant 1.000000e+00 : f32
    %324 = vector.broadcast %cst_123 : f32 to vector<8x128xf32>
    %325 = arith.subf %324, %318 : vector<8x128xf32>
    %326 = arith.mulf %325, %323 : vector<8x128xf32>
    %327 = arith.mulf %318, %297 : vector<8x128xf32>
    %328 = arith.addf %326, %327 : vector<8x128xf32>
    %c0_124 = arith.constant 0 : index
    %c0_125 = arith.constant 0 : index
    %c0_126 = arith.constant 0 : index
    %329 = vector.load %arg16[%c0_124, %c0_125, %c0_126] : memref<8x8x128xf32, #tpu.memory_space<vmem>>, vector<1x8x128xf32>
    %330 = vector.shape_cast %329 : vector<1x8x128xf32> to vector<8x128xf32>
    %331 = vector.shape_cast %328 : vector<8x128xf32> to vector<1x8x128xf32>
    tpu.vector_store %arg16[%c0_124, %c0_125, %c0_126], %331 {strides = array<i32>} : memref<8x8x128xf32, #tpu.memory_space<vmem>>, vector<1x8x128xf32>,
    %c1_127 = arith.constant 1 : index
    %c0_128 = arith.constant 0 : index
    %c0_129 = arith.constant 0 : index
    %332 = vector.load %arg17[%c1_127, %c0_128, %c0_129] : memref<8x8x384xf32, #tpu.memory_space<vmem>>, vector<1x8x384xf32>
    %333 = vector.shape_cast %332 : vector<1x8x384xf32> to vector<8x384xf32>
    %c0_130 = arith.constant 0 : index
    %c0_131 = arith.constant 0 : index
    %334 = vector.load %arg6[%c0_130, %c0_131] : memref<128x384xf32, #tpu.memory_space<vmem>>, vector<128x384xf32>
    %cst_132 = arith.constant dense<0.000000e+00> : vector<8x384xf32>
    %335 = tpu.matmul %328, %334, %cst_132 {dimension_numbers = #tpu.dot_dimension_numbers<[1], [0], [0], [1], [0, 0, 1, 1], [], []>} : vector<8x128xf32>, vector<128x384xf32>, vector<8x384xf32> -> vector<8x384xf32>
    %336 = arith.addf %335, %296 : vector<8x384xf32>
    %337 = vector.extract_strided_slice %333 {offsets = [0, 0], sizes = [8, 128], strides = [1, 1]} : vector<8x384xf32> to vector<8x128xf32>
    %338 = vector.extract_strided_slice %336 {offsets = [0, 0], sizes = [8, 128], strides = [1, 1]} : vector<8x384xf32> to vector<8x128xf32>
    %339 = arith.addf %337, %338 : vector<8x128xf32>
    %340 = arith.negf %339 : vector<8x128xf32>
    %341 = math.exp %340 : vector<8x128xf32>
    %cst_133 = arith.constant 1.000000e+00 : f32
    %342 = vector.broadcast %cst_133 : f32 to vector<8x128xf32>
    %343 = arith.addf %342, %341 : vector<8x128xf32>
    %344 = arith.divf %342, %343 : vector<8x128xf32>
    %345 = vector.extract_strided_slice %333 {offsets = [0, 128], sizes = [8, 128], strides = [1, 1]} : vector<8x384xf32> to vector<8x128xf32>
    %346 = vector.extract_strided_slice %336 {offsets = [0, 128], sizes = [8, 128], strides = [1, 1]} : vector<8x384xf32> to vector<8x128xf32>
    %347 = arith.addf %345, %346 : vector<8x128xf32>
    %348 = arith.negf %347 : vector<8x128xf32>
    %349 = math.exp %348 : vector<8x128xf32>
    %cst_134 = arith.constant 1.000000e+00 : f32
    %350 = vector.broadcast %cst_134 : f32 to vector<8x128xf32>
    %351 = arith.addf %350, %349 : vector<8x128xf32>
    %352 = arith.divf %350, %351 : vector<8x128xf32>
    %353 = vector.extract_strided_slice %333 {offsets = [0, 256], sizes = [8, 128], strides = [1, 1]} : vector<8x384xf32> to vector<8x128xf32>
    %354 = vector.extract_strided_slice %336 {offsets = [0, 256], sizes = [8, 128], strides = [1, 1]} : vector<8x384xf32> to vector<8x128xf32>
    %355 = arith.mulf %344, %354 : vector<8x128xf32>
    %356 = arith.addf %353, %355 : vector<8x128xf32>
    %357 = math.tanh %356 : vector<8x128xf32>
    %cst_135 = arith.constant 1.000000e+00 : f32
    %358 = vector.broadcast %cst_135 : f32 to vector<8x128xf32>
    %359 = arith.subf %358, %352 : vector<8x128xf32>
    %360 = arith.mulf %359, %357 : vector<8x128xf32>
    %361 = arith.mulf %352, %328 : vector<8x128xf32>
    %362 = arith.addf %360, %361 : vector<8x128xf32>
    %c1_136 = arith.constant 1 : index
    %c0_137 = arith.constant 0 : index
    %c0_138 = arith.constant 0 : index
    %363 = vector.load %arg16[%c1_136, %c0_137, %c0_138] : memref<8x8x128xf32, #tpu.memory_space<vmem>>, vector<1x8x128xf32>
    %364 = vector.shape_cast %363 : vector<1x8x128xf32> to vector<8x128xf32>
    %365 = vector.shape_cast %362 : vector<8x128xf32> to vector<1x8x128xf32>
    tpu.vector_store %arg16[%c1_136, %c0_137, %c0_138], %365 {strides = array<i32>} : memref<8x8x128xf32, #tpu.memory_space<vmem>>, vector<1x8x128xf32>,
    %c2_139 = arith.constant 2 : index
    %c0_140 = arith.constant 0 : index
    %c0_141 = arith.constant 0 : index
    %366 = vector.load %arg17[%c2_139, %c0_140, %c0_141] : memref<8x8x384xf32, #tpu.memory_space<vmem>>, vector<1x8x384xf32>
    %367 = vector.shape_cast %366 : vector<1x8x384xf32> to vector<8x384xf32>
    %c0_142 = arith.constant 0 : index
    %c0_143 = arith.constant 0 : index
    %368 = vector.load %arg6[%c0_142, %c0_143] : memref<128x384xf32, #tpu.memory_space<vmem>>, vector<128x384xf32>
    %cst_144 = arith.constant dense<0.000000e+00> : vector<8x384xf32>
    %369 = tpu.matmul %362, %368, %cst_144 {dimension_numbers = #tpu.dot_dimension_numbers<[1], [0], [0], [1], [0, 0, 1, 1], [], []>} : vector<8x128xf32>, vector<128x384xf32>, vector<8x384xf32> -> vector<8x384xf32>
    %370 = arith.addf %369, %296 : vector<8x384xf32>
    %371 = vector.extract_strided_slice %367 {offsets = [0, 0], sizes = [8, 128], strides = [1, 1]} : vector<8x384xf32> to vector<8x128xf32>
    %372 = vector.extract_strided_slice %370 {offsets = [0, 0], sizes = [8, 128], strides = [1, 1]} : vector<8x384xf32> to vector<8x128xf32>
    %373 = arith.addf %371, %372 : vector<8x128xf32>
    %374 = arith.negf %373 : vector<8x128xf32>
    %375 = math.exp %374 : vector<8x128xf32>
    %cst_145 = arith.constant 1.000000e+00 : f32
    %376 = vector.broadcast %cst_145 : f32 to vector<8x128xf32>
    %377 = arith.addf %376, %375 : vector<8x128xf32>
    %378 = arith.divf %376, %377 : vector<8x128xf32>
    %379 = vector.extract_strided_slice %367 {offsets = [0, 128], sizes = [8, 128], strides = [1, 1]} : vector<8x384xf32> to vector<8x128xf32>
    %380 = vector.extract_strided_slice %370 {offsets = [0, 128], sizes = [8, 128], strides = [1, 1]} : vector<8x384xf32> to vector<8x128xf32>
    %381 = arith.addf %379, %380 : vector<8x128xf32>
    %382 = arith.negf %381 : vector<8x128xf32>
    %383 = math.exp %382 : vector<8x128xf32>
    %cst_146 = arith.constant 1.000000e+00 : f32
    %384 = vector.broadcast %cst_146 : f32 to vector<8x128xf32>
    %385 = arith.addf %384, %383 : vector<8x128xf32>
    %386 = arith.divf %384, %385 : vector<8x128xf32>
    %387 = vector.extract_strided_slice %367 {offsets = [0, 256], sizes = [8, 128], strides = [1, 1]} : vector<8x384xf32> to vector<8x128xf32>
    %388 = vector.extract_strided_slice %370 {offsets = [0, 256], sizes = [8, 128], strides = [1, 1]} : vector<8x384xf32> to vector<8x128xf32>
    %389 = arith.mulf %378, %388 : vector<8x128xf32>
    %390 = arith.addf %387, %389 : vector<8x128xf32>
    %391 = math.tanh %390 : vector<8x128xf32>
    %cst_147 = arith.constant 1.000000e+00 : f32
    %392 = vector.broadcast %cst_147 : f32 to vector<8x128xf32>
    %393 = arith.subf %392, %386 : vector<8x128xf32>
    %394 = arith.mulf %393, %391 : vector<8x128xf32>
    %395 = arith.mulf %386, %362 : vector<8x128xf32>
    %396 = arith.addf %394, %395 : vector<8x128xf32>
    %c2_148 = arith.constant 2 : index
    %c0_149 = arith.constant 0 : index
    %c0_150 = arith.constant 0 : index
    %397 = vector.load %arg16[%c2_148, %c0_149, %c0_150] : memref<8x8x128xf32, #tpu.memory_space<vmem>>, vector<1x8x128xf32>
    %398 = vector.shape_cast %397 : vector<1x8x128xf32> to vector<8x128xf32>
    %399 = vector.shape_cast %396 : vector<8x128xf32> to vector<1x8x128xf32>
    tpu.vector_store %arg16[%c2_148, %c0_149, %c0_150], %399 {strides = array<i32>} : memref<8x8x128xf32, #tpu.memory_space<vmem>>, vector<1x8x128xf32>,
    %c3_151 = arith.constant 3 : index
    %c0_152 = arith.constant 0 : index
    %c0_153 = arith.constant 0 : index
    %400 = vector.load %arg17[%c3_151, %c0_152, %c0_153] : memref<8x8x384xf32, #tpu.memory_space<vmem>>, vector<1x8x384xf32>
    %401 = vector.shape_cast %400 : vector<1x8x384xf32> to vector<8x384xf32>
    %c0_154 = arith.constant 0 : index
    %c0_155 = arith.constant 0 : index
    %402 = vector.load %arg6[%c0_154, %c0_155] : memref<128x384xf32, #tpu.memory_space<vmem>>, vector<128x384xf32>
    %cst_156 = arith.constant dense<0.000000e+00> : vector<8x384xf32>
    %403 = tpu.matmul %396, %402, %cst_156 {dimension_numbers = #tpu.dot_dimension_numbers<[1], [0], [0], [1], [0, 0, 1, 1], [], []>} : vector<8x128xf32>, vector<128x384xf32>, vector<8x384xf32> -> vector<8x384xf32>
    %404 = arith.addf %403, %296 : vector<8x384xf32>
    %405 = vector.extract_strided_slice %401 {offsets = [0, 0], sizes = [8, 128], strides = [1, 1]} : vector<8x384xf32> to vector<8x128xf32>
    %406 = vector.extract_strided_slice %404 {offsets = [0, 0], sizes = [8, 128], strides = [1, 1]} : vector<8x384xf32> to vector<8x128xf32>
    %407 = arith.addf %405, %406 : vector<8x128xf32>
    %408 = arith.negf %407 : vector<8x128xf32>
    %409 = math.exp %408 : vector<8x128xf32>
    %cst_157 = arith.constant 1.000000e+00 : f32
    %410 = vector.broadcast %cst_157 : f32 to vector<8x128xf32>
    %411 = arith.addf %410, %409 : vector<8x128xf32>
    %412 = arith.divf %410, %411 : vector<8x128xf32>
    %413 = vector.extract_strided_slice %401 {offsets = [0, 128], sizes = [8, 128], strides = [1, 1]} : vector<8x384xf32> to vector<8x128xf32>
    %414 = vector.extract_strided_slice %404 {offsets = [0, 128], sizes = [8, 128], strides = [1, 1]} : vector<8x384xf32> to vector<8x128xf32>
    %415 = arith.addf %413, %414 : vector<8x128xf32>
    %416 = arith.negf %415 : vector<8x128xf32>
    %417 = math.exp %416 : vector<8x128xf32>
    %cst_158 = arith.constant 1.000000e+00 : f32
    %418 = vector.broadcast %cst_158 : f32 to vector<8x128xf32>
    %419 = arith.addf %418, %417 : vector<8x128xf32>
    %420 = arith.divf %418, %419 : vector<8x128xf32>
    %421 = vector.extract_strided_slice %401 {offsets = [0, 256], sizes = [8, 128], strides = [1, 1]} : vector<8x384xf32> to vector<8x128xf32>
    %422 = vector.extract_strided_slice %404 {offsets = [0, 256], sizes = [8, 128], strides = [1, 1]} : vector<8x384xf32> to vector<8x128xf32>
    %423 = arith.mulf %412, %422 : vector<8x128xf32>
    %424 = arith.addf %421, %423 : vector<8x128xf32>
    %425 = math.tanh %424 : vector<8x128xf32>
    %cst_159 = arith.constant 1.000000e+00 : f32
    %426 = vector.broadcast %cst_159 : f32 to vector<8x128xf32>
    %427 = arith.subf %426, %420 : vector<8x128xf32>
    %428 = arith.mulf %427, %425 : vector<8x128xf32>
    %429 = arith.mulf %420, %396 : vector<8x128xf32>
    %430 = arith.addf %428, %429 : vector<8x128xf32>
    %c3_160 = arith.constant 3 : index
    %c0_161 = arith.constant 0 : index
    %c0_162 = arith.constant 0 : index
    %431 = vector.load %arg16[%c3_160, %c0_161, %c0_162] : memref<8x8x128xf32, #tpu.memory_space<vmem>>, vector<1x8x128xf32>
    %432 = vector.shape_cast %431 : vector<1x8x128xf32> to vector<8x128xf32>
    %433 = vector.shape_cast %430 : vector<8x128xf32> to vector<1x8x128xf32>
    tpu.vector_store %arg16[%c3_160, %c0_161, %c0_162], %433 {strides = array<i32>} : memref<8x8x128xf32, #tpu.memory_space<vmem>>, vector<1x8x128xf32>,
    %c4_163 = arith.constant 4 : index
    %c0_164 = arith.constant 0 : index
    %c0_165 = arith.constant 0 : index
    %434 = vector.load %arg17[%c4_163, %c0_164, %c0_165] : memref<8x8x384xf32, #tpu.memory_space<vmem>>, vector<1x8x384xf32>
    %435 = vector.shape_cast %434 : vector<1x8x384xf32> to vector<8x384xf32>
    %c0_166 = arith.constant 0 : index
    %c0_167 = arith.constant 0 : index
    %436 = vector.load %arg6[%c0_166, %c0_167] : memref<128x384xf32, #tpu.memory_space<vmem>>, vector<128x384xf32>
    %cst_168 = arith.constant dense<0.000000e+00> : vector<8x384xf32>
    %437 = tpu.matmul %430, %436, %cst_168 {dimension_numbers = #tpu.dot_dimension_numbers<[1], [0], [0], [1], [0, 0, 1, 1], [], []>} : vector<8x128xf32>, vector<128x384xf32>, vector<8x384xf32> -> vector<8x384xf32>
    %438 = arith.addf %437, %296 : vector<8x384xf32>
    %439 = vector.extract_strided_slice %435 {offsets = [0, 0], sizes = [8, 128], strides = [1, 1]} : vector<8x384xf32> to vector<8x128xf32>
    %440 = vector.extract_strided_slice %438 {offsets = [0, 0], sizes = [8, 128], strides = [1, 1]} : vector<8x384xf32> to vector<8x128xf32>
    %441 = arith.addf %439, %440 : vector<8x128xf32>
    %442 = arith.negf %441 : vector<8x128xf32>
    %443 = math.exp %442 : vector<8x128xf32>
    %cst_169 = arith.constant 1.000000e+00 : f32
    %444 = vector.broadcast %cst_169 : f32 to vector<8x128xf32>
    %445 = arith.addf %444, %443 : vector<8x128xf32>
    %446 = arith.divf %444, %445 : vector<8x128xf32>
    %447 = vector.extract_strided_slice %435 {offsets = [0, 128], sizes = [8, 128], strides = [1, 1]} : vector<8x384xf32> to vector<8x128xf32>
    %448 = vector.extract_strided_slice %438 {offsets = [0, 128], sizes = [8, 128], strides = [1, 1]} : vector<8x384xf32> to vector<8x128xf32>
    %449 = arith.addf %447, %448 : vector<8x128xf32>
    %450 = arith.negf %449 : vector<8x128xf32>
    %451 = math.exp %450 : vector<8x128xf32>
    %cst_170 = arith.constant 1.000000e+00 : f32
    %452 = vector.broadcast %cst_170 : f32 to vector<8x128xf32>
    %453 = arith.addf %452, %451 : vector<8x128xf32>
    %454 = arith.divf %452, %453 : vector<8x128xf32>
    %455 = vector.extract_strided_slice %435 {offsets = [0, 256], sizes = [8, 128], strides = [1, 1]} : vector<8x384xf32> to vector<8x128xf32>
    %456 = vector.extract_strided_slice %438 {offsets = [0, 256], sizes = [8, 128], strides = [1, 1]} : vector<8x384xf32> to vector<8x128xf32>
    %457 = arith.mulf %446, %456 : vector<8x128xf32>
    %458 = arith.addf %455, %457 : vector<8x128xf32>
    %459 = math.tanh %458 : vector<8x128xf32>
    %cst_171 = arith.constant 1.000000e+00 : f32
    %460 = vector.broadcast %cst_171 : f32 to vector<8x128xf32>
    %461 = arith.subf %460, %454 : vector<8x128xf32>
    %462 = arith.mulf %461, %459 : vector<8x128xf32>
    %463 = arith.mulf %454, %430 : vector<8x128xf32>
    %464 = arith.addf %462, %463 : vector<8x128xf32>
    %c4_172 = arith.constant 4 : index
    %c0_173 = arith.constant 0 : index
    %c0_174 = arith.constant 0 : index
    %465 = vector.load %arg16[%c4_172, %c0_173, %c0_174] : memref<8x8x128xf32, #tpu.memory_space<vmem>>, vector<1x8x128xf32>
    %466 = vector.shape_cast %465 : vector<1x8x128xf32> to vector<8x128xf32>
    %467 = vector.shape_cast %464 : vector<8x128xf32> to vector<1x8x128xf32>
    tpu.vector_store %arg16[%c4_172, %c0_173, %c0_174], %467 {strides = array<i32>} : memref<8x8x128xf32, #tpu.memory_space<vmem>>, vector<1x8x128xf32>,
    %c5_175 = arith.constant 5 : index
    %c0_176 = arith.constant 0 : index
    %c0_177 = arith.constant 0 : index
    %468 = vector.load %arg17[%c5_175, %c0_176, %c0_177] : memref<8x8x384xf32, #tpu.memory_space<vmem>>, vector<1x8x384xf32>
    %469 = vector.shape_cast %468 : vector<1x8x384xf32> to vector<8x384xf32>
    %c0_178 = arith.constant 0 : index
    %c0_179 = arith.constant 0 : index
    %470 = vector.load %arg6[%c0_178, %c0_179] : memref<128x384xf32, #tpu.memory_space<vmem>>, vector<128x384xf32>
    %cst_180 = arith.constant dense<0.000000e+00> : vector<8x384xf32>
    %471 = tpu.matmul %464, %470, %cst_180 {dimension_numbers = #tpu.dot_dimension_numbers<[1], [0], [0], [1], [0, 0, 1, 1], [], []>} : vector<8x128xf32>, vector<128x384xf32>, vector<8x384xf32> -> vector<8x384xf32>
    %472 = arith.addf %471, %296 : vector<8x384xf32>
    %473 = vector.extract_strided_slice %469 {offsets = [0, 0], sizes = [8, 128], strides = [1, 1]} : vector<8x384xf32> to vector<8x128xf32>
    %474 = vector.extract_strided_slice %472 {offsets = [0, 0], sizes = [8, 128], strides = [1, 1]} : vector<8x384xf32> to vector<8x128xf32>
    %475 = arith.addf %473, %474 : vector<8x128xf32>
    %476 = arith.negf %475 : vector<8x128xf32>
    %477 = math.exp %476 : vector<8x128xf32>
    %cst_181 = arith.constant 1.000000e+00 : f32
    %478 = vector.broadcast %cst_181 : f32 to vector<8x128xf32>
    %479 = arith.addf %478, %477 : vector<8x128xf32>
    %480 = arith.divf %478, %479 : vector<8x128xf32>
    %481 = vector.extract_strided_slice %469 {offsets = [0, 128], sizes = [8, 128], strides = [1, 1]} : vector<8x384xf32> to vector<8x128xf32>
    %482 = vector.extract_strided_slice %472 {offsets = [0, 128], sizes = [8, 128], strides = [1, 1]} : vector<8x384xf32> to vector<8x128xf32>
    %483 = arith.addf %481, %482 : vector<8x128xf32>
    %484 = arith.negf %483 : vector<8x128xf32>
    %485 = math.exp %484 : vector<8x128xf32>
    %cst_182 = arith.constant 1.000000e+00 : f32
    %486 = vector.broadcast %cst_182 : f32 to vector<8x128xf32>
    %487 = arith.addf %486, %485 : vector<8x128xf32>
    %488 = arith.divf %486, %487 : vector<8x128xf32>
    %489 = vector.extract_strided_slice %469 {offsets = [0, 256], sizes = [8, 128], strides = [1, 1]} : vector<8x384xf32> to vector<8x128xf32>
    %490 = vector.extract_strided_slice %472 {offsets = [0, 256], sizes = [8, 128], strides = [1, 1]} : vector<8x384xf32> to vector<8x128xf32>
    %491 = arith.mulf %480, %490 : vector<8x128xf32>
    %492 = arith.addf %489, %491 : vector<8x128xf32>
    %493 = math.tanh %492 : vector<8x128xf32>
    %cst_183 = arith.constant 1.000000e+00 : f32
    %494 = vector.broadcast %cst_183 : f32 to vector<8x128xf32>
    %495 = arith.subf %494, %488 : vector<8x128xf32>
    %496 = arith.mulf %495, %493 : vector<8x128xf32>
    %497 = arith.mulf %488, %464 : vector<8x128xf32>
    %498 = arith.addf %496, %497 : vector<8x128xf32>
    %c5_184 = arith.constant 5 : index
    %c0_185 = arith.constant 0 : index
    %c0_186 = arith.constant 0 : index
    %499 = vector.load %arg16[%c5_184, %c0_185, %c0_186] : memref<8x8x128xf32, #tpu.memory_space<vmem>>, vector<1x8x128xf32>
    %500 = vector.shape_cast %499 : vector<1x8x128xf32> to vector<8x128xf32>
    %501 = vector.shape_cast %498 : vector<8x128xf32> to vector<1x8x128xf32>
    tpu.vector_store %arg16[%c5_184, %c0_185, %c0_186], %501 {strides = array<i32>} : memref<8x8x128xf32, #tpu.memory_space<vmem>>, vector<1x8x128xf32>,
    %c6_187 = arith.constant 6 : index
    %c0_188 = arith.constant 0 : index
    %c0_189 = arith.constant 0 : index
    %502 = vector.load %arg17[%c6_187, %c0_188, %c0_189] : memref<8x8x384xf32, #tpu.memory_space<vmem>>, vector<1x8x384xf32>
    %503 = vector.shape_cast %502 : vector<1x8x384xf32> to vector<8x384xf32>
    %c0_190 = arith.constant 0 : index
    %c0_191 = arith.constant 0 : index
    %504 = vector.load %arg6[%c0_190, %c0_191] : memref<128x384xf32, #tpu.memory_space<vmem>>, vector<128x384xf32>
    %cst_192 = arith.constant dense<0.000000e+00> : vector<8x384xf32>
    %505 = tpu.matmul %498, %504, %cst_192 {dimension_numbers = #tpu.dot_dimension_numbers<[1], [0], [0], [1], [0, 0, 1, 1], [], []>} : vector<8x128xf32>, vector<128x384xf32>, vector<8x384xf32> -> vector<8x384xf32>
    %506 = arith.addf %505, %296 : vector<8x384xf32>
    %507 = vector.extract_strided_slice %503 {offsets = [0, 0], sizes = [8, 128], strides = [1, 1]} : vector<8x384xf32> to vector<8x128xf32>
    %508 = vector.extract_strided_slice %506 {offsets = [0, 0], sizes = [8, 128], strides = [1, 1]} : vector<8x384xf32> to vector<8x128xf32>
    %509 = arith.addf %507, %508 : vector<8x128xf32>
    %510 = arith.negf %509 : vector<8x128xf32>
    %511 = math.exp %510 : vector<8x128xf32>
    %cst_193 = arith.constant 1.000000e+00 : f32
    %512 = vector.broadcast %cst_193 : f32 to vector<8x128xf32>
    %513 = arith.addf %512, %511 : vector<8x128xf32>
    %514 = arith.divf %512, %513 : vector<8x128xf32>
    %515 = vector.extract_strided_slice %503 {offsets = [0, 128], sizes = [8, 128], strides = [1, 1]} : vector<8x384xf32> to vector<8x128xf32>
    %516 = vector.extract_strided_slice %506 {offsets = [0, 128], sizes = [8, 128], strides = [1, 1]} : vector<8x384xf32> to vector<8x128xf32>
    %517 = arith.addf %515, %516 : vector<8x128xf32>
    %518 = arith.negf %517 : vector<8x128xf32>
    %519 = math.exp %518 : vector<8x128xf32>
    %cst_194 = arith.constant 1.000000e+00 : f32
    %520 = vector.broadcast %cst_194 : f32 to vector<8x128xf32>
    %521 = arith.addf %520, %519 : vector<8x128xf32>
    %522 = arith.divf %520, %521 : vector<8x128xf32>
    %523 = vector.extract_strided_slice %503 {offsets = [0, 256], sizes = [8, 128], strides = [1, 1]} : vector<8x384xf32> to vector<8x128xf32>
    %524 = vector.extract_strided_slice %506 {offsets = [0, 256], sizes = [8, 128], strides = [1, 1]} : vector<8x384xf32> to vector<8x128xf32>
    %525 = arith.mulf %514, %524 : vector<8x128xf32>
    %526 = arith.addf %523, %525 : vector<8x128xf32>
    %527 = math.tanh %526 : vector<8x128xf32>
    %cst_195 = arith.constant 1.000000e+00 : f32
    %528 = vector.broadcast %cst_195 : f32 to vector<8x128xf32>
    %529 = arith.subf %528, %522 : vector<8x128xf32>
    %530 = arith.mulf %529, %527 : vector<8x128xf32>
    %531 = arith.mulf %522, %498 : vector<8x128xf32>
    %532 = arith.addf %530, %531 : vector<8x128xf32>
    %c6_196 = arith.constant 6 : index
    %c0_197 = arith.constant 0 : index
    %c0_198 = arith.constant 0 : index
    %533 = vector.load %arg16[%c6_196, %c0_197, %c0_198] : memref<8x8x128xf32, #tpu.memory_space<vmem>>, vector<1x8x128xf32>
    %534 = vector.shape_cast %533 : vector<1x8x128xf32> to vector<8x128xf32>
    %535 = vector.shape_cast %532 : vector<8x128xf32> to vector<1x8x128xf32>
    tpu.vector_store %arg16[%c6_196, %c0_197, %c0_198], %535 {strides = array<i32>} : memref<8x8x128xf32, #tpu.memory_space<vmem>>, vector<1x8x128xf32>,
    %c7_199 = arith.constant 7 : index
    %c0_200 = arith.constant 0 : index
    %c0_201 = arith.constant 0 : index
    %536 = vector.load %arg17[%c7_199, %c0_200, %c0_201] : memref<8x8x384xf32, #tpu.memory_space<vmem>>, vector<1x8x384xf32>
    %537 = vector.shape_cast %536 : vector<1x8x384xf32> to vector<8x384xf32>
    %c0_202 = arith.constant 0 : index
    %c0_203 = arith.constant 0 : index
    %538 = vector.load %arg6[%c0_202, %c0_203] : memref<128x384xf32, #tpu.memory_space<vmem>>, vector<128x384xf32>
    %cst_204 = arith.constant dense<0.000000e+00> : vector<8x384xf32>
    %539 = tpu.matmul %532, %538, %cst_204 {dimension_numbers = #tpu.dot_dimension_numbers<[1], [0], [0], [1], [0, 0, 1, 1], [], []>} : vector<8x128xf32>, vector<128x384xf32>, vector<8x384xf32> -> vector<8x384xf32>
    %540 = arith.addf %539, %296 : vector<8x384xf32>
    %541 = vector.extract_strided_slice %537 {offsets = [0, 0], sizes = [8, 128], strides = [1, 1]} : vector<8x384xf32> to vector<8x128xf32>
    %542 = vector.extract_strided_slice %540 {offsets = [0, 0], sizes = [8, 128], strides = [1, 1]} : vector<8x384xf32> to vector<8x128xf32>
    %543 = arith.addf %541, %542 : vector<8x128xf32>
    %544 = arith.negf %543 : vector<8x128xf32>
    %545 = math.exp %544 : vector<8x128xf32>
    %cst_205 = arith.constant 1.000000e+00 : f32
    %546 = vector.broadcast %cst_205 : f32 to vector<8x128xf32>
    %547 = arith.addf %546, %545 : vector<8x128xf32>
    %548 = arith.divf %546, %547 : vector<8x128xf32>
    %549 = vector.extract_strided_slice %537 {offsets = [0, 128], sizes = [8, 128], strides = [1, 1]} : vector<8x384xf32> to vector<8x128xf32>
    %550 = vector.extract_strided_slice %540 {offsets = [0, 128], sizes = [8, 128], strides = [1, 1]} : vector<8x384xf32> to vector<8x128xf32>
    %551 = arith.addf %549, %550 : vector<8x128xf32>
    %552 = arith.negf %551 : vector<8x128xf32>
    %553 = math.exp %552 : vector<8x128xf32>
    %cst_206 = arith.constant 1.000000e+00 : f32
    %554 = vector.broadcast %cst_206 : f32 to vector<8x128xf32>
    %555 = arith.addf %554, %553 : vector<8x128xf32>
    %556 = arith.divf %554, %555 : vector<8x128xf32>
    %557 = vector.extract_strided_slice %537 {offsets = [0, 256], sizes = [8, 128], strides = [1, 1]} : vector<8x384xf32> to vector<8x128xf32>
    %558 = vector.extract_strided_slice %540 {offsets = [0, 256], sizes = [8, 128], strides = [1, 1]} : vector<8x384xf32> to vector<8x128xf32>
    %559 = arith.mulf %548, %558 : vector<8x128xf32>
    %560 = arith.addf %557, %559 : vector<8x128xf32>
    %561 = math.tanh %560 : vector<8x128xf32>
    %cst_207 = arith.constant 1.000000e+00 : f32
    %562 = vector.broadcast %cst_207 : f32 to vector<8x128xf32>
    %563 = arith.subf %562, %556 : vector<8x128xf32>
    %564 = arith.mulf %563, %561 : vector<8x128xf32>
    %565 = arith.mulf %556, %532 : vector<8x128xf32>
    %566 = arith.addf %564, %565 : vector<8x128xf32>
    %c7_208 = arith.constant 7 : index
    %c0_209 = arith.constant 0 : index
    %c0_210 = arith.constant 0 : index
    %567 = vector.load %arg16[%c7_208, %c0_209, %c0_210] : memref<8x8x128xf32, #tpu.memory_space<vmem>>, vector<1x8x128xf32>
    %568 = vector.shape_cast %567 : vector<1x8x128xf32> to vector<8x128xf32>
    %569 = vector.shape_cast %566 : vector<8x128xf32> to vector<1x8x128xf32>
    tpu.vector_store %arg16[%c7_208, %c0_209, %c0_210], %569 {strides = array<i32>} : memref<8x8x128xf32, #tpu.memory_space<vmem>>, vector<1x8x128xf32>,
    %c0_211 = arith.constant 0 : index
    %c0_212 = arith.constant 0 : index
    %c0_213 = arith.constant 0 : index
    %570 = vector.load %arg16[%c0_211, %c0_212, %c0_213] : memref<8x8x128xf32, #tpu.memory_space<vmem>>, vector<8x8x128xf32>
    %571 = vector.shape_cast %570 : vector<8x8x128xf32> to vector<64x128xf32>
    %c0_214 = arith.constant 0 : index
    %c0_215 = arith.constant 0 : index
    %572 = vector.load %arg9[%c0_214, %c0_215] : memref<128x128xf32, #tpu.memory_space<vmem>>, vector<128x128xf32>
    %cst_216 = arith.constant dense<0.000000e+00> : vector<64x128xf32>
    %573 = tpu.matmul %571, %572, %cst_216 {dimension_numbers = #tpu.dot_dimension_numbers<[1], [0], [0], [1], [0, 0, 1, 1], [], []>} : vector<64x128xf32>, vector<128x128xf32>, vector<64x128xf32> -> vector<64x128xf32>
    %c0_217 = arith.constant 0 : index
    %c0_218 = arith.constant 0 : index
    %574 = vector.load %arg10[%c0_217, %c0_218] : memref<1x128xf32, #tpu.memory_space<vmem>>, vector<1x128xf32>
    %575 = vector.broadcast %574 : vector<1x128xf32> to vector<64x128xf32>
    %576 = arith.addf %573, %575 : vector<64x128xf32>
    %577 = vector.shape_cast %576 : vector<64x128xf32> to vector<8x8x128xf32>
    %c0_219 = arith.constant 0 : index
    %c0_220 = arith.constant 0 : index
    %c0_221 = arith.constant 0 : index
    %578 = vector.load %arg13[%c0_219, %c0_220, %c0_221] : memref<8x8x128xf32, #tpu.memory_space<vmem>>, vector<8x8x128xf32>
    tpu.vector_store %arg13[%c0_219, %c0_220, %c0_221], %577 {strides = array<i32>} : memref<8x8x128xf32, #tpu.memory_space<vmem>>, vector<8x8x128xf32>,
    %cst_222 = arith.constant dense<0.000000e+00> : vector<8x128xf32>
    %579 = vector.multi_reduction <add>, %570, %cst_222 [0] : vector<8x8x128xf32> to vector<8x128xf32>
    %cst_223 = arith.constant 8.000000e+00 : f32
    %580 = vector.broadcast %cst_223 : f32 to vector<8x128xf32>
    %581 = arith.divf %579, %580 : vector<8x128xf32>
    %c0_224 = arith.constant 0 : index
    %c0_225 = arith.constant 0 : index
    %582 = vector.load %arg11[%c0_224, %c0_225] : memref<128x128xf32, #tpu.memory_space<vmem>>, vector<128x128xf32>
    %cst_226 = arith.constant dense<0.000000e+00> : vector<8x128xf32>
    %583 = tpu.matmul %581, %582, %cst_226 {dimension_numbers = #tpu.dot_dimension_numbers<[1], [0], [0], [1], [0, 0, 1, 1], [], []>} : vector<8x128xf32>, vector<128x128xf32>, vector<8x128xf32> -> vector<8x128xf32>
    %c0_227 = arith.constant 0 : index
    %c0_228 = arith.constant 0 : index
    %584 = vector.load %arg12[%c0_227, %c0_228] : memref<1x128xf32, #tpu.memory_space<vmem>>, vector<1x128xf32>
    %585 = vector.broadcast %584 : vector<1x128xf32> to vector<8x128xf32>
    %586 = arith.addf %583, %585 : vector<8x128xf32>
    %c0_229 = arith.constant 0 : index
    %c0_230 = arith.constant 0 : index
    %587 = vector.load %arg14[%c0_229, %c0_230] : memref<8x128xf32, #tpu.memory_space<vmem>>, vector<8x128xf32>
    tpu.vector_store %arg14[%c0_229, %c0_230], %586 {strides = array<i32>} : memref<8x128xf32, #tpu.memory_space<vmem>>, vector<8x128xf32>,
    return
  }
}

</mosaic_0001>

<llo_original>
// kernel: rnn_finder_forward.1
$region0: #{rnn_finder_forward.1}
  #allocation0 [shape = 'u32[]', space=smem, size = 0x4, offset = 0x4, fixed_abs, tag = 'smem constant byte address 0x4 - core index']
  #allocation1 [shape = 'u32[144,128]{1,0:T(1,128)}', space=vmem, size = 0x12000, scoped, tag = 'internal scratch']
  #allocation2 [shape = 'f32[8,8,128]{2,1,0:T(8,128)}', space=vmem, size = 0x8000, scoped, tag = 'scratch operand']
  #allocation3 [shape = 'f32[8,8,128]{2,1,0:T(8,128)}', space=vmem, size = 0x8000, scoped, tag = 'scratch operand']
  #allocation4 [shape = 'f32[8,8,384]{2,1,0:T(8,128)}', space=vmem, size = 0x18000, scoped, tag = 'scratch operand']
  %s0 = inlined_call_operand.vmem [shape: f32[8,8,128], index: 0, kind: input, shape index: {}]
  %s1 = inlined_call_operand.vmem [shape: f32[128,384], index: 1, kind: input, shape index: {}]
  %s2 = inlined_call_operand.vmem [shape: f32[128,384], index: 2, kind: input, shape index: {}]
  %s3 = inlined_call_operand.vmem [shape: f32[1,384], index: 3, kind: input, shape index: {}]
  %s4 = inlined_call_operand.vmem [shape: f32[1,384], index: 4, kind: input, shape index: {}]
  %s5 = inlined_call_operand.vmem [shape: f32[128,384], index: 5, kind: input, shape index: {}]
  %s6 = inlined_call_operand.vmem [shape: f32[128,384], index: 6, kind: input, shape index: {}]
  %s7 = inlined_call_operand.vmem [shape: f32[1,384], index: 7, kind: input, shape index: {}]
  %s8 = inlined_call_operand.vmem [shape: f32[1,384], index: 8, kind: input, shape index: {}]
  %s9 = inlined_call_operand.vmem [shape: f32[128,128], index: 9, kind: input, shape index: {}]
  %s10 = inlined_call_operand.vmem [shape: f32[1,128], index: 10, kind: input, shape index: {}]
  %s11 = inlined_call_operand.vmem [shape: f32[128,128], index: 11, kind: input, shape index: {}]
  %s12 = inlined_call_operand.vmem [shape: f32[1,128], index: 12, kind: input, shape index: {}]
  %s13 = inlined_call_operand.vmem [shape: f32[8,8,128], index: 13, kind: output, shape index: {0}]
  %s14 = inlined_call_operand.vmem [shape: f32[8,128], index: 14, kind: output, shape index: {1}]
  %15 = xla_tuple %s13, %s14
  %s16 = sld [smem:[#allocation0]]
  $region70: #{rnn_finder_forward.1} parent=0
    _
  %s18 = ssub.s32 1, %s16
  %s19 = scalar_select 0, %s18, %s16
  // Predicated region
  $region2: #{rnn_finder_forward.1} parent=0 // pred_check
    _
  $region3: #{rnn_finder_forward.1} parent=0 // pred_check_branch
    %21 = sbr.rel (0) target = $region5
  $region4: #{rnn_finder_forward.1} parent=0 // pred_region
    _
  $region5: #{rnn_finder_forward.1} parent=0 // pred_fallthru
    _
  // Predicated region
  $region6: #{rnn_finder_forward.1} parent=0 // pred_check
    _
  $region7: #{rnn_finder_forward.1} parent=0 // pred_check_branch
    %23 = sbr.rel (0) target = $region9
  $region8: #{rnn_finder_forward.1} parent=0 // pred_region
    _
  $region9: #{rnn_finder_forward.1} parent=0 // pred_fallthru
    _
  // Predicated region
  $region10: #{rnn_finder_forward.1} parent=0 // pred_check
    _
  $region11: #{rnn_finder_forward.1} parent=0 // pred_check_branch
    %25 = sbr.rel (0) target = $region13
  $region12: #{rnn_finder_forward.1} parent=0 // pred_region
    _
  $region13: #{rnn_finder_forward.1} parent=0 // pred_fallthru
    _
  // Predicated region
  $region14: #{rnn_finder_forward.1} parent=0 // pred_check
    _
  $region15: #{rnn_finder_forward.1} parent=0 // pred_check_branch
    %27 = sbr.rel (0) target = $region17
  $region16: #{rnn_finder_forward.1} parent=0 // pred_region
    _
  $region17: #{rnn_finder_forward.1} parent=0 // pred_fallthru
    _
  // Predicated region
  $region18: #{rnn_finder_forward.1} parent=0 // pred_check
    _
  $region19: #{rnn_finder_forward.1} parent=0 // pred_check_branch
    %29 = sbr.rel (0) target = $region21
  $region20: #{rnn_finder_forward.1} parent=0 // pred_region
    _
  $region21: #{rnn_finder_forward.1} parent=0 // pred_fallthru
    _
  // Predicated region
  $region22: #{rnn_finder_forward.1} parent=0 // pred_check
    _
  $region23: #{rnn_finder_forward.1} parent=0 // pred_check_branch
    %31 = sbr.rel (0) target = $region25
  $region24: #{rnn_finder_forward.1} parent=0 // pred_region
    _
  $region25: #{rnn_finder_forward.1} parent=0 // pred_fallthru
    _
  // Predicated region
  $region26: #{rnn_finder_forward.1} parent=0 // pred_check
    _
  $region27: #{rnn_finder_forward.1} parent=0 // pred_check_branch
    %33 = sbr.rel (0) target = $region29
  $region28: #{rnn_finder_forward.1} parent=0 // pred_region
    _
  $region29: #{rnn_finder_forward.1} parent=0 // pred_fallthru
    _
  // Predicated region
  $region30: #{rnn_finder_forward.1} parent=0 // pred_check
    _
  $region31: #{rnn_finder_forward.1} parent=0 // pred_check_branch
    %35 = sbr.rel (0) target = $region33
  $region32: #{rnn_finder_forward.1} parent=0 // pred_region
    _
  $region33: #{rnn_finder_forward.1} parent=0 // pred_fallthru
    _
  // Predicated region
  $region34: #{rnn_finder_forward.1} parent=0 // pred_check
    _
  $region35: #{rnn_finder_forward.1} parent=0 // pred_check_branch
    %37 = sbr.rel (0) target = $region37
  $region36: #{rnn_finder_forward.1} parent=0 // pred_region
    _
  $region37: #{rnn_finder_forward.1} parent=0 // pred_fallthru
    _
  // Predicated region
  $region38: #{rnn_finder_forward.1} parent=0 // pred_check
    _
  $region39: #{rnn_finder_forward.1} parent=0 // pred_check_branch
    %39 = sbr.rel (0) target = $region41
  $region40: #{rnn_finder_forward.1} parent=0 // pred_region
    _
  $region41: #{rnn_finder_forward.1} parent=0 // pred_fallthru
    _
  // Predicated region
  $region42: #{rnn_finder_forward.1} parent=0 // pred_check
    _
  $region43: #{rnn_finder_forward.1} parent=0 // pred_check_branch
    %41 = sbr.rel (0) target = $region45
  $region44: #{rnn_finder_forward.1} parent=0 // pred_region
    _
  $region45: #{rnn_finder_forward.1} parent=0 // pred_fallthru
    _
  // Predicated region
  $region46: #{rnn_finder_forward.1} parent=0 // pred_check
    _
  $region47: #{rnn_finder_forward.1} parent=0 // pred_check_branch
    %43 = sbr.rel (0) target = $region49
  $region48: #{rnn_finder_forward.1} parent=0 // pred_region
    _
  $region49: #{rnn_finder_forward.1} parent=0 // pred_fallthru
    _
  // Predicated region
  $region50: #{rnn_finder_forward.1} parent=0 // pred_check
    _
  $region51: #{rnn_finder_forward.1} parent=0 // pred_check_branch
    %45 = sbr.rel (0) target = $region53
  $region52: #{rnn_finder_forward.1} parent=0 // pred_region
    _
  $region53: #{rnn_finder_forward.1} parent=0 // pred_fallthru
    _
  %v46 = vld [vmem:[%s0] sm:$0xff]
  %v47 = vld [vmem:[%s0 + $0x8] sm:$0xff]
  %v48 = vld [vmem:[%s0 + $0x10] sm:$0xff]
  %v49 = vld [vmem:[%s0 + $0x18] sm:$0xff]
  %v50 = vld [vmem:[%s0 + $0x20] sm:$0xff]
  %v51 = vld [vmem:[%s0 + $0x28] sm:$0xff]
  %v52 = vld [vmem:[%s0 + $0x30] sm:$0xff]
  %v53 = vld [vmem:[%s0 + $0x38] sm:$0xff]
  %v54 = vld [vmem:[%s1] sm:$0xff]
  %v55 = vld [vmem:[%s1 + $0x8] sm:$0xff]
  %v56 = vld [vmem:[%s1 + $0x10] sm:$0xff]
  %v57 = vld [vmem:[%s1 + $0x18] sm:$0xff]
  %v58 = vld [vmem:[%s1 + $0x20] sm:$0xff]
  %v59 = vld [vmem:[%s1 + $0x28] sm:$0xff]
  %v60 = vld [vmem:[%s1 + $0x30] sm:$0xff]
  %v61 = vld [vmem:[%s1 + $0x38] sm:$0xff]
  %v62 = vld [vmem:[%s1 + $0x40] sm:$0xff]
  %v63 = vld [vmem:[%s1 + $0x48] sm:$0xff]
  %v64 = vld [vmem:[%s1 + $0x50] sm:$0xff]
  %v65 = vld [vmem:[%s1 + $0x58] sm:$0xff]
  %v66 = vld [vmem:[%s1 + $0x60] sm:$0xff]
  %v67 = vld [vmem:[%s1 + $0x68] sm:$0xff]
  %v68 = vld [vmem:[%s1 + $0x70] sm:$0xff]
  %v69 = vld [vmem:[%s1 + $0x78] sm:$0xff]
  %v70 = vld [vmem:[%s1 + $0x80] sm:$0xff]
  %v71 = vld [vmem:[%s1 + $0x88] sm:$0xff]
  %v72 = vld [vmem:[%s1 + $0x90] sm:$0xff]
  %v73 = vld [vmem:[%s1 + $0x98] sm:$0xff]
  %v74 = vld [vmem:[%s1 + $0xa0] sm:$0xff]
  %v75 = vld [vmem:[%s1 + $0xa8] sm:$0xff]
  %v76 = vld [vmem:[%s1 + $0xb0] sm:$0xff]
  %v77 = vld [vmem:[%s1 + $0xb8] sm:$0xff]
  %v78 = vld [vmem:[%s1 + $0xc0] sm:$0xff]
  %v79 = vld [vmem:[%s1 + $0xc8] sm:$0xff]
  %v80 = vld [vmem:[%s1 + $0xd0] sm:$0xff]
  %v81 = vld [vmem:[%s1 + $0xd8] sm:$0xff]
  %v82 = vld [vmem:[%s1 + $0xe0] sm:$0xff]
  %v83 = vld [vmem:[%s1 + $0xe8] sm:$0xff]
  %v84 = vld [vmem:[%s1 + $0xf0] sm:$0xff]
  %v85 = vld [vmem:[%s1 + $0xf8] sm:$0xff]
  %v86 = vld [vmem:[%s1 + $0x100] sm:$0xff]
  %v87 = vld [vmem:[%s1 + $0x108] sm:$0xff]
  %v88 = vld [vmem:[%s1 + $0x110] sm:$0xff]
  %v89 = vld [vmem:[%s1 + $0x118] sm:$0xff]
  %v90 = vld [vmem:[%s1 + $0x120] sm:$0xff]
  %v91 = vld [vmem:[%s1 + $0x128] sm:$0xff]
  %v92 = vld [vmem:[%s1 + $0x130] sm:$0xff]
  %v93 = vld [vmem:[%s1 + $0x138] sm:$0xff]
  %v94 = vld [vmem:[%s1 + $0x140] sm:$0xff]
  %v95 = vld [vmem:[%s1 + $0x148] sm:$0xff]
  %v96 = vld [vmem:[%s1 + $0x150] sm:$0xff]
  %v97 = vld [vmem:[%s1 + $0x158] sm:$0xff]
  %v98 = vld [vmem:[%s1 + $0x160] sm:$0xff]
  %v99 = vld [vmem:[%s1 + $0x168] sm:$0xff]
  %v100 = vld [vmem:[%s1 + $0x170] sm:$0xff]
  %v101 = vld [vmem:[%s1 + $0x178] sm:$0xff]
  %v102 = vld [vmem:[%s3] sm:$0x7]
  %v104 = vlaneseq
  %v105 = vshrl.u32 %v104, 7
  %v106 = vsub.s32 0, %v105
  %v107 = vrot.slane %v102, %v106
  %v108 = vlaneseq
  %v109 = vshrl.u32 %v108, 7
  %v110 = vsub.s32 1, %v109
  %v111 = vrot.slane %v102, %v110
  %v112 = vlaneseq
  %v113 = vshrl.u32 %v112, 7
  %v114 = vsub.s32 2, %v113
  %v115 = vrot.slane %v102, %v114
  %119 = vmatprep.subr.mxu0 %v55
  %120 = vmatpush1.msra.mxu0 %v54
  %121 = vmatprep.subr.mxu0 %v58
  %122 = vmatpush1.msra.mxu0 %v57
  %123 = vmatprep.subr.mxu0 %v61
  %124 = vmatpush1.msra.mxu0 %v60
  %125 = vmatprep.subr.mxu0 %v64
  %126 = vmatpush1.msra.mxu0 %v63
  %127 = vmatprep.subr.mxu0 %v67
  %128 = vmatpush1.msra.mxu0 %v66
  %129 = vmatprep.subr.mxu0 %v70
  %130 = vmatpush1.msra.mxu0 %v69
  %131 = vmatprep.subr.mxu0 %v73
  %132 = vmatpush1.msra.mxu0 %v72
  %133 = vmatprep.subr.mxu0 %v76
  %134 = vmatpush1.msra.mxu0 %v75
  %135 = vmatprep.subr.mxu0 %v79
  %136 = vmatpush1.msra.mxu0 %v78
  %137 = vmatprep.subr.mxu0 %v82
  %138 = vmatpush1.msra.mxu0 %v81
  %139 = vmatprep.subr.mxu0 %v85
  %140 = vmatpush1.msra.mxu0 %v84
  %141 = vmatprep.subr.mxu0 %v88
  %142 = vmatpush1.msra.mxu0 %v87
  %143 = vmatprep.subr.mxu0 %v91
  %144 = vmatpush1.msra.mxu0 %v90
  %145 = vmatprep.subr.mxu0 %v94
  %146 = vmatpush1.msra.mxu0 %v93
  %147 = vmatprep.subr.mxu0 %v97
  %148 = vmatpush1.msra.mxu0 %v96
  %149 = vmatprep.subr.mxu0 %v100
  %150 = vmatpush1.msra.mxu0 %v99
  %151 = vmatprep.subr.mxu0 0.0
  %152 = vmatpush1.msra.mxu0 0.0
  %153 = vmatprep.subr.mxu0 0.0
  %154 = vmatpush1.msra.mxu0 0.0
  %155 = vmatprep.subr.mxu0 0.0
  %156 = vmatpush1.msra.mxu0 0.0
  %157 = vmatprep.subr.mxu0 0.0
  %158 = vmatpush1.msra.mxu0 0.0
  %159 = vmatprep.subr.mxu0 0.0
  %160 = vmatpush1.msra.mxu0 0.0
  %161 = vmatprep.subr.mxu0 0.0
  %162 = vmatpush1.msra.mxu0 0.0
  %163 = vmatprep.subr.mxu0 0.0
  %164 = vmatpush1.msra.mxu0 0.0
  %165 = vmatprep.subr.mxu0 0.0
  %166 = vmatpush1.msra.mxu0 0.0
  %167 = vmatprep.subr.mxu0 0.0
  %168 = vmatpush1.msra.mxu0 0.0
  %169 = vmatprep.subr.mxu0 0.0
  %170 = vmatpush1.msra.mxu0 0.0
  %171 = vmatprep.subr.mxu0 0.0
  %172 = vmatpush1.msra.mxu0 0.0
  %173 = vmatprep.subr.mxu0 0.0
  %174 = vmatpush1.msra.mxu0 0.0
  %175 = vmatprep.subr.mxu0 0.0
  %176 = vmatpush1.msra.mxu0 0.0
  %177 = vmatprep.subr.mxu0 0.0
  %178 = vmatpush1.msra.mxu0 0.0
  %179 = vmatprep.subr.mxu0 0.0
  %180 = vmatpush1.msra.mxu0 0.0
  %181 = vmatprep.subr.mxu0 0.0
  %182 = vmatpush1.msra.mxu0 0.0
  %183 = vmatprep.mubr.f32.mxu0 0.0
  %184 = vmatmul.mubr.f32.gmra.mrb[0].mxu0 %v46
  %v185 = vpop.f32.mrb[0].mxu0
  %v186 = vadd.f32 %v107, %v185
  %v187 = vpop.f32.mrb[0].mxu0
  %v188 = vadd.f32 %v111, %v187
  %189 = vmatprep.mubr.f32.mxu0 0.0
  %190 = vmatmul.mubr.f32.gmra.mrb[0].mxu0 %v47
  %v191 = vpop.f32.mrb[0].mxu0
  %v192 = vadd.f32 %v107, %v191
  %v193 = vpop.f32.mrb[0].mxu0
  %v194 = vadd.f32 %v111, %v193
  %195 = vmatprep.mubr.f32.mxu0 0.0
  %196 = vmatmul.mubr.f32.gmra.mrb[0].mxu0 %v48
  %v197 = vpop.f32.mrb[0].mxu0
  %v198 = vadd.f32 %v107, %v197
  %v199 = vpop.f32.mrb[0].mxu0
  %v200 = vadd.f32 %v111, %v199
  %201 = vmatprep.mubr.f32.mxu0 0.0
  %202 = vmatmul.mubr.f32.gmra.mrb[0].mxu0 %v49
  %v203 = vpop.f32.mrb[0].mxu0
  %v204 = vadd.f32 %v107, %v203
  %v205 = vpop.f32.mrb[0].mxu0
  %v206 = vadd.f32 %v111, %v205
  %207 = vmatprep.mubr.f32.mxu0 0.0
  %208 = vmatmul.mubr.f32.gmra.mrb[0].mxu0 %v50
  %v209 = vpop.f32.mrb[0].mxu0
  %v210 = vadd.f32 %v107, %v209
  %v211 = vpop.f32.mrb[0].mxu0
  %v212 = vadd.f32 %v111, %v211
  %213 = vmatprep.mubr.f32.mxu0 0.0
  %214 = vmatmul.mubr.f32.gmra.mrb[0].mxu0 %v51
  %v215 = vpop.f32.mrb[0].mxu0
  %v216 = vadd.f32 %v107, %v215
  %v217 = vpop.f32.mrb[0].mxu0
  %v218 = vadd.f32 %v111, %v217
  %219 = vmatprep.mubr.f32.mxu0 0.0
  %220 = vmatmul.mubr.f32.gmra.mrb[0].mxu0 %v52
  %v221 = vpop.f32.mrb[0].mxu0
  %v222 = vadd.f32 %v107, %v221
  %v223 = vpop.f32.mrb[0].mxu0
  %v224 = vadd.f32 %v111, %v223
  %225 = vmatprep.mubr.f32.mxu0 0.0
  %226 = vmatmul.mubr.f32.gmra.mrb[0].mxu0 %v53
  %v227 = vpop.f32.mrb[0].mxu0
  %v228 = vadd.f32 %v107, %v227
  %v229 = vpop.f32.mrb[0].mxu0
  %v230 = vadd.f32 %v111, %v229
  %231 = vdwg.mxu0
  %232 = vmatprep.subr.mxu0 0.0
  %233 = vmatpush1.msra.mxu0 %v56
  %234 = vmatprep.subr.mxu0 0.0
  %235 = vmatpush1.msra.mxu0 %v59
  %236 = vmatprep.subr.mxu0 0.0
  %237 = vmatpush1.msra.mxu0 %v62
  %238 = vmatprep.subr.mxu0 0.0
  %239 = vmatpush1.msra.mxu0 %v65
  %240 = vmatprep.subr.mxu0 0.0
  %241 = vmatpush1.msra.mxu0 %v68
  %242 = vmatprep.subr.mxu0 0.0
  %243 = vmatpush1.msra.mxu0 %v71
  %244 = vmatprep.subr.mxu0 0.0
  %245 = vmatpush1.msra.mxu0 %v74
  %246 = vmatprep.subr.mxu0 0.0
  %247 = vmatpush1.msra.mxu0 %v77
  %248 = vmatprep.subr.mxu0 0.0
  %249 = vmatpush1.msra.mxu0 %v80
  %250 = vmatprep.subr.mxu0 0.0
  %251 = vmatpush1.msra.mxu0 %v83
  %252 = vmatprep.subr.mxu0 0.0
  %253 = vmatpush1.msra.mxu0 %v86
  %254 = vmatprep.subr.mxu0 0.0
  %255 = vmatpush1.msra.mxu0 %v89
  %256 = vmatprep.subr.mxu0 0.0
  %257 = vmatpush1.msra.mxu0 %v92
  %258 = vmatprep.subr.mxu0 0.0
  %259 = vmatpush1.msra.mxu0 %v95
  %260 = vmatprep.subr.mxu0 0.0
  %261 = vmatpush1.msra.mxu0 %v98
  %262 = vmatprep.subr.mxu0 0.0
  %263 = vmatpush1.msra.mxu0 %v101
  %264 = vmatprep.subr.mxu0 0.0
  %265 = vmatpush1.msra.mxu0 0.0
  %266 = vmatprep.subr.mxu0 0.0
  %267 = vmatpush1.msra.mxu0 0.0
  %268 = vmatprep.subr.mxu0 0.0
  %269 = vmatpush1.msra.mxu0 0.0
  %270 = vmatprep.subr.mxu0 0.0
  %271 = vmatpush1.msra.mxu0 0.0
  %272 = vmatprep.subr.mxu0 0.0
  %273 = vmatpush1.msra.mxu0 0.0
  %274 = vmatprep.subr.mxu0 0.0
  %275 = vmatpush1.msra.mxu0 0.0
  %276 = vmatprep.subr.mxu0 0.0
  %277 = vmatpush1.msra.mxu0 0.0
  %278 = vmatprep.subr.mxu0 0.0
  %279 = vmatpush1.msra.mxu0 0.0
  %280 = vmatprep.subr.mxu0 0.0
  %281 = vmatpush1.msra.mxu0 0.0
  %282 = vmatprep.subr.mxu0 0.0
  %283 = vmatpush1.msra.mxu0 0.0
  %284 = vmatprep.subr.mxu0 0.0
  %285 = vmatpush1.msra.mxu0 0.0
  %286 = vmatprep.subr.mxu0 0.0
  %287 = vmatpush1.msra.mxu0 0.0
  %288 = vmatprep.subr.mxu0 0.0
  %289 = vmatpush1.msra.mxu0 0.0
  %290 = vmatprep.subr.mxu0 0.0
  %291 = vmatpush1.msra.mxu0 0.0
  %292 = vmatprep.subr.mxu0 0.0
  %293 = vmatpush1.msra.mxu0 0.0
  %294 = vmatprep.subr.mxu0 0.0
  %295 = vmatpush1.msra.mxu0 0.0
  %296 = vmatprep.mubr.f32.mxu0 0.0
  %297 = vmatmul.mubr.f32.gmra.mrb[0].mxu0 %v46
  %v298 = vpop.f32.mrb[0].mxu0
  %v299 = vadd.f32 %v115, %v298
  %v300 = vpop.f32.mrb[0].mxu0
  %301 = vmatprep.mubr.f32.mxu0 0.0
  %302 = vmatmul.mubr.f32.gmra.mrb[0].mxu0 %v47
  %v303 = vpop.f32.mrb[0].mxu0
  %v304 = vadd.f32 %v115, %v303
  %v305 = vpop.f32.mrb[0].mxu0
  %306 = vmatprep.mubr.f32.mxu0 0.0
  %307 = vmatmul.mubr.f32.gmra.mrb[0].mxu0 %v48
  %v308 = vpop.f32.mrb[0].mxu0
  %v309 = vadd.f32 %v115, %v308
  %v310 = vpop.f32.mrb[0].mxu0
  %311 = vmatprep.mubr.f32.mxu0 0.0
  %312 = vmatmul.mubr.f32.gmra.mrb[0].mxu0 %v49
  %v313 = vpop.f32.mrb[0].mxu0
  %v314 = vadd.f32 %v115, %v313
  %v315 = vpop.f32.mrb[0].mxu0
  %316 = vmatprep.mubr.f32.mxu0 0.0
  %317 = vmatmul.mubr.f32.gmra.mrb[0].mxu0 %v50
  %v318 = vpop.f32.mrb[0].mxu0
  %v319 = vadd.f32 %v115, %v318
  %v320 = vpop.f32.mrb[0].mxu0
  %321 = vmatprep.mubr.f32.mxu0 0.0
  %322 = vmatmul.mubr.f32.gmra.mrb[0].mxu0 %v51
  %v323 = vpop.f32.mrb[0].mxu0
  %v324 = vadd.f32 %v115, %v323
  %v325 = vpop.f32.mrb[0].mxu0
  %326 = vmatprep.mubr.f32.mxu0 0.0
  %327 = vmatmul.mubr.f32.gmra.mrb[0].mxu0 %v52
  %v328 = vpop.f32.mrb[0].mxu0
  %v329 = vadd.f32 %v115, %v328
  %v330 = vpop.f32.mrb[0].mxu0
  %331 = vmatprep.mubr.f32.mxu0 0.0
  %332 = vmatmul.mubr.f32.gmra.mrb[0].mxu0 %v53
  %v333 = vpop.f32.mrb[0].mxu0
  %v334 = vadd.f32 %v115, %v333
  %v335 = vpop.f32.mrb[0].mxu0
  %336 = vdwg.mxu0
  %337 = vst [vmem:[#allocation4] sm:$0xff] %v186
  %338 = vst [vmem:[#allocation4 + $0x8] sm:$0xff] %v188
  %339 = vst [vmem:[#allocation4 + $0x10] sm:$0xff] %v299
  %340 = vst [vmem:[#allocation4 + $0x18] sm:$0xff] %v192
  %341 = vst [vmem:[#allocation4 + $0x20] sm:$0xff] %v194
  %342 = vst [vmem:[#allocation4 + $0x28] sm:$0xff] %v304
  %343 = vst [vmem:[#allocation4 + $0x30] sm:$0xff] %v198
  %344 = vst [vmem:[#allocation4 + $0x38] sm:$0xff] %v200
  %345 = vst [vmem:[#allocation4 + $0x40] sm:$0xff] %v309
  %346 = vst [vmem:[#allocation4 + $0x48] sm:$0xff] %v204
  %347 = vst [vmem:[#allocation4 + $0x50] sm:$0xff] %v206
  %348 = vst [vmem:[#allocation4 + $0x58] sm:$0xff] %v314
  %349 = vst [vmem:[#allocation4 + $0x60] sm:$0xff] %v210
  %350 = vst [vmem:[#allocation4 + $0x68] sm:$0xff] %v212
  %351 = vst [vmem:[#allocation4 + $0x70] sm:$0xff] %v319
  %352 = vst [vmem:[#allocation4 + $0x78] sm:$0xff] %v216
  %353 = vst [vmem:[#allocation4 + $0x80] sm:$0xff] %v218
  %354 = vst [vmem:[#allocation4 + $0x88] sm:$0xff] %v324
  %355 = vst [vmem:[#allocation4 + $0x90] sm:$0xff] %v222
  %356 = vst [vmem:[#allocation4 + $0x98] sm:$0xff] %v224
  %357 = vst [vmem:[#allocation4 + $0xa0] sm:$0xff] %v329
  %358 = vst [vmem:[#allocation4 + $0xa8] sm:$0xff] %v228
  %359 = vst [vmem:[#allocation4 + $0xb0] sm:$0xff] %v230
  %360 = vst [vmem:[#allocation4 + $0xb8] sm:$0xff] %v334
  %v361 = vld [vmem:[%s4] sm:$0x7]
  %v363 = vlaneseq
  %v364 = vshrl.u32 %v363, 7
  %v365 = vsub.s32 0, %v364
  %v366 = vrot.slane %v361, %v365
  %v367 = vlaneseq
  %v368 = vshrl.u32 %v367, 7
  %v369 = vsub.s32 1, %v368
  %v370 = vrot.slane %v361, %v369
  %v371 = vlaneseq
  %v372 = vshrl.u32 %v371, 7
  %v373 = vsub.s32 2, %v372
  %v374 = vrot.slane %v361, %v373
  %v378 = vld [vmem:[#allocation4] sm:$0xff]
  %v379 = vld [vmem:[#allocation4 + $0x8] sm:$0xff]
  %v380 = vld [vmem:[#allocation4 + $0x10] sm:$0xff]
  %v381 = vld [vmem:[%s2] sm:$0xff]
  %v382 = vld [vmem:[%s2 + $0x8] sm:$0xff]
  %v383 = vld [vmem:[%s2 + $0x10] sm:$0xff]
  %v384 = vld [vmem:[%s2 + $0x18] sm:$0xff]
  %v385 = vld [vmem:[%s2 + $0x20] sm:$0xff]
  %v386 = vld [vmem:[%s2 + $0x28] sm:$0xff]
  %v387 = vld [vmem:[%s2 + $0x30] sm:$0xff]
  %v388 = vld [vmem:[%s2 + $0x38] sm:$0xff]
  %v389 = vld [vmem:[%s2 + $0x40] sm:$0xff]
  %v390 = vld [vmem:[%s2 + $0x48] sm:$0xff]
  %v391 = vld [vmem:[%s2 + $0x50] sm:$0xff]
  %v392 = vld [vmem:[%s2 + $0x58] sm:$0xff]
  %v393 = vld [vmem:[%s2 + $0x60] sm:$0xff]
  %v394 = vld [vmem:[%s2 + $0x68] sm:$0xff]
  %v395 = vld [vmem:[%s2 + $0x70] sm:$0xff]
  %v396 = vld [vmem:[%s2 + $0x78] sm:$0xff]
  %v397 = vld [vmem:[%s2 + $0x80] sm:$0xff]
  %v398 = vld [vmem:[%s2 + $0x88] sm:$0xff]
  %v399 = vld [vmem:[%s2 + $0x90] sm:$0xff]
  %v400 = vld [vmem:[%s2 + $0x98] sm:$0xff]
  %v401 = vld [vmem:[%s2 + $0xa0] sm:$0xff]
  %v402 = vld [vmem:[%s2 + $0xa8] sm:$0xff]
  %v403 = vld [vmem:[%s2 + $0xb0] sm:$0xff]
  %v404 = vld [vmem:[%s2 + $0xb8] sm:$0xff]
  %v405 = vld [vmem:[%s2 + $0xc0] sm:$0xff]
  %v406 = vld [vmem:[%s2 + $0xc8] sm:$0xff]
  %v407 = vld [vmem:[%s2 + $0xd0] sm:$0xff]
  %v408 = vld [vmem:[%s2 + $0xd8] sm:$0xff]
  %v409 = vld [vmem:[%s2 + $0xe0] sm:$0xff]
  %v410 = vld [vmem:[%s2 + $0xe8] sm:$0xff]
  %v411 = vld [vmem:[%s2 + $0xf0] sm:$0xff]
  %v412 = vld [vmem:[%s2 + $0xf8] sm:$0xff]
  %v413 = vld [vmem:[%s2 + $0x100] sm:$0xff]
  %v414 = vld [vmem:[%s2 + $0x108] sm:$0xff]
  %v415 = vld [vmem:[%s2 + $0x110] sm:$0xff]
  %v416 = vld [vmem:[%s2 + $0x118] sm:$0xff]
  %v417 = vld [vmem:[%s2 + $0x120] sm:$0xff]
  %v418 = vld [vmem:[%s2 + $0x128] sm:$0xff]
  %v419 = vld [vmem:[%s2 + $0x130] sm:$0xff]
  %v420 = vld [vmem:[%s2 + $0x138] sm:$0xff]
  %v421 = vld [vmem:[%s2 + $0x140] sm:$0xff]
  %v422 = vld [vmem:[%s2 + $0x148] sm:$0xff]
  %v423 = vld [vmem:[%s2 + $0x150] sm:$0xff]
  %v424 = vld [vmem:[%s2 + $0x158] sm:$0xff]
  %v425 = vld [vmem:[%s2 + $0x160] sm:$0xff]
  %v426 = vld [vmem:[%s2 + $0x168] sm:$0xff]
  %v427 = vld [vmem:[%s2 + $0x170] sm:$0xff]
  %v428 = vld [vmem:[%s2 + $0x178] sm:$0xff]
  %429 = vmatprep.subr.mxu0 %v382
  %430 = vmatpush1.msra.mxu0 %v381
  %431 = vmatprep.subr.mxu0 %v385
  %432 = vmatpush1.msra.mxu0 %v384
  %433 = vmatprep.subr.mxu0 %v388
  %434 = vmatpush1.msra.mxu0 %v387
  %435 = vmatprep.subr.mxu0 %v391
  %436 = vmatpush1.msra.mxu0 %v390
  %437 = vmatprep.subr.mxu0 %v394
  %438 = vmatpush1.msra.mxu0 %v393
  %439 = vmatprep.subr.mxu0 %v397
  %440 = vmatpush1.msra.mxu0 %v396
  %441 = vmatprep.subr.mxu0 %v400
  %442 = vmatpush1.msra.mxu0 %v399
  %443 = vmatprep.subr.mxu0 %v403
  %444 = vmatpush1.msra.mxu0 %v402
  %445 = vmatprep.subr.mxu0 %v406
  %446 = vmatpush1.msra.mxu0 %v405
  %447 = vmatprep.subr.mxu0 %v409
  %448 = vmatpush1.msra.mxu0 %v408
  %449 = vmatprep.subr.mxu0 %v412
  %450 = vmatpush1.msra.mxu0 %v411
  %451 = vmatprep.subr.mxu0 %v415
  %452 = vmatpush1.msra.mxu0 %v414
  %453 = vmatprep.subr.mxu0 %v418
  %454 = vmatpush1.msra.mxu0 %v417
  %455 = vmatprep.subr.mxu0 %v421
  %456 = vmatpush1.msra.mxu0 %v420
  %457 = vmatprep.subr.mxu0 %v424
  %458 = vmatpush1.msra.mxu0 %v423
  %459 = vmatprep.subr.mxu0 %v427
  %460 = vmatpush1.msra.mxu0 %v426
  %461 = vmatprep.subr.mxu0 0.0
  %462 = vmatpush1.msra.mxu0 0.0
  %463 = vmatprep.subr.mxu0 0.0
  %464 = vmatpush1.msra.mxu0 0.0
  %465 = vmatprep.subr.mxu0 0.0
  %466 = vmatpush1.msra.mxu0 0.0
  %467 = vmatprep.subr.mxu0 0.0
  %468 = vmatpush1.msra.mxu0 0.0
  %469 = vmatprep.subr.mxu0 0.0
  %470 = vmatpush1.msra.mxu0 0.0
  %471 = vmatprep.subr.mxu0 0.0
  %472 = vmatpush1.msra.mxu0 0.0
  %473 = vmatprep.subr.mxu0 0.0
  %474 = vmatpush1.msra.mxu0 0.0
  %475 = vmatprep.subr.mxu0 0.0
  %476 = vmatpush1.msra.mxu0 0.0
  %477 = vmatprep.subr.mxu0 0.0
  %478 = vmatpush1.msra.mxu0 0.0
  %479 = vmatprep.subr.mxu0 0.0
  %480 = vmatpush1.msra.mxu0 0.0
  %481 = vmatprep.subr.mxu0 0.0
  %482 = vmatpush1.msra.mxu0 0.0
  %483 = vmatprep.subr.mxu0 0.0
  %484 = vmatpush1.msra.mxu0 0.0
  %485 = vmatprep.subr.mxu0 0.0
  %486 = vmatpush1.msra.mxu0 0.0
  %487 = vmatprep.subr.mxu0 0.0
  %488 = vmatpush1.msra.mxu0 0.0
  %489 = vmatprep.subr.mxu0 0.0
  %490 = vmatpush1.msra.mxu0 0.0
  %491 = vmatprep.subr.mxu0 0.0
  %492 = vmatpush1.msra.mxu0 0.0
  %493 = vmatprep.mubr.f32.mxu0 0.0
  %494 = vmatmul.mubr.f32.gmra.mrb[0].mxu0 0.0
  %v495 = vpop.f32.mrb[0].mxu0
  %v496 = vadd.f32 %v366, %v495
  %v497 = vpop.f32.mrb[0].mxu0
  %v498 = vadd.f32 %v370, %v497
  %499 = vdwg.mxu0
  %500 = vmatprep.subr.mxu0 0.0
  %501 = vmatpush1.msra.mxu0 %v383
  %502 = vmatprep.subr.mxu0 0.0
  %503 = vmatpush1.msra.mxu0 %v386
  %504 = vmatprep.subr.mxu0 0.0
  %505 = vmatpush1.msra.mxu0 %v389
  %506 = vmatprep.subr.mxu0 0.0
  %507 = vmatpush1.msra.mxu0 %v392
  %508 = vmatprep.subr.mxu0 0.0
  %509 = vmatpush1.msra.mxu0 %v395
  %510 = vmatprep.subr.mxu0 0.0
  %511 = vmatpush1.msra.mxu0 %v398
  %512 = vmatprep.subr.mxu0 0.0
  %513 = vmatpush1.msra.mxu0 %v401
  %514 = vmatprep.subr.mxu0 0.0
  %515 = vmatpush1.msra.mxu0 %v404
  %516 = vmatprep.subr.mxu0 0.0
  %517 = vmatpush1.msra.mxu0 %v407
  %518 = vmatprep.subr.mxu0 0.0
  %519 = vmatpush1.msra.mxu0 %v410
  %520 = vmatprep.subr.mxu0 0.0
  %521 = vmatpush1.msra.mxu0 %v413
  %522 = vmatprep.subr.mxu0 0.0
  %523 = vmatpush1.msra.mxu0 %v416
  %524 = vmatprep.subr.mxu0 0.0
  %525 = vmatpush1.msra.mxu0 %v419
  %526 = vmatprep.subr.mxu0 0.0
  %527 = vmatpush1.msra.mxu0 %v422
  %528 = vmatprep.subr.mxu0 0.0
  %529 = vmatpush1.msra.mxu0 %v425
  %530 = vmatprep.subr.mxu0 0.0
  %531 = vmatpush1.msra.mxu0 %v428
  %532 = vmatprep.subr.mxu0 0.0
  %533 = vmatpush1.msra.mxu0 0.0
  %534 = vmatprep.subr.mxu0 0.0
  %535 = vmatpush1.msra.mxu0 0.0
  %536 = vmatprep.subr.mxu0 0.0
  %537 = vmatpush1.msra.mxu0 0.0
  %538 = vmatprep.subr.mxu0 0.0
  %539 = vmatpush1.msra.mxu0 0.0
  %540 = vmatprep.subr.mxu0 0.0
  %541 = vmatpush1.msra.mxu0 0.0
  %542 = vmatprep.subr.mxu0 0.0
  %543 = vmatpush1.msra.mxu0 0.0
  %544 = vmatprep.subr.mxu0 0.0
  %545 = vmatpush1.msra.mxu0 0.0
  %546 = vmatprep.subr.mxu0 0.0
  %547 = vmatpush1.msra.mxu0 0.0
  %548 = vmatprep.subr.mxu0 0.0
  %549 = vmatpush1.msra.mxu0 0.0
  %550 = vmatprep.subr.mxu0 0.0
  %551 = vmatpush1.msra.mxu0 0.0
  %552 = vmatprep.subr.mxu0 0.0
  %553 = vmatpush1.msra.mxu0 0.0
  %554 = vmatprep.subr.mxu0 0.0
  %555 = vmatpush1.msra.mxu0 0.0
  %556 = vmatprep.subr.mxu0 0.0
  %557 = vmatpush1.msra.mxu0 0.0
  %558 = vmatprep.subr.mxu0 0.0
  %559 = vmatpush1.msra.mxu0 0.0
  %560 = vmatprep.subr.mxu0 0.0
  %561 = vmatpush1.msra.mxu0 0.0
  %562 = vmatprep.subr.mxu0 0.0
  %563 = vmatpush1.msra.mxu0 0.0
  %564 = vmatprep.mubr.f32.mxu0 0.0
  %565 = vmatmul.mubr.f32.gmra.mrb[0].mxu0 0.0
  %v566 = vpop.f32.mrb[0].mxu0
  %v567 = vadd.f32 %v374, %v566
  %v568 = vpop.f32.mrb[0].mxu0
  %569 = vdwg.mxu0
  %v570 = vadd.f32 %v378, %v496
  %v571 = vxor.u32 %v570, 2147483648
  %v572 = vmul.f32 %v571, 1.442695
  %v573 = vpow.pop %v572
  %v574 = vadd.f32 %v573, 1.0
  %v575 = vrcp.pop %v574
  %v576 = vmul.f32 1.0, %v575
  %v577 = vadd.f32 %v379, %v498
  %v578 = vxor.u32 %v577, 2147483648
  %v579 = vmul.f32 %v578, 1.442695
  %v580 = vpow.pop %v579
  %v581 = vadd.f32 %v580, 1.0
  %v582 = vrcp.pop %v581
  %v583 = vmul.f32 1.0, %v582
  %v584 = vmul.f32 %v576, %v567
  %v585 = vadd.f32 %v380, %v584
  %v586 = vtanh.pop %v585
  %v587 = vsub.f32 1.0, %v583
  %v588 = vmul.f32 %v587, %v586
  %v589 = vmul.f32 %v583, 0.0
  %v590 = vadd.f32 %v588, %v589
  %591 = vst [vmem:[#allocation2] sm:$0xff] %v590
  %s592 = scalar_lea.vmem [#allocation4], 24
  %v593 = vld [vmem:[%s592] sm:$0xff]
  %v594 = vld [vmem:[%s592 + $0x8] sm:$0xff]
  %v595 = vld [vmem:[%s592 + $0x10] sm:$0xff]
  %v596 = vld [vmem:[%s2] sm:$0xff]
  %v597 = vld [vmem:[%s2 + $0x8] sm:$0xff]
  %v598 = vld [vmem:[%s2 + $0x10] sm:$0xff]
  %v599 = vld [vmem:[%s2 + $0x18] sm:$0xff]
  %v600 = vld [vmem:[%s2 + $0x20] sm:$0xff]
  %v601 = vld [vmem:[%s2 + $0x28] sm:$0xff]
  %v602 = vld [vmem:[%s2 + $0x30] sm:$0xff]
  %v603 = vld [vmem:[%s2 + $0x38] sm:$0xff]
  %v604 = vld [vmem:[%s2 + $0x40] sm:$0xff]
  %v605 = vld [vmem:[%s2 + $0x48] sm:$0xff]
  %v606 = vld [vmem:[%s2 + $0x50] sm:$0xff]
  %v607 = vld [vmem:[%s2 + $0x58] sm:$0xff]
  %v608 = vld [vmem:[%s2 + $0x60] sm:$0xff]
  %v609 = vld [vmem:[%s2 + $0x68] sm:$0xff]
  %v610 = vld [vmem:[%s2 + $0x70] sm:$0xff]
  %v611 = vld [vmem:[%s2 + $0x78] sm:$0xff]
  %v612 = vld [vmem:[%s2 + $0x80] sm:$0xff]
  %v613 = vld [vmem:[%s2 + $0x88] sm:$0xff]
  %v614 = vld [vmem:[%s2 + $0x90] sm:$0xff]
  %v615 = vld [vmem:[%s2 + $0x98] sm:$0xff]
  %v616 = vld [vmem:[%s2 + $0xa0] sm:$0xff]
  %v617 = vld [vmem:[%s2 + $0xa8] sm:$0xff]
  %v618 = vld [vmem:[%s2 + $0xb0] sm:$0xff]
  %v619 = vld [vmem:[%s2 + $0xb8] sm:$0xff]
  %v620 = vld [vmem:[%s2 + $0xc0] sm:$0xff]
  %v621 = vld [vmem:[%s2 + $0xc8] sm:$0xff]
  %v622 = vld [vmem:[%s2 + $0xd0] sm:$0xff]
  %v623 = vld [vmem:[%s2 + $0xd8] sm:$0xff]
  %v624 = vld [vmem:[%s2 + $0xe0] sm:$0xff]
  %v625 = vld [vmem:[%s2 + $0xe8] sm:$0xff]
  %v626 = vld [vmem:[%s2 + $0xf0] sm:$0xff]
  %v627 = vld [vmem:[%s2 + $0xf8] sm:$0xff]
  %v628 = vld [vmem:[%s2 + $0x100] sm:$0xff]
  %v629 = vld [vmem:[%s2 + $0x108] sm:$0xff]
  %v630 = vld [vmem:[%s2 + $0x110] sm:$0xff]
  %v631 = vld [vmem:[%s2 + $0x118] sm:$0xff]
  %v632 = vld [vmem:[%s2 + $0x120] sm:$0xff]
  %v633 = vld [vmem:[%s2 + $0x128] sm:$0xff]
  %v634 = vld [vmem:[%s2 + $0x130] sm:$0xff]
  %v635 = vld [vmem:[%s2 + $0x138] sm:$0xff]
  %v636 = vld [vmem:[%s2 + $0x140] sm:$0xff]
  %v637 = vld [vmem:[%s2 + $0x148] sm:$0xff]
  %v638 = vld [vmem:[%s2 + $0x150] sm:$0xff]
  %v639 = vld [vmem:[%s2 + $0x158] sm:$0xff]
  %v640 = vld [vmem:[%s2 + $0x160] sm:$0xff]
  %v641 = vld [vmem:[%s2 + $0x168] sm:$0xff]
  %v642 = vld [vmem:[%s2 + $0x170] sm:$0xff]
  %v643 = vld [vmem:[%s2 + $0x178] sm:$0xff]
  %644 = vmatprep.subr.mxu0 %v597
  %645 = vmatpush1.msra.mxu0 %v596
  %646 = vmatprep.subr.mxu0 %v600
  %647 = vmatpush1.msra.mxu0 %v599
  %648 = vmatprep.subr.mxu0 %v603
  %649 = vmatpush1.msra.mxu0 %v602
  %650 = vmatprep.subr.mxu0 %v606
  %651 = vmatpush1.msra.mxu0 %v605
  %652 = vmatprep.subr.mxu0 %v609
  %653 = vmatpush1.msra.mxu0 %v608
  %654 = vmatprep.subr.mxu0 %v612
  %655 = vmatpush1.msra.mxu0 %v611
  %656 = vmatprep.subr.mxu0 %v615
  %657 = vmatpush1.msra.mxu0 %v614
  %658 = vmatprep.subr.mxu0 %v618
  %659 = vmatpush1.msra.mxu0 %v617
  %660 = vmatprep.subr.mxu0 %v621
  %661 = vmatpush1.msra.mxu0 %v620
  %662 = vmatprep.subr.mxu0 %v624
  %663 = vmatpush1.msra.mxu0 %v623
  %664 = vmatprep.subr.mxu0 %v627
  %665 = vmatpush1.msra.mxu0 %v626
  %666 = vmatprep.subr.mxu0 %v630
  %667 = vmatpush1.msra.mxu0 %v629
  %668 = vmatprep.subr.mxu0 %v633
  %669 = vmatpush1.msra.mxu0 %v632
  %670 = vmatprep.subr.mxu0 %v636
  %671 = vmatpush1.msra.mxu0 %v635
  %672 = vmatprep.subr.mxu0 %v639
  %673 = vmatpush1.msra.mxu0 %v638
  %674 = vmatprep.subr.mxu0 %v642
  %675 = vmatpush1.msra.mxu0 %v641
  %676 = vmatprep.subr.mxu0 0.0
  %677 = vmatpush1.msra.mxu0 0.0
  %678 = vmatprep.subr.mxu0 0.0
  %679 = vmatpush1.msra.mxu0 0.0
  %680 = vmatprep.subr.mxu0 0.0
  %681 = vmatpush1.msra.mxu0 0.0
  %682 = vmatprep.subr.mxu0 0.0
  %683 = vmatpush1.msra.mxu0 0.0
  %684 = vmatprep.subr.mxu0 0.0
  %685 = vmatpush1.msra.mxu0 0.0
  %686 = vmatprep.subr.mxu0 0.0
  %687 = vmatpush1.msra.mxu0 0.0
  %688 = vmatprep.subr.mxu0 0.0
  %689 = vmatpush1.msra.mxu0 0.0
  %690 = vmatprep.subr.mxu0 0.0
  %691 = vmatpush1.msra.mxu0 0.0
  %692 = vmatprep.subr.mxu0 0.0
  %693 = vmatpush1.msra.mxu0 0.0
  %694 = vmatprep.subr.mxu0 0.0
  %695 = vmatpush1.msra.mxu0 0.0
  %696 = vmatprep.subr.mxu0 0.0
  %697 = vmatpush1.msra.mxu0 0.0
  %698 = vmatprep.subr.mxu0 0.0
  %699 = vmatpush1.msra.mxu0 0.0
  %700 = vmatprep.subr.mxu0 0.0
  %701 = vmatpush1.msra.mxu0 0.0
  %702 = vmatprep.subr.mxu0 0.0
  %703 = vmatpush1.msra.mxu0 0.0
  %704 = vmatprep.subr.mxu0 0.0
  %705 = vmatpush1.msra.mxu0 0.0
  %706 = vmatprep.subr.mxu0 0.0
  %707 = vmatpush1.msra.mxu0 0.0
  %708 = vmatprep.mubr.f32.mxu0 0.0
  %709 = vmatmul.mubr.f32.gmra.mrb[0].mxu0 %v590
  %v710 = vpop.f32.mrb[0].mxu0
  %v711 = vadd.f32 %v366, %v710
  %v712 = vpop.f32.mrb[0].mxu0
  %v713 = vadd.f32 %v370, %v712
  %714 = vdwg.mxu0
  %715 = vmatprep.subr.mxu0 0.0
  %716 = vmatpush1.msra.mxu0 %v598
  %717 = vmatprep.subr.mxu0 0.0
  %718 = vmatpush1.msra.mxu0 %v601
  %719 = vmatprep.subr.mxu0 0.0
  %720 = vmatpush1.msra.mxu0 %v604
  %721 = vmatprep.subr.mxu0 0.0
  %722 = vmatpush1.msra.mxu0 %v607
  %723 = vmatprep.subr.mxu0 0.0
  %724 = vmatpush1.msra.mxu0 %v610
  %725 = vmatprep.subr.mxu0 0.0
  %726 = vmatpush1.msra.mxu0 %v613
  %727 = vmatprep.subr.mxu0 0.0
  %728 = vmatpush1.msra.mxu0 %v616
  %729 = vmatprep.subr.mxu0 0.0
  %730 = vmatpush1.msra.mxu0 %v619
  %731 = vmatprep.subr.mxu0 0.0
  %732 = vmatpush1.msra.mxu0 %v622
  %733 = vmatprep.subr.mxu0 0.0
  %734 = vmatpush1.msra.mxu0 %v625
  %735 = vmatprep.subr.mxu0 0.0
  %736 = vmatpush1.msra.mxu0 %v628
  %737 = vmatprep.subr.mxu0 0.0
  %738 = vmatpush1.msra.mxu0 %v631
  %739 = vmatprep.subr.mxu0 0.0
  %740 = vmatpush1.msra.mxu0 %v634
  %741 = vmatprep.subr.mxu0 0.0
  %742 = vmatpush1.msra.mxu0 %v637
  %743 = vmatprep.subr.mxu0 0.0
  %744 = vmatpush1.msra.mxu0 %v640
  %745 = vmatprep.subr.mxu0 0.0
  %746 = vmatpush1.msra.mxu0 %v643
  %747 = vmatprep.subr.mxu0 0.0
  %748 = vmatpush1.msra.mxu0 0.0
  %749 = vmatprep.subr.mxu0 0.0
  %750 = vmatpush1.msra.mxu0 0.0
  %751 = vmatprep.subr.mxu0 0.0
  %752 = vmatpush1.msra.mxu0 0.0
  %753 = vmatprep.subr.mxu0 0.0
  %754 = vmatpush1.msra.mxu0 0.0
  %755 = vmatprep.subr.mxu0 0.0
  %756 = vmatpush1.msra.mxu0 0.0
  %757 = vmatprep.subr.mxu0 0.0
  %758 = vmatpush1.msra.mxu0 0.0
  %759 = vmatprep.subr.mxu0 0.0
  %760 = vmatpush1.msra.mxu0 0.0
  %761 = vmatprep.subr.mxu0 0.0
  %762 = vmatpush1.msra.mxu0 0.0
  %763 = vmatprep.subr.mxu0 0.0
  %764 = vmatpush1.msra.mxu0 0.0
  %765 = vmatprep.subr.mxu0 0.0
  %766 = vmatpush1.msra.mxu0 0.0
  %767 = vmatprep.subr.mxu0 0.0
  %768 = vmatpush1.msra.mxu0 0.0
  %769 = vmatprep.subr.mxu0 0.0
  %770 = vmatpush1.msra.mxu0 0.0
  %771 = vmatprep.subr.mxu0 0.0
  %772 = vmatpush1.msra.mxu0 0.0
  %773 = vmatprep.subr.mxu0 0.0
  %774 = vmatpush1.msra.mxu0 0.0
  %775 = vmatprep.subr.mxu0 0.0
  %776 = vmatpush1.msra.mxu0 0.0
  %777 = vmatprep.subr.mxu0 0.0
  %778 = vmatpush1.msra.mxu0 0.0
  %779 = vmatprep.mubr.f32.mxu0 0.0
  %780 = vmatmul.mubr.f32.gmra.mrb[0].mxu0 %v590
  %v781 = vpop.f32.mrb[0].mxu0
  %v782 = vadd.f32 %v374, %v781
  %v783 = vpop.f32.mrb[0].mxu0
  %784 = vdwg.mxu0
  %v785 = vadd.f32 %v593, %v711
  %v786 = vxor.u32 %v785, 2147483648
  %v787 = vmul.f32 %v786, 1.442695
  %v788 = vpow.pop %v787
  %v789 = vadd.f32 %v788, 1.0
  %v790 = vrcp.pop %v789
  %v791 = vmul.f32 1.0, %v790
  %v792 = vadd.f32 %v594, %v713
  %v793 = vxor.u32 %v792, 2147483648
  %v794 = vmul.f32 %v793, 1.442695
  %v795 = vpow.pop %v794
  %v796 = vadd.f32 %v795, 1.0
  %v797 = vrcp.pop %v796
  %v798 = vmul.f32 1.0, %v797
  %v799 = vmul.f32 %v791, %v782
  %v800 = vadd.f32 %v595, %v799
  %v801 = vtanh.pop %v800
  %v802 = vsub.f32 1.0, %v798
  %v803 = vmul.f32 %v802, %v801
  %v804 = vmul.f32 %v798, %v590
  %v805 = vadd.f32 %v803, %v804
  %s806 = scalar_lea.vmem [#allocation2], 8
  %807 = vst [vmem:[%s806] sm:$0xff] %v805
  %s808 = scalar_lea.vmem [#allocation4], 48
  %v809 = vld [vmem:[%s808] sm:$0xff]
  %v810 = vld [vmem:[%s808 + $0x8] sm:$0xff]
  %v811 = vld [vmem:[%s808 + $0x10] sm:$0xff]
  %v812 = vld [vmem:[%s2] sm:$0xff]
  %v813 = vld [vmem:[%s2 + $0x8] sm:$0xff]
  %v814 = vld [vmem:[%s2 + $0x10] sm:$0xff]
  %v815 = vld [vmem:[%s2 + $0x18] sm:$0xff]
  %v816 = vld [vmem:[%s2 + $0x20] sm:$0xff]
  %v817 = vld [vmem:[%s2 + $0x28] sm:$0xff]
  %v818 = vld [vmem:[%s2 + $0x30] sm:$0xff]
  %v819 = vld [vmem:[%s2 + $0x38] sm:$0xff]
  %v820 = vld [vmem:[%s2 + $0x40] sm:$0xff]
  %v821 = vld [vmem:[%s2 + $0x48] sm:$0xff]
  %v822 = vld [vmem:[%s2 + $0x50] sm:$0xff]
  %v823 = vld [vmem:[%s2 + $0x58] sm:$0xff]
  %v824 = vld [vmem:[%s2 + $0x60] sm:$0xff]
  %v825 = vld [vmem:[%s2 + $0x68] sm:$0xff]
  %v826 = vld [vmem:[%s2 + $0x70] sm:$0xff]
  %v827 = vld [vmem:[%s2 + $0x78] sm:$0xff]
  %v828 = vld [vmem:[%s2 + $0x80] sm:$0xff]
  %v829 = vld [vmem:[%s2 + $0x88] sm:$0xff]
  %v830 = vld [vmem:[%s2 + $0x90] sm:$0xff]
  %v831 = vld [vmem:[%s2 + $0x98] sm:$0xff]
  %v832 = vld [vmem:[%s2 + $0xa0] sm:$0xff]
  %v833 = vld [vmem:[%s2 + $0xa8] sm:$0xff]
  %v834 = vld [vmem:[%s2 + $0xb0] sm:$0xff]
  %v835 = vld [vmem:[%s2 + $0xb8] sm:$0xff]
  %v836 = vld [vmem:[%s2 + $0xc0] sm:$0xff]
  %v837 = vld [vmem:[%s2 + $0xc8] sm:$0xff]
  %v838 = vld [vmem:[%s2 + $0xd0] sm:$0xff]
  %v839 = vld [vmem:[%s2 + $0xd8] sm:$0xff]
  %v840 = vld [vmem:[%s2 + $0xe0] sm:$0xff]
  %v841 = vld [vmem:[%s2 + $0xe8] sm:$0xff]
  %v842 = vld [vmem:[%s2 + $0xf0] sm:$0xff]
  %v843 = vld [vmem:[%s2 + $0xf8] sm:$0xff]
  %v844 = vld [vmem:[%s2 + $0x100] sm:$0xff]
  %v845 = vld [vmem:[%s2 + $0x108] sm:$0xff]
  %v846 = vld [vmem:[%s2 + $0x110] sm:$0xff]
  %v847 = vld [vmem:[%s2 + $0x118] sm:$0xff]
  %v848 = vld [vmem:[%s2 + $0x120] sm:$0xff]
  %v849 = vld [vmem:[%s2 + $0x128] sm:$0xff]
  %v850 = vld [vmem:[%s2 + $0x130] sm:$0xff]
  %v851 = vld [vmem:[%s2 + $0x138] sm:$0xff]
  %v852 = vld [vmem:[%s2 + $0x140] sm:$0xff]
  %v853 = vld [vmem:[%s2 + $0x148] sm:$0xff]
  %v854 = vld [vmem:[%s2 + $0x150] sm:$0xff]
  %v855 = vld [vmem:[%s2 + $0x158] sm:$0xff]
  %v856 = vld [vmem:[%s2 + $0x160] sm:$0xff]
  %v857 = vld [vmem:[%s2 + $0x168] sm:$0xff]
  %v858 = vld [vmem:[%s2 + $0x170] sm:$0xff]
  %v859 = vld [vmem:[%s2 + $0x178] sm:$0xff]
  %860 = vmatprep.subr.mxu0 %v813
  %861 = vmatpush1.msra.mxu0 %v812
  %862 = vmatprep.subr.mxu0 %v816
  %863 = vmatpush1.msra.mxu0 %v815
  %864 = vmatprep.subr.mxu0 %v819
  %865 = vmatpush1.msra.mxu0 %v818
  %866 = vmatprep.subr.mxu0 %v822
  %867 = vmatpush1.msra.mxu0 %v821
  %868 = vmatprep.subr.mxu0 %v825
  %869 = vmatpush1.msra.mxu0 %v824
  %870 = vmatprep.subr.mxu0 %v828
  %871 = vmatpush1.msra.mxu0 %v827
  %872 = vmatprep.subr.mxu0 %v831
  %873 = vmatpush1.msra.mxu0 %v830
  %874 = vmatprep.subr.mxu0 %v834
  %875 = vmatpush1.msra.mxu0 %v833
  %876 = vmatprep.subr.mxu0 %v837
  %877 = vmatpush1.msra.mxu0 %v836
  %878 = vmatprep.subr.mxu0 %v840
  %879 = vmatpush1.msra.mxu0 %v839
  %880 = vmatprep.subr.mxu0 %v843
  %881 = vmatpush1.msra.mxu0 %v842
  %882 = vmatprep.subr.mxu0 %v846
  %883 = vmatpush1.msra.mxu0 %v845
  %884 = vmatprep.subr.mxu0 %v849
  %885 = vmatpush1.msra.mxu0 %v848
  %886 = vmatprep.subr.mxu0 %v852
  %887 = vmatpush1.msra.mxu0 %v851
  %888 = vmatprep.subr.mxu0 %v855
  %889 = vmatpush1.msra.mxu0 %v854
  %890 = vmatprep.subr.mxu0 %v858
  %891 = vmatpush1.msra.mxu0 %v857
  %892 = vmatprep.subr.mxu0 0.0
  %893 = vmatpush1.msra.mxu0 0.0
  %894 = vmatprep.subr.mxu0 0.0
  %895 = vmatpush1.msra.mxu0 0.0
  %896 = vmatprep.subr.mxu0 0.0
  %897 = vmatpush1.msra.mxu0 0.0
  %898 = vmatprep.subr.mxu0 0.0
  %899 = vmatpush1.msra.mxu0 0.0
  %900 = vmatprep.subr.mxu0 0.0
  %901 = vmatpush1.msra.mxu0 0.0
  %902 = vmatprep.subr.mxu0 0.0
  %903 = vmatpush1.msra.mxu0 0.0
  %904 = vmatprep.subr.mxu0 0.0
  %905 = vmatpush1.msra.mxu0 0.0
  %906 = vmatprep.subr.mxu0 0.0
  %907 = vmatpush1.msra.mxu0 0.0
  %908 = vmatprep.subr.mxu0 0.0
  %909 = vmatpush1.msra.mxu0 0.0
  %910 = vmatprep.subr.mxu0 0.0
  %911 = vmatpush1.msra.mxu0 0.0
  %912 = vmatprep.subr.mxu0 0.0
  %913 = vmatpush1.msra.mxu0 0.0
  %914 = vmatprep.subr.mxu0 0.0
  %915 = vmatpush1.msra.mxu0 0.0
  %916 = vmatprep.subr.mxu0 0.0
  %917 = vmatpush1.msra.mxu0 0.0
  %918 = vmatprep.subr.mxu0 0.0
  %919 = vmatpush1.msra.mxu0 0.0
  %920 = vmatprep.subr.mxu0 0.0
  %921 = vmatpush1.msra.mxu0 0.0
  %922 = vmatprep.subr.mxu0 0.0
  %923 = vmatpush1.msra.mxu0 0.0
  %924 = vmatprep.mubr.f32.mxu0 0.0
  %925 = vmatmul.mubr.f32.gmra.mrb[0].mxu0 %v805
  %v926 = vpop.f32.mrb[0].mxu0
  %v927 = vadd.f32 %v366, %v926
  %v928 = vpop.f32.mrb[0].mxu0
  %v929 = vadd.f32 %v370, %v928
  %930 = vdwg.mxu0
  %931 = vmatprep.subr.mxu0 0.0
  %932 = vmatpush1.msra.mxu0 %v814
  %933 = vmatprep.subr.mxu0 0.0
  %934 = vmatpush1.msra.mxu0 %v817
  %935 = vmatprep.subr.mxu0 0.0
  %936 = vmatpush1.msra.mxu0 %v820
  %937 = vmatprep.subr.mxu0 0.0
  %938 = vmatpush1.msra.mxu0 %v823
  %939 = vmatprep.subr.mxu0 0.0
  %940 = vmatpush1.msra.mxu0 %v826
  %941 = vmatprep.subr.mxu0 0.0
  %942 = vmatpush1.msra.mxu0 %v829
  %943 = vmatprep.subr.mxu0 0.0
  %944 = vmatpush1.msra.mxu0 %v832
  %945 = vmatprep.subr.mxu0 0.0
  %946 = vmatpush1.msra.mxu0 %v835
  %947 = vmatprep.subr.mxu0 0.0
  %948 = vmatpush1.msra.mxu0 %v838
  %949 = vmatprep.subr.mxu0 0.0
  %950 = vmatpush1.msra.mxu0 %v841
  %951 = vmatprep.subr.mxu0 0.0
  %952 = vmatpush1.msra.mxu0 %v844
  %953 = vmatprep.subr.mxu0 0.0
  %954 = vmatpush1.msra.mxu0 %v847
  %955 = vmatprep.subr.mxu0 0.0
  %956 = vmatpush1.msra.mxu0 %v850
  %957 = vmatprep.subr.mxu0 0.0
  %958 = vmatpush1.msra.mxu0 %v853
  %959 = vmatprep.subr.mxu0 0.0
  %960 = vmatpush1.msra.mxu0 %v856
  %961 = vmatprep.subr.mxu0 0.0
  %962 = vmatpush1.msra.mxu0 %v859
  %963 = vmatprep.subr.mxu0 0.0
  %964 = vmatpush1.msra.mxu0 0.0
  %965 = vmatprep.subr.mxu0 0.0
  %966 = vmatpush1.msra.mxu0 0.0
  %967 = vmatprep.subr.mxu0 0.0
  %968 = vmatpush1.msra.mxu0 0.0
  %969 = vmatprep.subr.mxu0 0.0
  %970 = vmatpush1.msra.mxu0 0.0
  %971 = vmatprep.subr.mxu0 0.0
  %972 = vmatpush1.msra.mxu0 0.0
  %973 = vmatprep.subr.mxu0 0.0
  %974 = vmatpush1.msra.mxu0 0.0
  %975 = vmatprep.subr.mxu0 0.0
  %976 = vmatpush1.msra.mxu0 0.0
  %977 = vmatprep.subr.mxu0 0.0
  %978 = vmatpush1.msra.mxu0 0.0
  %979 = vmatprep.subr.mxu0 0.0
  %980 = vmatpush1.msra.mxu0 0.0
  %981 = vmatprep.subr.mxu0 0.0
  %982 = vmatpush1.msra.mxu0 0.0
  %983 = vmatprep.subr.mxu0 0.0
  %984 = vmatpush1.msra.mxu0 0.0
  %985 = vmatprep.subr.mxu0 0.0
  %986 = vmatpush1.msra.mxu0 0.0
  %987 = vmatprep.subr.mxu0 0.0
  %988 = vmatpush1.msra.mxu0 0.0
  %989 = vmatprep.subr.mxu0 0.0
  %990 = vmatpush1.msra.mxu0 0.0
  %991 = vmatprep.subr.mxu0 0.0
  %992 = vmatpush1.msra.mxu0 0.0
  %993 = vmatprep.subr.mxu0 0.0
  %994 = vmatpush1.msra.mxu0 0.0
  %995 = vmatprep.mubr.f32.mxu0 0.0
  %996 = vmatmul.mubr.f32.gmra.mrb[0].mxu0 %v805
  %v997 = vpop.f32.mrb[0].mxu0
  %v998 = vadd.f32 %v374, %v997
  %v999 = vpop.f32.mrb[0].mxu0
  %1000 = vdwg.mxu0
  %v1001 = vadd.f32 %v809, %v927
  %v1002 = vxor.u32 %v1001, 2147483648
  %v1003 = vmul.f32 %v1002, 1.442695
  %v1004 = vpow.pop %v1003
  %v1005 = vadd.f32 %v1004, 1.0
  %v1006 = vrcp.pop %v1005
  %v1007 = vmul.f32 1.0, %v1006
  %v1008 = vadd.f32 %v810, %v929
  %v1009 = vxor.u32 %v1008, 2147483648
  %v1010 = vmul.f32 %v1009, 1.442695
  %v1011 = vpow.pop %v1010
  %v1012 = vadd.f32 %v1011, 1.0
  %v1013 = vrcp.pop %v1012
  %v1014 = vmul.f32 1.0, %v1013
  %v1015 = vmul.f32 %v1007, %v998
  %v1016 = vadd.f32 %v811, %v1015
  %v1017 = vtanh.pop %v1016
  %v1018 = vsub.f32 1.0, %v1014
  %v1019 = vmul.f32 %v1018, %v1017
  %v1020 = vmul.f32 %v1014, %v805
  %v1021 = vadd.f32 %v1019, %v1020
  %s1022 = scalar_lea.vmem [#allocation2], 16
  %1023 = vst [vmem:[%s1022] sm:$0xff] %v1021
  %s1024 = scalar_lea.vmem [#allocation4], 72
  %v1025 = vld [vmem:[%s1024] sm:$0xff]
  %v1026 = vld [vmem:[%s1024 + $0x8] sm:$0xff]
  %v1027 = vld [vmem:[%s1024 + $0x10] sm:$0xff]
  %v1028 = vld [vmem:[%s2] sm:$0xff]
  %v1029 = vld [vmem:[%s2 + $0x8] sm:$0xff]
  %v1030 = vld [vmem:[%s2 + $0x10] sm:$0xff]
  %v1031 = vld [vmem:[%s2 + $0x18] sm:$0xff]
  %v1032 = vld [vmem:[%s2 + $0x20] sm:$0xff]
  %v1033 = vld [vmem:[%s2 + $0x28] sm:$0xff]
  %v1034 = vld [vmem:[%s2 + $0x30] sm:$0xff]
  %v1035 = vld [vmem:[%s2 + $0x38] sm:$0xff]
  %v1036 = vld [vmem:[%s2 + $0x40] sm:$0xff]
  %v1037 = vld [vmem:[%s2 + $0x48] sm:$0xff]
  %v1038 = vld [vmem:[%s2 + $0x50] sm:$0xff]
  %v1039 = vld [vmem:[%s2 + $0x58] sm:$0xff]
  %v1040 = vld [vmem:[%s2 + $0x60] sm:$0xff]
  %v1041 = vld [vmem:[%s2 + $0x68] sm:$0xff]
  %v1042 = vld [vmem:[%s2 + $0x70] sm:$0xff]
  %v1043 = vld [vmem:[%s2 + $0x78] sm:$0xff]
  %v1044 = vld [vmem:[%s2 + $0x80] sm:$0xff]
  %v1045 = vld [vmem:[%s2 + $0x88] sm:$0xff]
  %v1046 = vld [vmem:[%s2 + $0x90] sm:$0xff]
  %v1047 = vld [vmem:[%s2 + $0x98] sm:$0xff]
  %v1048 = vld [vmem:[%s2 + $0xa0] sm:$0xff]
  %v1049 = vld [vmem:[%s2 + $0xa8] sm:$0xff]
  %v1050 = vld [vmem:[%s2 + $0xb0] sm:$0xff]
  %v1051 = vld [vmem:[%s2 + $0xb8] sm:$0xff]
  %v1052 = vld [vmem:[%s2 + $0xc0] sm:$0xff]
  %v1053 = vld [vmem:[%s2 + $0xc8] sm:$0xff]
  %v1054 = vld [vmem:[%s2 + $0xd0] sm:$0xff]
  %v1055 = vld [vmem:[%s2 + $0xd8] sm:$0xff]
  %v1056 = vld [vmem:[%s2 + $0xe0] sm:$0xff]
  %v1057 = vld [vmem:[%s2 + $0xe8] sm:$0xff]
  %v1058 = vld [vmem:[%s2 + $0xf0] sm:$0xff]
  %v1059 = vld [vmem:[%s2 + $0xf8] sm:$0xff]
  %v1060 = vld [vmem:[%s2 + $0x100] sm:$0xff]
  %v1061 = vld [vmem:[%s2 + $0x108] sm:$0xff]
  %v1062 = vld [vmem:[%s2 + $0x110] sm:$0xff]
  %v1063 = vld [vmem:[%s2 + $0x118] sm:$0xff]
  %v1064 = vld [vmem:[%s2 + $0x120] sm:$0xff]
  %v1065 = vld [vmem:[%s2 + $0x128] sm:$0xff]
  %v1066 = vld [vmem:[%s2 + $0x130] sm:$0xff]
  %v1067 = vld [vmem:[%s2 + $0x138] sm:$0xff]
  %v1068 = vld [vmem:[%s2 + $0x140] sm:$0xff]
  %v1069 = vld [vmem:[%s2 + $0x148] sm:$0xff]
  %v1070 = vld [vmem:[%s2 + $0x150] sm:$0xff]
  %v1071 = vld [vmem:[%s2 + $0x158] sm:$0xff]
  %v1072 = vld [vmem:[%s2 + $0x160] sm:$0xff]
  %v1073 = vld [vmem:[%s2 + $0x168] sm:$0xff]
  %v1074 = vld [vmem:[%s2 + $0x170] sm:$0xff]
  %v1075 = vld [vmem:[%s2 + $0x178] sm:$0xff]
  %1076 = vmatprep.subr.mxu0 %v1029
  %1077 = vmatpush1.msra.mxu0 %v1028
  %1078 = vmatprep.subr.mxu0 %v1032
  %1079 = vmatpush1.msra.mxu0 %v1031
  %1080 = vmatprep.subr.mxu0 %v1035
  %1081 = vmatpush1.msra.mxu0 %v1034
  %1082 = vmatprep.subr.mxu0 %v1038
  %1083 = vmatpush1.msra.mxu0 %v1037
  %1084 = vmatprep.subr.mxu0 %v1041
  %1085 = vmatpush1.msra.mxu0 %v1040
  %1086 = vmatprep.subr.mxu0 %v1044
  %1087 = vmatpush1.msra.mxu0 %v1043
  %1088 = vmatprep.subr.mxu0 %v1047
  %1089 = vmatpush1.msra.mxu0 %v1046
  %1090 = vmatprep.subr.mxu0 %v1050
  %1091 = vmatpush1.msra.mxu0 %v1049
  %1092 = vmatprep.subr.mxu0 %v1053
  %1093 = vmatpush1.msra.mxu0 %v1052
  %1094 = vmatprep.subr.mxu0 %v1056
  %1095 = vmatpush1.msra.mxu0 %v1055
  %1096 = vmatprep.subr.mxu0 %v1059
  %1097 = vmatpush1.msra.mxu0 %v1058
  %1098 = vmatprep.subr.mxu0 %v1062
  %1099 = vmatpush1.msra.mxu0 %v1061
  %1100 = vmatprep.subr.mxu0 %v1065
  %1101 = vmatpush1.msra.mxu0 %v1064
  %1102 = vmatprep.subr.mxu0 %v1068
  %1103 = vmatpush1.msra.mxu0 %v1067
  %1104 = vmatprep.subr.mxu0 %v1071
  %1105 = vmatpush1.msra.mxu0 %v1070
  %1106 = vmatprep.subr.mxu0 %v1074
  %1107 = vmatpush1.msra.mxu0 %v1073
  %1108 = vmatprep.subr.mxu0 0.0
  %1109 = vmatpush1.msra.mxu0 0.0
  %1110 = vmatprep.subr.mxu0 0.0
  %1111 = vmatpush1.msra.mxu0 0.0
  %1112 = vmatprep.subr.mxu0 0.0
  %1113 = vmatpush1.msra.mxu0 0.0
  %1114 = vmatprep.subr.mxu0 0.0
  %1115 = vmatpush1.msra.mxu0 0.0
  %1116 = vmatprep.subr.mxu0 0.0
  %1117 = vmatpush1.msra.mxu0 0.0
  %1118 = vmatprep.subr.mxu0 0.0
  %1119 = vmatpush1.msra.mxu0 0.0
  %1120 = vmatprep.subr.mxu0 0.0
  %1121 = vmatpush1.msra.mxu0 0.0
  %1122 = vmatprep.subr.mxu0 0.0
  %1123 = vmatpush1.msra.mxu0 0.0
  %1124 = vmatprep.subr.mxu0 0.0
  %1125 = vmatpush1.msra.mxu0 0.0
  %1126 = vmatprep.subr.mxu0 0.0
  %1127 = vmatpush1.msra.mxu0 0.0
  %1128 = vmatprep.subr.mxu0 0.0
  %1129 = vmatpush1.msra.mxu0 0.0
  %1130 = vmatprep.subr.mxu0 0.0
  %1131 = vmatpush1.msra.mxu0 0.0
  %1132 = vmatprep.subr.mxu0 0.0
  %1133 = vmatpush1.msra.mxu0 0.0
  %1134 = vmatprep.subr.mxu0 0.0
  %1135 = vmatpush1.msra.mxu0 0.0
  %1136 = vmatprep.subr.mxu0 0.0
  %1137 = vmatpush1.msra.mxu0 0.0
  %1138 = vmatprep.subr.mxu0 0.0
  %1139 = vmatpush1.msra.mxu0 0.0
  %1140 = vmatprep.mubr.f32.mxu0 0.0
  %1141 = vmatmul.mubr.f32.gmra.mrb[0].mxu0 %v1021
  %v1142 = vpop.f32.mrb[0].mxu0
  %v1143 = vadd.f32 %v366, %v1142
  %v1144 = vpop.f32.mrb[0].mxu0
  %v1145 = vadd.f32 %v370, %v1144
  %1146 = vdwg.mxu0
  %1147 = vmatprep.subr.mxu0 0.0
  %1148 = vmatpush1.msra.mxu0 %v1030
  %1149 = vmatprep.subr.mxu0 0.0
  %1150 = vmatpush1.msra.mxu0 %v1033
  %1151 = vmatprep.subr.mxu0 0.0
  %1152 = vmatpush1.msra.mxu0 %v1036
  %1153 = vmatprep.subr.mxu0 0.0
  %1154 = vmatpush1.msra.mxu0 %v1039
  %1155 = vmatprep.subr.mxu0 0.0
  %1156 = vmatpush1.msra.mxu0 %v1042
  %1157 = vmatprep.subr.mxu0 0.0
  %1158 = vmatpush1.msra.mxu0 %v1045
  %1159 = vmatprep.subr.mxu0 0.0
  %1160 = vmatpush1.msra.mxu0 %v1048
  %1161 = vmatprep.subr.mxu0 0.0
  %1162 = vmatpush1.msra.mxu0 %v1051
  %1163 = vmatprep.subr.mxu0 0.0
  %1164 = vmatpush1.msra.mxu0 %v1054
  %1165 = vmatprep.subr.mxu0 0.0
  %1166 = vmatpush1.msra.mxu0 %v1057
  %1167 = vmatprep.subr.mxu0 0.0
  %1168 = vmatpush1.msra.mxu0 %v1060
  %1169 = vmatprep.subr.mxu0 0.0
  %1170 = vmatpush1.msra.mxu0 %v1063
  %1171 = vmatprep.subr.mxu0 0.0
  %1172 = vmatpush1.msra.mxu0 %v1066
  %1173 = vmatprep.subr.mxu0 0.0
  %1174 = vmatpush1.msra.mxu0 %v1069
  %1175 = vmatprep.subr.mxu0 0.0
  %1176 = vmatpush1.msra.mxu0 %v1072
  %1177 = vmatprep.subr.mxu0 0.0
  %1178 = vmatpush1.msra.mxu0 %v1075
  %1179 = vmatprep.subr.mxu0 0.0
  %1180 = vmatpush1.msra.mxu0 0.0
  %1181 = vmatprep.subr.mxu0 0.0
  %1182 = vmatpush1.msra.mxu0 0.0
  %1183 = vmatprep.subr.mxu0 0.0
  %1184 = vmatpush1.msra.mxu0 0.0
  %1185 = vmatprep.subr.mxu0 0.0
  %1186 = vmatpush1.msra.mxu0 0.0
  %1187 = vmatprep.subr.mxu0 0.0
  %1188 = vmatpush1.msra.mxu0 0.0
  %1189 = vmatprep.subr.mxu0 0.0
  %1190 = vmatpush1.msra.mxu0 0.0
  %1191 = vmatprep.subr.mxu0 0.0
  %1192 = vmatpush1.msra.mxu0 0.0
  %1193 = vmatprep.subr.mxu0 0.0
  %1194 = vmatpush1.msra.mxu0 0.0
  %1195 = vmatprep.subr.mxu0 0.0
  %1196 = vmatpush1.msra.mxu0 0.0
  %1197 = vmatprep.subr.mxu0 0.0
  %1198 = vmatpush1.msra.mxu0 0.0
  %1199 = vmatprep.subr.mxu0 0.0
  %1200 = vmatpush1.msra.mxu0 0.0
  %1201 = vmatprep.subr.mxu0 0.0
  %1202 = vmatpush1.msra.mxu0 0.0
  %1203 = vmatprep.subr.mxu0 0.0
  %1204 = vmatpush1.msra.mxu0 0.0
  %1205 = vmatprep.subr.mxu0 0.0
  %1206 = vmatpush1.msra.mxu0 0.0
  %1207 = vmatprep.subr.mxu0 0.0
  %1208 = vmatpush1.msra.mxu0 0.0
  %1209 = vmatprep.subr.mxu0 0.0
  %1210 = vmatpush1.msra.mxu0 0.0
  %1211 = vmatprep.mubr.f32.mxu0 0.0
  %1212 = vmatmul.mubr.f32.gmra.mrb[0].mxu0 %v1021
  %v1213 = vpop.f32.mrb[0].mxu0
  %v1214 = vadd.f32 %v374, %v1213
  %v1215 = vpop.f32.mrb[0].mxu0
  %1216 = vdwg.mxu0
  %v1217 = vadd.f32 %v1025, %v1143
  %v1218 = vxor.u32 %v1217, 2147483648
  %v1219 = vmul.f32 %v1218, 1.442695
  %v1220 = vpow.pop %v1219
  %v1221 = vadd.f32 %v1220, 1.0
  %v1222 = vrcp.pop %v1221
  %v1223 = vmul.f32 1.0, %v1222
  %v1224 = vadd.f32 %v1026, %v1145
  %v1225 = vxor.u32 %v1224, 2147483648
  %v1226 = vmul.f32 %v1225, 1.442695
  %v1227 = vpow.pop %v1226
  %v1228 = vadd.f32 %v1227, 1.0
  %v1229 = vrcp.pop %v1228
  %v1230 = vmul.f32 1.0, %v1229
  %v1231 = vmul.f32 %v1223, %v1214
  %v1232 = vadd.f32 %v1027, %v1231
  %v1233 = vtanh.pop %v1232
  %v1234 = vsub.f32 1.0, %v1230
  %v1235 = vmul.f32 %v1234, %v1233
  %v1236 = vmul.f32 %v1230, %v1021
  %v1237 = vadd.f32 %v1235, %v1236
  %s1238 = scalar_lea.vmem [#allocation2], 24
  %1239 = vst [vmem:[%s1238] sm:$0xff] %v1237
  %s1240 = scalar_lea.vmem [#allocation4], 96
  %v1241 = vld [vmem:[%s1240] sm:$0xff]
  %v1242 = vld [vmem:[%s1240 + $0x8] sm:$0xff]
  %v1243 = vld [vmem:[%s1240 + $0x10] sm:$0xff]
  %v1244 = vld [vmem:[%s2] sm:$0xff]
  %v1245 = vld [vmem:[%s2 + $0x8] sm:$0xff]
  %v1246 = vld [vmem:[%s2 + $0x10] sm:$0xff]
  %v1247 = vld [vmem:[%s2 + $0x18] sm:$0xff]
  %v1248 = vld [vmem:[%s2 + $0x20] sm:$0xff]
  %v1249 = vld [vmem:[%s2 + $0x28] sm:$0xff]
  %v1250 = vld [vmem:[%s2 + $0x30] sm:$0xff]
  %v1251 = vld [vmem:[%s2 + $0x38] sm:$0xff]
  %v1252 = vld [vmem:[%s2 + $0x40] sm:$0xff]
  %v1253 = vld [vmem:[%s2 + $0x48] sm:$0xff]
  %v1254 = vld [vmem:[%s2 + $0x50] sm:$0xff]
  %v1255 = vld [vmem:[%s2 + $0x58] sm:$0xff]
  %v1256 = vld [vmem:[%s2 + $0x60] sm:$0xff]
  %v1257 = vld [vmem:[%s2 + $0x68] sm:$0xff]
  %v1258 = vld [vmem:[%s2 + $0x70] sm:$0xff]
  %v1259 = vld [vmem:[%s2 + $0x78] sm:$0xff]
  %v1260 = vld [vmem:[%s2 + $0x80] sm:$0xff]
  %v1261 = vld [vmem:[%s2 + $0x88] sm:$0xff]
  %v1262 = vld [vmem:[%s2 + $0x90] sm:$0xff]
  %v1263 = vld [vmem:[%s2 + $0x98] sm:$0xff]
  %v1264 = vld [vmem:[%s2 + $0xa0] sm:$0xff]
  %v1265 = vld [vmem:[%s2 + $0xa8] sm:$0xff]
  %v1266 = vld [vmem:[%s2 + $0xb0] sm:$0xff]
  %v1267 = vld [vmem:[%s2 + $0xb8] sm:$0xff]
  %v1268 = vld [vmem:[%s2 + $0xc0] sm:$0xff]
  %v1269 = vld [vmem:[%s2 + $0xc8] sm:$0xff]
  %v1270 = vld [vmem:[%s2 + $0xd0] sm:$0xff]
  %v1271 = vld [vmem:[%s2 + $0xd8] sm:$0xff]
  %v1272 = vld [vmem:[%s2 + $0xe0] sm:$0xff]
  %v1273 = vld [vmem:[%s2 + $0xe8] sm:$0xff]
  %v1274 = vld [vmem:[%s2 + $0xf0] sm:$0xff]
  %v1275 = vld [vmem:[%s2 + $0xf8] sm:$0xff]
  %v1276 = vld [vmem:[%s2 + $0x100] sm:$0xff]
  %v1277 = vld [vmem:[%s2 + $0x108] sm:$0xff]
  %v1278 = vld [vmem:[%s2 + $0x110] sm:$0xff]
  %v1279 = vld [vmem:[%s2 + $0x118] sm:$0xff]
  %v1280 = vld [vmem:[%s2 + $0x120] sm:$0xff]
  %v1281 = vld [vmem:[%s2 + $0x128] sm:$0xff]
  %v1282 = vld [vmem:[%s2 + $0x130] sm:$0xff]
  %v1283 = vld [vmem:[%s2 + $0x138] sm:$0xff]
  %v1284 = vld [vmem:[%s2 + $0x140] sm:$0xff]
  %v1285 = vld [vmem:[%s2 + $0x148] sm:$0xff]
  %v1286 = vld [vmem:[%s2 + $0x150] sm:$0xff]
  %v1287 = vld [vmem:[%s2 + $0x158] sm:$0xff]
  %v1288 = vld [vmem:[%s2 + $0x160] sm:$0xff]
  %v1289 = vld [vmem:[%s2 + $0x168] sm:$0xff]
  %v1290 = vld [vmem:[%s2 + $0x170] sm:$0xff]
  %v1291 = vld [vmem:[%s2 + $0x178] sm:$0xff]
  %1292 = vmatprep.subr.mxu0 %v1245
  %1293 = vmatpush1.msra.mxu0 %v1244
  %1294 = vmatprep.subr.mxu0 %v1248
  %1295 = vmatpush1.msra.mxu0 %v1247
  %1296 = vmatprep.subr.mxu0 %v1251
  %1297 = vmatpush1.msra.mxu0 %v1250
  %1298 = vmatprep.subr.mxu0 %v1254
  %1299 = vmatpush1.msra.mxu0 %v1253
  %1300 = vmatprep.subr.mxu0 %v1257
  %1301 = vmatpush1.msra.mxu0 %v1256
  %1302 = vmatprep.subr.mxu0 %v1260
  %1303 = vmatpush1.msra.mxu0 %v1259
  %1304 = vmatprep.subr.mxu0 %v1263
  %1305 = vmatpush1.msra.mxu0 %v1262
  %1306 = vmatprep.subr.mxu0 %v1266
  %1307 = vmatpush1.msra.mxu0 %v1265
  %1308 = vmatprep.subr.mxu0 %v1269
  %1309 = vmatpush1.msra.mxu0 %v1268
  %1310 = vmatprep.subr.mxu0 %v1272
  %1311 = vmatpush1.msra.mxu0 %v1271
  %1312 = vmatprep.subr.mxu0 %v1275
  %1313 = vmatpush1.msra.mxu0 %v1274
  %1314 = vmatprep.subr.mxu0 %v1278
  %1315 = vmatpush1.msra.mxu0 %v1277
  %1316 = vmatprep.subr.mxu0 %v1281
  %1317 = vmatpush1.msra.mxu0 %v1280
  %1318 = vmatprep.subr.mxu0 %v1284
  %1319 = vmatpush1.msra.mxu0 %v1283
  %1320 = vmatprep.subr.mxu0 %v1287
  %1321 = vmatpush1.msra.mxu0 %v1286
  %1322 = vmatprep.subr.mxu0 %v1290
  %1323 = vmatpush1.msra.mxu0 %v1289
  %1324 = vmatprep.subr.mxu0 0.0
  %1325 = vmatpush1.msra.mxu0 0.0
  %1326 = vmatprep.subr.mxu0 0.0
  %1327 = vmatpush1.msra.mxu0 0.0
  %1328 = vmatprep.subr.mxu0 0.0
  %1329 = vmatpush1.msra.mxu0 0.0
  %1330 = vmatprep.subr.mxu0 0.0
  %1331 = vmatpush1.msra.mxu0 0.0
  %1332 = vmatprep.subr.mxu0 0.0
  %1333 = vmatpush1.msra.mxu0 0.0
  %1334 = vmatprep.subr.mxu0 0.0
  %1335 = vmatpush1.msra.mxu0 0.0
  %1336 = vmatprep.subr.mxu0 0.0
  %1337 = vmatpush1.msra.mxu0 0.0
  %1338 = vmatprep.subr.mxu0 0.0
  %1339 = vmatpush1.msra.mxu0 0.0
  %1340 = vmatprep.subr.mxu0 0.0
  %1341 = vmatpush1.msra.mxu0 0.0
  %1342 = vmatprep.subr.mxu0 0.0
  %1343 = vmatpush1.msra.mxu0 0.0
  %1344 = vmatprep.subr.mxu0 0.0
  %1345 = vmatpush1.msra.mxu0 0.0
  %1346 = vmatprep.subr.mxu0 0.0
  %1347 = vmatpush1.msra.mxu0 0.0
  %1348 = vmatprep.subr.mxu0 0.0
  %1349 = vmatpush1.msra.mxu0 0.0
  %1350 = vmatprep.subr.mxu0 0.0
  %1351 = vmatpush1.msra.mxu0 0.0
  %1352 = vmatprep.subr.mxu0 0.0
  %1353 = vmatpush1.msra.mxu0 0.0
  %1354 = vmatprep.subr.mxu0 0.0
  %1355 = vmatpush1.msra.mxu0 0.0
  %1356 = vmatprep.mubr.f32.mxu0 0.0
  %1357 = vmatmul.mubr.f32.gmra.mrb[0].mxu0 %v1237
  %v1358 = vpop.f32.mrb[0].mxu0
  %v1359 = vadd.f32 %v366, %v1358
  %v1360 = vpop.f32.mrb[0].mxu0
  %v1361 = vadd.f32 %v370, %v1360
  %1362 = vdwg.mxu0
  %1363 = vmatprep.subr.mxu0 0.0
  %1364 = vmatpush1.msra.mxu0 %v1246
  %1365 = vmatprep.subr.mxu0 0.0
  %1366 = vmatpush1.msra.mxu0 %v1249
  %1367 = vmatprep.subr.mxu0 0.0
  %1368 = vmatpush1.msra.mxu0 %v1252
  %1369 = vmatprep.subr.mxu0 0.0
  %1370 = vmatpush1.msra.mxu0 %v1255
  %1371 = vmatprep.subr.mxu0 0.0
  %1372 = vmatpush1.msra.mxu0 %v1258
  %1373 = vmatprep.subr.mxu0 0.0
  %1374 = vmatpush1.msra.mxu0 %v1261
  %1375 = vmatprep.subr.mxu0 0.0
  %1376 = vmatpush1.msra.mxu0 %v1264
  %1377 = vmatprep.subr.mxu0 0.0
  %1378 = vmatpush1.msra.mxu0 %v1267
  %1379 = vmatprep.subr.mxu0 0.0
  %1380 = vmatpush1.msra.mxu0 %v1270
  %1381 = vmatprep.subr.mxu0 0.0
  %1382 = vmatpush1.msra.mxu0 %v1273
  %1383 = vmatprep.subr.mxu0 0.0
  %1384 = vmatpush1.msra.mxu0 %v1276
  %1385 = vmatprep.subr.mxu0 0.0
  %1386 = vmatpush1.msra.mxu0 %v1279
  %1387 = vmatprep.subr.mxu0 0.0
  %1388 = vmatpush1.msra.mxu0 %v1282
  %1389 = vmatprep.subr.mxu0 0.0
  %1390 = vmatpush1.msra.mxu0 %v1285
  %1391 = vmatprep.subr.mxu0 0.0
  %1392 = vmatpush1.msra.mxu0 %v1288
  %1393 = vmatprep.subr.mxu0 0.0
  %1394 = vmatpush1.msra.mxu0 %v1291
  %1395 = vmatprep.subr.mxu0 0.0
  %1396 = vmatpush1.msra.mxu0 0.0
  %1397 = vmatprep.subr.mxu0 0.0
  %1398 = vmatpush1.msra.mxu0 0.0
  %1399 = vmatprep.subr.mxu0 0.0
  %1400 = vmatpush1.msra.mxu0 0.0
  %1401 = vmatprep.subr.mxu0 0.0
  %1402 = vmatpush1.msra.mxu0 0.0
  %1403 = vmatprep.subr.mxu0 0.0
  %1404 = vmatpush1.msra.mxu0 0.0
  %1405 = vmatprep.subr.mxu0 0.0
  %1406 = vmatpush1.msra.mxu0 0.0
  %1407 = vmatprep.subr.mxu0 0.0
  %1408 = vmatpush1.msra.mxu0 0.0
  %1409 = vmatprep.subr.mxu0 0.0
  %1410 = vmatpush1.msra.mxu0 0.0
  %1411 = vmatprep.subr.mxu0 0.0
  %1412 = vmatpush1.msra.mxu0 0.0
  %1413 = vmatprep.subr.mxu0 0.0
  %1414 = vmatpush1.msra.mxu0 0.0
  %1415 = vmatprep.subr.mxu0 0.0
  %1416 = vmatpush1.msra.mxu0 0.0
  %1417 = vmatprep.subr.mxu0 0.0
  %1418 = vmatpush1.msra.mxu0 0.0
  %1419 = vmatprep.subr.mxu0 0.0
  %1420 = vmatpush1.msra.mxu0 0.0
  %1421 = vmatprep.subr.mxu0 0.0
  %1422 = vmatpush1.msra.mxu0 0.0
  %1423 = vmatprep.subr.mxu0 0.0
  %1424 = vmatpush1.msra.mxu0 0.0
  %1425 = vmatprep.subr.mxu0 0.0
  %1426 = vmatpush1.msra.mxu0 0.0
  %1427 = vmatprep.mubr.f32.mxu0 0.0
  %1428 = vmatmul.mubr.f32.gmra.mrb[0].mxu0 %v1237
  %v1429 = vpop.f32.mrb[0].mxu0
  %v1430 = vadd.f32 %v374, %v1429
  %v1431 = vpop.f32.mrb[0].mxu0
  %1432 = vdwg.mxu0
  %v1433 = vadd.f32 %v1241, %v1359
  %v1434 = vxor.u32 %v1433, 2147483648
  %v1435 = vmul.f32 %v1434, 1.442695
  %v1436 = vpow.pop %v1435
  %v1437 = vadd.f32 %v1436, 1.0
  %v1438 = vrcp.pop %v1437
  %v1439 = vmul.f32 1.0, %v1438
  %v1440 = vadd.f32 %v1242, %v1361
  %v1441 = vxor.u32 %v1440, 2147483648
  %v1442 = vmul.f32 %v1441, 1.442695
  %v1443 = vpow.pop %v1442
  %v1444 = vadd.f32 %v1443, 1.0
  %v1445 = vrcp.pop %v1444
  %v1446 = vmul.f32 1.0, %v1445
  %v1447 = vmul.f32 %v1439, %v1430
  %v1448 = vadd.f32 %v1243, %v1447
  %v1449 = vtanh.pop %v1448
  %v1450 = vsub.f32 1.0, %v1446
  %v1451 = vmul.f32 %v1450, %v1449
  %v1452 = vmul.f32 %v1446, %v1237
  %v1453 = vadd.f32 %v1451, %v1452
  %s1454 = scalar_lea.vmem [#allocation2], 32
  %1455 = vst [vmem:[%s1454] sm:$0xff] %v1453
  %s1456 = scalar_lea.vmem [#allocation4], 120
  %v1457 = vld [vmem:[%s1456] sm:$0xff]
  %v1458 = vld [vmem:[%s1456 + $0x8] sm:$0xff]
  %v1459 = vld [vmem:[%s1456 + $0x10] sm:$0xff]
  %v1460 = vld [vmem:[%s2] sm:$0xff]
  %v1461 = vld [vmem:[%s2 + $0x8] sm:$0xff]
  %v1462 = vld [vmem:[%s2 + $0x10] sm:$0xff]
  %v1463 = vld [vmem:[%s2 + $0x18] sm:$0xff]
  %v1464 = vld [vmem:[%s2 + $0x20] sm:$0xff]
  %v1465 = vld [vmem:[%s2 + $0x28] sm:$0xff]
  %v1466 = vld [vmem:[%s2 + $0x30] sm:$0xff]
  %v1467 = vld [vmem:[%s2 + $0x38] sm:$0xff]
  %v1468 = vld [vmem:[%s2 + $0x40] sm:$0xff]
  %v1469 = vld [vmem:[%s2 + $0x48] sm:$0xff]
  %v1470 = vld [vmem:[%s2 + $0x50] sm:$0xff]
  %v1471 = vld [vmem:[%s2 + $0x58] sm:$0xff]
  %v1472 = vld [vmem:[%s2 + $0x60] sm:$0xff]
  %v1473 = vld [vmem:[%s2 + $0x68] sm:$0xff]
  %v1474 = vld [vmem:[%s2 + $0x70] sm:$0xff]
  %v1475 = vld [vmem:[%s2 + $0x78] sm:$0xff]
  %v1476 = vld [vmem:[%s2 + $0x80] sm:$0xff]
  %v1477 = vld [vmem:[%s2 + $0x88] sm:$0xff]
  %v1478 = vld [vmem:[%s2 + $0x90] sm:$0xff]
  %v1479 = vld [vmem:[%s2 + $0x98] sm:$0xff]
  %v1480 = vld [vmem:[%s2 + $0xa0] sm:$0xff]
  %v1481 = vld [vmem:[%s2 + $0xa8] sm:$0xff]
  %v1482 = vld [vmem:[%s2 + $0xb0] sm:$0xff]
  %v1483 = vld [vmem:[%s2 + $0xb8] sm:$0xff]
  %v1484 = vld [vmem:[%s2 + $0xc0] sm:$0xff]
  %v1485 = vld [vmem:[%s2 + $0xc8] sm:$0xff]
  %v1486 = vld [vmem:[%s2 + $0xd0] sm:$0xff]
  %v1487 = vld [vmem:[%s2 + $0xd8] sm:$0xff]
  %v1488 = vld [vmem:[%s2 + $0xe0] sm:$0xff]
  %v1489 = vld [vmem:[%s2 + $0xe8] sm:$0xff]
  %v1490 = vld [vmem:[%s2 + $0xf0] sm:$0xff]
  %v1491 = vld [vmem:[%s2 + $0xf8] sm:$0xff]
  %v1492 = vld [vmem:[%s2 + $0x100] sm:$0xff]
  %v1493 = vld [vmem:[%s2 + $0x108] sm:$0xff]
  %v1494 = vld [vmem:[%s2 + $0x110] sm:$0xff]
  %v1495 = vld [vmem:[%s2 + $0x118] sm:$0xff]
  %v1496 = vld [vmem:[%s2 + $0x120] sm:$0xff]
  %v1497 = vld [vmem:[%s2 + $0x128] sm:$0xff]
  %v1498 = vld [vmem:[%s2 + $0x130] sm:$0xff]
  %v1499 = vld [vmem:[%s2 + $0x138] sm:$0xff]
  %v1500 = vld [vmem:[%s2 + $0x140] sm:$0xff]
  %v1501 = vld [vmem:[%s2 + $0x148] sm:$0xff]
  %v1502 = vld [vmem:[%s2 + $0x150] sm:$0xff]
  %v1503 = vld [vmem:[%s2 + $0x158] sm:$0xff]
  %v1504 = vld [vmem:[%s2 + $0x160] sm:$0xff]
  %v1505 = vld [vmem:[%s2 + $0x168] sm:$0xff]
  %v1506 = vld [vmem:[%s2 + $0x170] sm:$0xff]
  %v1507 = vld [vmem:[%s2 + $0x178] sm:$0xff]
  %1508 = vmatprep.subr.mxu0 %v1461
  %1509 = vmatpush1.msra.mxu0 %v1460
  %1510 = vmatprep.subr.mxu0 %v1464
  %1511 = vmatpush1.msra.mxu0 %v1463
  %1512 = vmatprep.subr.mxu0 %v1467
  %1513 = vmatpush1.msra.mxu0 %v1466
  %1514 = vmatprep.subr.mxu0 %v1470
  %1515 = vmatpush1.msra.mxu0 %v1469
  %1516 = vmatprep.subr.mxu0 %v1473
  %1517 = vmatpush1.msra.mxu0 %v1472
  %1518 = vmatprep.subr.mxu0 %v1476
  %1519 = vmatpush1.msra.mxu0 %v1475
  %1520 = vmatprep.subr.mxu0 %v1479
  %1521 = vmatpush1.msra.mxu0 %v1478
  %1522 = vmatprep.subr.mxu0 %v1482
  %1523 = vmatpush1.msra.mxu0 %v1481
  %1524 = vmatprep.subr.mxu0 %v1485
  %1525 = vmatpush1.msra.mxu0 %v1484
  %1526 = vmatprep.subr.mxu0 %v1488
  %1527 = vmatpush1.msra.mxu0 %v1487
  %1528 = vmatprep.subr.mxu0 %v1491
  %1529 = vmatpush1.msra.mxu0 %v1490
  %1530 = vmatprep.subr.mxu0 %v1494
  %1531 = vmatpush1.msra.mxu0 %v1493
  %1532 = vmatprep.subr.mxu0 %v1497
  %1533 = vmatpush1.msra.mxu0 %v1496
  %1534 = vmatprep.subr.mxu0 %v1500
  %1535 = vmatpush1.msra.mxu0 %v1499
  %1536 = vmatprep.subr.mxu0 %v1503
  %1537 = vmatpush1.msra.mxu0 %v1502
  %1538 = vmatprep.subr.mxu0 %v1506
  %1539 = vmatpush1.msra.mxu0 %v1505
  %1540 = vmatprep.subr.mxu0 0.0
  %1541 = vmatpush1.msra.mxu0 0.0
  %1542 = vmatprep.subr.mxu0 0.0
  %1543 = vmatpush1.msra.mxu0 0.0
  %1544 = vmatprep.subr.mxu0 0.0
  %1545 = vmatpush1.msra.mxu0 0.0
  %1546 = vmatprep.subr.mxu0 0.0
  %1547 = vmatpush1.msra.mxu0 0.0
  %1548 = vmatprep.subr.mxu0 0.0
  %1549 = vmatpush1.msra.mxu0 0.0
  %1550 = vmatprep.subr.mxu0 0.0
  %1551 = vmatpush1.msra.mxu0 0.0
  %1552 = vmatprep.subr.mxu0 0.0
  %1553 = vmatpush1.msra.mxu0 0.0
  %1554 = vmatprep.subr.mxu0 0.0
  %1555 = vmatpush1.msra.mxu0 0.0
  %1556 = vmatprep.subr.mxu0 0.0
  %1557 = vmatpush1.msra.mxu0 0.0
  %1558 = vmatprep.subr.mxu0 0.0
  %1559 = vmatpush1.msra.mxu0 0.0
  %1560 = vmatprep.subr.mxu0 0.0
  %1561 = vmatpush1.msra.mxu0 0.0
  %1562 = vmatprep.subr.mxu0 0.0
  %1563 = vmatpush1.msra.mxu0 0.0
  %1564 = vmatprep.subr.mxu0 0.0
  %1565 = vmatpush1.msra.mxu0 0.0
  %1566 = vmatprep.subr.mxu0 0.0
  %1567 = vmatpush1.msra.mxu0 0.0
  %1568 = vmatprep.subr.mxu0 0.0
  %1569 = vmatpush1.msra.mxu0 0.0
  %1570 = vmatprep.subr.mxu0 0.0
  %1571 = vmatpush1.msra.mxu0 0.0
  %1572 = vmatprep.mubr.f32.mxu0 0.0
  %1573 = vmatmul.mubr.f32.gmra.mrb[0].mxu0 %v1453
  %v1574 = vpop.f32.mrb[0].mxu0
  %v1575 = vadd.f32 %v366, %v1574
  %v1576 = vpop.f32.mrb[0].mxu0
  %v1577 = vadd.f32 %v370, %v1576
  %1578 = vdwg.mxu0
  %1579 = vmatprep.subr.mxu0 0.0
  %1580 = vmatpush1.msra.mxu0 %v1462
  %1581 = vmatprep.subr.mxu0 0.0
  %1582 = vmatpush1.msra.mxu0 %v1465
  %1583 = vmatprep.subr.mxu0 0.0
  %1584 = vmatpush1.msra.mxu0 %v1468
  %1585 = vmatprep.subr.mxu0 0.0
  %1586 = vmatpush1.msra.mxu0 %v1471
  %1587 = vmatprep.subr.mxu0 0.0
  %1588 = vmatpush1.msra.mxu0 %v1474
  %1589 = vmatprep.subr.mxu0 0.0
  %1590 = vmatpush1.msra.mxu0 %v1477
  %1591 = vmatprep.subr.mxu0 0.0
  %1592 = vmatpush1.msra.mxu0 %v1480
  %1593 = vmatprep.subr.mxu0 0.0
  %1594 = vmatpush1.msra.mxu0 %v1483
  %1595 = vmatprep.subr.mxu0 0.0
  %1596 = vmatpush1.msra.mxu0 %v1486
  %1597 = vmatprep.subr.mxu0 0.0
  %1598 = vmatpush1.msra.mxu0 %v1489
  %1599 = vmatprep.subr.mxu0 0.0
  %1600 = vmatpush1.msra.mxu0 %v1492
  %1601 = vmatprep.subr.mxu0 0.0
  %1602 = vmatpush1.msra.mxu0 %v1495
  %1603 = vmatprep.subr.mxu0 0.0
  %1604 = vmatpush1.msra.mxu0 %v1498
  %1605 = vmatprep.subr.mxu0 0.0
  %1606 = vmatpush1.msra.mxu0 %v1501
  %1607 = vmatprep.subr.mxu0 0.0
  %1608 = vmatpush1.msra.mxu0 %v1504
  %1609 = vmatprep.subr.mxu0 0.0
  %1610 = vmatpush1.msra.mxu0 %v1507
  %1611 = vmatprep.subr.mxu0 0.0
  %1612 = vmatpush1.msra.mxu0 0.0
  %1613 = vmatprep.subr.mxu0 0.0
  %1614 = vmatpush1.msra.mxu0 0.0
  %1615 = vmatprep.subr.mxu0 0.0
  %1616 = vmatpush1.msra.mxu0 0.0
  %1617 = vmatprep.subr.mxu0 0.0
  %1618 = vmatpush1.msra.mxu0 0.0
  %1619 = vmatprep.subr.mxu0 0.0
  %1620 = vmatpush1.msra.mxu0 0.0
  %1621 = vmatprep.subr.mxu0 0.0
  %1622 = vmatpush1.msra.mxu0 0.0
  %1623 = vmatprep.subr.mxu0 0.0
  %1624 = vmatpush1.msra.mxu0 0.0
  %1625 = vmatprep.subr.mxu0 0.0
  %1626 = vmatpush1.msra.mxu0 0.0
  %1627 = vmatprep.subr.mxu0 0.0
  %1628 = vmatpush1.msra.mxu0 0.0
  %1629 = vmatprep.subr.mxu0 0.0
  %1630 = vmatpush1.msra.mxu0 0.0
  %1631 = vmatprep.subr.mxu0 0.0
  %1632 = vmatpush1.msra.mxu0 0.0
  %1633 = vmatprep.subr.mxu0 0.0
  %1634 = vmatpush1.msra.mxu0 0.0
  %1635 = vmatprep.subr.mxu0 0.0
  %1636 = vmatpush1.msra.mxu0 0.0
  %1637 = vmatprep.subr.mxu0 0.0
  %1638 = vmatpush1.msra.mxu0 0.0
  %1639 = vmatprep.subr.mxu0 0.0
  %1640 = vmatpush1.msra.mxu0 0.0
  %1641 = vmatprep.subr.mxu0 0.0
  %1642 = vmatpush1.msra.mxu0 0.0
  %1643 = vmatprep.mubr.f32.mxu0 0.0
  %1644 = vmatmul.mubr.f32.gmra.mrb[0].mxu0 %v1453
  %v1645 = vpop.f32.mrb[0].mxu0
  %v1646 = vadd.f32 %v374, %v1645
  %v1647 = vpop.f32.mrb[0].mxu0
  %1648 = vdwg.mxu0
  %v1649 = vadd.f32 %v1457, %v1575
  %v1650 = vxor.u32 %v1649, 2147483648
  %v1651 = vmul.f32 %v1650, 1.442695
  %v1652 = vpow.pop %v1651
  %v1653 = vadd.f32 %v1652, 1.0
  %v1654 = vrcp.pop %v1653
  %v1655 = vmul.f32 1.0, %v1654
  %v1656 = vadd.f32 %v1458, %v1577
  %v1657 = vxor.u32 %v1656, 2147483648
  %v1658 = vmul.f32 %v1657, 1.442695
  %v1659 = vpow.pop %v1658
  %v1660 = vadd.f32 %v1659, 1.0
  %v1661 = vrcp.pop %v1660
  %v1662 = vmul.f32 1.0, %v1661
  %v1663 = vmul.f32 %v1655, %v1646
  %v1664 = vadd.f32 %v1459, %v1663
  %v1665 = vtanh.pop %v1664
  %v1666 = vsub.f32 1.0, %v1662
  %v1667 = vmul.f32 %v1666, %v1665
  %v1668 = vmul.f32 %v1662, %v1453
  %v1669 = vadd.f32 %v1667, %v1668
  %s1670 = scalar_lea.vmem [#allocation2], 40
  %1671 = vst [vmem:[%s1670] sm:$0xff] %v1669
  %s1672 = scalar_lea.vmem [#allocation4], 144
  %v1673 = vld [vmem:[%s1672] sm:$0xff]
  %v1674 = vld [vmem:[%s1672 + $0x8] sm:$0xff]
  %v1675 = vld [vmem:[%s1672 + $0x10] sm:$0xff]
  %v1676 = vld [vmem:[%s2] sm:$0xff]
  %v1677 = vld [vmem:[%s2 + $0x8] sm:$0xff]
  %v1678 = vld [vmem:[%s2 + $0x10] sm:$0xff]
  %v1679 = vld [vmem:[%s2 + $0x18] sm:$0xff]
  %v1680 = vld [vmem:[%s2 + $0x20] sm:$0xff]
  %v1681 = vld [vmem:[%s2 + $0x28] sm:$0xff]
  %v1682 = vld [vmem:[%s2 + $0x30] sm:$0xff]
  %v1683 = vld [vmem:[%s2 + $0x38] sm:$0xff]
  %v1684 = vld [vmem:[%s2 + $0x40] sm:$0xff]
  %v1685 = vld [vmem:[%s2 + $0x48] sm:$0xff]
  %v1686 = vld [vmem:[%s2 + $0x50] sm:$0xff]
  %v1687 = vld [vmem:[%s2 + $0x58] sm:$0xff]
  %v1688 = vld [vmem:[%s2 + $0x60] sm:$0xff]
  %v1689 = vld [vmem:[%s2 + $0x68] sm:$0xff]
  %v1690 = vld [vmem:[%s2 + $0x70] sm:$0xff]
  %v1691 = vld [vmem:[%s2 + $0x78] sm:$0xff]
  %v1692 = vld [vmem:[%s2 + $0x80] sm:$0xff]
  %v1693 = vld [vmem:[%s2 + $0x88] sm:$0xff]
  %v1694 = vld [vmem:[%s2 + $0x90] sm:$0xff]
  %v1695 = vld [vmem:[%s2 + $0x98] sm:$0xff]
  %v1696 = vld [vmem:[%s2 + $0xa0] sm:$0xff]
  %v1697 = vld [vmem:[%s2 + $0xa8] sm:$0xff]
  %v1698 = vld [vmem:[%s2 + $0xb0] sm:$0xff]
  %v1699 = vld [vmem:[%s2 + $0xb8] sm:$0xff]
  %v1700 = vld [vmem:[%s2 + $0xc0] sm:$0xff]
  %v1701 = vld [vmem:[%s2 + $0xc8] sm:$0xff]
  %v1702 = vld [vmem:[%s2 + $0xd0] sm:$0xff]
  %v1703 = vld [vmem:[%s2 + $0xd8] sm:$0xff]
  %v1704 = vld [vmem:[%s2 + $0xe0] sm:$0xff]
  %v1705 = vld [vmem:[%s2 + $0xe8] sm:$0xff]
  %v1706 = vld [vmem:[%s2 + $0xf0] sm:$0xff]
  %v1707 = vld [vmem:[%s2 + $0xf8] sm:$0xff]
  %v1708 = vld [vmem:[%s2 + $0x100] sm:$0xff]
  %v1709 = vld [vmem:[%s2 + $0x108] sm:$0xff]
  %v1710 = vld [vmem:[%s2 + $0x110] sm:$0xff]
  %v1711 = vld [vmem:[%s2 + $0x118] sm:$0xff]
  %v1712 = vld [vmem:[%s2 + $0x120] sm:$0xff]
  %v1713 = vld [vmem:[%s2 + $0x128] sm:$0xff]
  %v1714 = vld [vmem:[%s2 + $0x130] sm:$0xff]
  %v1715 = vld [vmem:[%s2 + $0x138] sm:$0xff]
  %v1716 = vld [vmem:[%s2 + $0x140] sm:$0xff]
  %v1717 = vld [vmem:[%s2 + $0x148] sm:$0xff]
  %v1718 = vld [vmem:[%s2 + $0x150] sm:$0xff]
  %v1719 = vld [vmem:[%s2 + $0x158] sm:$0xff]
  %v1720 = vld [vmem:[%s2 + $0x160] sm:$0xff]
  %v1721 = vld [vmem:[%s2 + $0x168] sm:$0xff]
  %v1722 = vld [vmem:[%s2 + $0x170] sm:$0xff]
  %v1723 = vld [vmem:[%s2 + $0x178] sm:$0xff]
  %1724 = vmatprep.subr.mxu0 %v1677
  %1725 = vmatpush1.msra.mxu0 %v1676
  %1726 = vmatprep.subr.mxu0 %v1680
  %1727 = vmatpush1.msra.mxu0 %v1679
  %1728 = vmatprep.subr.mxu0 %v1683
  %1729 = vmatpush1.msra.mxu0 %v1682
  %1730 = vmatprep.subr.mxu0 %v1686
  %1731 = vmatpush1.msra.mxu0 %v1685
  %1732 = vmatprep.subr.mxu0 %v1689
  %1733 = vmatpush1.msra.mxu0 %v1688
  %1734 = vmatprep.subr.mxu0 %v1692
  %1735 = vmatpush1.msra.mxu0 %v1691
  %1736 = vmatprep.subr.mxu0 %v1695
  %1737 = vmatpush1.msra.mxu0 %v1694
  %1738 = vmatprep.subr.mxu0 %v1698
  %1739 = vmatpush1.msra.mxu0 %v1697
  %1740 = vmatprep.subr.mxu0 %v1701
  %1741 = vmatpush1.msra.mxu0 %v1700
  %1742 = vmatprep.subr.mxu0 %v1704
  %1743 = vmatpush1.msra.mxu0 %v1703
  %1744 = vmatprep.subr.mxu0 %v1707
  %1745 = vmatpush1.msra.mxu0 %v1706
  %1746 = vmatprep.subr.mxu0 %v1710
  %1747 = vmatpush1.msra.mxu0 %v1709
  %1748 = vmatprep.subr.mxu0 %v1713
  %1749 = vmatpush1.msra.mxu0 %v1712
  %1750 = vmatprep.subr.mxu0 %v1716
  %1751 = vmatpush1.msra.mxu0 %v1715
  %1752 = vmatprep.subr.mxu0 %v1719
  %1753 = vmatpush1.msra.mxu0 %v1718
  %1754 = vmatprep.subr.mxu0 %v1722
  %1755 = vmatpush1.msra.mxu0 %v1721
  %1756 = vmatprep.subr.mxu0 0.0
  %1757 = vmatpush1.msra.mxu0 0.0
  %1758 = vmatprep.subr.mxu0 0.0
  %1759 = vmatpush1.msra.mxu0 0.0
  %1760 = vmatprep.subr.mxu0 0.0
  %1761 = vmatpush1.msra.mxu0 0.0
  %1762 = vmatprep.subr.mxu0 0.0
  %1763 = vmatpush1.msra.mxu0 0.0
  %1764 = vmatprep.subr.mxu0 0.0
  %1765 = vmatpush1.msra.mxu0 0.0
  %1766 = vmatprep.subr.mxu0 0.0
  %1767 = vmatpush1.msra.mxu0 0.0
  %1768 = vmatprep.subr.mxu0 0.0
  %1769 = vmatpush1.msra.mxu0 0.0
  %1770 = vmatprep.subr.mxu0 0.0
  %1771 = vmatpush1.msra.mxu0 0.0
  %1772 = vmatprep.subr.mxu0 0.0
  %1773 = vmatpush1.msra.mxu0 0.0
  %1774 = vmatprep.subr.mxu0 0.0
  %1775 = vmatpush1.msra.mxu0 0.0
  %1776 = vmatprep.subr.mxu0 0.0
  %1777 = vmatpush1.msra.mxu0 0.0
  %1778 = vmatprep.subr.mxu0 0.0
  %1779 = vmatpush1.msra.mxu0 0.0
  %1780 = vmatprep.subr.mxu0 0.0
  %1781 = vmatpush1.msra.mxu0 0.0
  %1782 = vmatprep.subr.mxu0 0.0
  %1783 = vmatpush1.msra.mxu0 0.0
  %1784 = vmatprep.subr.mxu0 0.0
  %1785 = vmatpush1.msra.mxu0 0.0
  %1786 = vmatprep.subr.mxu0 0.0
  %1787 = vmatpush1.msra.mxu0 0.0
  %1788 = vmatprep.mubr.f32.mxu0 0.0
  %1789 = vmatmul.mubr.f32.gmra.mrb[0].mxu0 %v1669
  %v1790 = vpop.f32.mrb[0].mxu0
  %v1791 = vadd.f32 %v366, %v1790
  %v1792 = vpop.f32.mrb[0].mxu0
  %v1793 = vadd.f32 %v370, %v1792
  %1794 = vdwg.mxu0
  %1795 = vmatprep.subr.mxu0 0.0
  %1796 = vmatpush1.msra.mxu0 %v1678
  %1797 = vmatprep.subr.mxu0 0.0
  %1798 = vmatpush1.msra.mxu0 %v1681
  %1799 = vmatprep.subr.mxu0 0.0
  %1800 = vmatpush1.msra.mxu0 %v1684
  %1801 = vmatprep.subr.mxu0 0.0
  %1802 = vmatpush1.msra.mxu0 %v1687
  %1803 = vmatprep.subr.mxu0 0.0
  %1804 = vmatpush1.msra.mxu0 %v1690
  %1805 = vmatprep.subr.mxu0 0.0
  %1806 = vmatpush1.msra.mxu0 %v1693
  %1807 = vmatprep.subr.mxu0 0.0
  %1808 = vmatpush1.msra.mxu0 %v1696
  %1809 = vmatprep.subr.mxu0 0.0
  %1810 = vmatpush1.msra.mxu0 %v1699
  %1811 = vmatprep.subr.mxu0 0.0
  %1812 = vmatpush1.msra.mxu0 %v1702
  %1813 = vmatprep.subr.mxu0 0.0
  %1814 = vmatpush1.msra.mxu0 %v1705
  %1815 = vmatprep.subr.mxu0 0.0
  %1816 = vmatpush1.msra.mxu0 %v1708
  %1817 = vmatprep.subr.mxu0 0.0
  %1818 = vmatpush1.msra.mxu0 %v1711
  %1819 = vmatprep.subr.mxu0 0.0
  %1820 = vmatpush1.msra.mxu0 %v1714
  %1821 = vmatprep.subr.mxu0 0.0
  %1822 = vmatpush1.msra.mxu0 %v1717
  %1823 = vmatprep.subr.mxu0 0.0
  %1824 = vmatpush1.msra.mxu0 %v1720
  %1825 = vmatprep.subr.mxu0 0.0
  %1826 = vmatpush1.msra.mxu0 %v1723
  %1827 = vmatprep.subr.mxu0 0.0
  %1828 = vmatpush1.msra.mxu0 0.0
  %1829 = vmatprep.subr.mxu0 0.0
  %1830 = vmatpush1.msra.mxu0 0.0
  %1831 = vmatprep.subr.mxu0 0.0
  %1832 = vmatpush1.msra.mxu0 0.0
  %1833 = vmatprep.subr.mxu0 0.0
  %1834 = vmatpush1.msra.mxu0 0.0
  %1835 = vmatprep.subr.mxu0 0.0
  %1836 = vmatpush1.msra.mxu0 0.0
  %1837 = vmatprep.subr.mxu0 0.0
  %1838 = vmatpush1.msra.mxu0 0.0
  %1839 = vmatprep.subr.mxu0 0.0
  %1840 = vmatpush1.msra.mxu0 0.0
  %1841 = vmatprep.subr.mxu0 0.0
  %1842 = vmatpush1.msra.mxu0 0.0
  %1843 = vmatprep.subr.mxu0 0.0
  %1844 = vmatpush1.msra.mxu0 0.0
  %1845 = vmatprep.subr.mxu0 0.0
  %1846 = vmatpush1.msra.mxu0 0.0
  %1847 = vmatprep.subr.mxu0 0.0
  %1848 = vmatpush1.msra.mxu0 0.0
  %1849 = vmatprep.subr.mxu0 0.0
  %1850 = vmatpush1.msra.mxu0 0.0
  %1851 = vmatprep.subr.mxu0 0.0
  %1852 = vmatpush1.msra.mxu0 0.0
  %1853 = vmatprep.subr.mxu0 0.0
  %1854 = vmatpush1.msra.mxu0 0.0
  %1855 = vmatprep.subr.mxu0 0.0
  %1856 = vmatpush1.msra.mxu0 0.0
  %1857 = vmatprep.subr.mxu0 0.0
  %1858 = vmatpush1.msra.mxu0 0.0
  %1859 = vmatprep.mubr.f32.mxu0 0.0
  %1860 = vmatmul.mubr.f32.gmra.mrb[0].mxu0 %v1669
  %v1861 = vpop.f32.mrb[0].mxu0
  %v1862 = vadd.f32 %v374, %v1861
  %v1863 = vpop.f32.mrb[0].mxu0
  %1864 = vdwg.mxu0
  %v1865 = vadd.f32 %v1673, %v1791
  %v1866 = vxor.u32 %v1865, 2147483648
  %v1867 = vmul.f32 %v1866, 1.442695
  %v1868 = vpow.pop %v1867
  %v1869 = vadd.f32 %v1868, 1.0
  %v1870 = vrcp.pop %v1869
  %v1871 = vmul.f32 1.0, %v1870
  %v1872 = vadd.f32 %v1674, %v1793
  %v1873 = vxor.u32 %v1872, 2147483648
  %v1874 = vmul.f32 %v1873, 1.442695
  %v1875 = vpow.pop %v1874
  %v1876 = vadd.f32 %v1875, 1.0
  %v1877 = vrcp.pop %v1876
  %v1878 = vmul.f32 1.0, %v1877
  %v1879 = vmul.f32 %v1871, %v1862
  %v1880 = vadd.f32 %v1675, %v1879
  %v1881 = vtanh.pop %v1880
  %v1882 = vsub.f32 1.0, %v1878
  %v1883 = vmul.f32 %v1882, %v1881
  %v1884 = vmul.f32 %v1878, %v1669
  %v1885 = vadd.f32 %v1883, %v1884
  %s1886 = scalar_lea.vmem [#allocation2], 48
  %1887 = vst [vmem:[%s1886] sm:$0xff] %v1885
  %s1888 = scalar_lea.vmem [#allocation4], 168
  %v1889 = vld [vmem:[%s1888] sm:$0xff]
  %v1890 = vld [vmem:[%s1888 + $0x8] sm:$0xff]
  %v1891 = vld [vmem:[%s1888 + $0x10] sm:$0xff]
  %v1892 = vld [vmem:[%s2] sm:$0xff]
  %v1893 = vld [vmem:[%s2 + $0x8] sm:$0xff]
  %v1894 = vld [vmem:[%s2 + $0x10] sm:$0xff]
  %v1895 = vld [vmem:[%s2 + $0x18] sm:$0xff]
  %v1896 = vld [vmem:[%s2 + $0x20] sm:$0xff]
  %v1897 = vld [vmem:[%s2 + $0x28] sm:$0xff]
  %v1898 = vld [vmem:[%s2 + $0x30] sm:$0xff]
  %v1899 = vld [vmem:[%s2 + $0x38] sm:$0xff]
  %v1900 = vld [vmem:[%s2 + $0x40] sm:$0xff]
  %v1901 = vld [vmem:[%s2 + $0x48] sm:$0xff]
  %v1902 = vld [vmem:[%s2 + $0x50] sm:$0xff]
  %v1903 = vld [vmem:[%s2 + $0x58] sm:$0xff]
  %v1904 = vld [vmem:[%s2 + $0x60] sm:$0xff]
  %v1905 = vld [vmem:[%s2 + $0x68] sm:$0xff]
  %v1906 = vld [vmem:[%s2 + $0x70] sm:$0xff]
  %v1907 = vld [vmem:[%s2 + $0x78] sm:$0xff]
  %v1908 = vld [vmem:[%s2 + $0x80] sm:$0xff]
  %v1909 = vld [vmem:[%s2 + $0x88] sm:$0xff]
  %v1910 = vld [vmem:[%s2 + $0x90] sm:$0xff]
  %v1911 = vld [vmem:[%s2 + $0x98] sm:$0xff]
  %v1912 = vld [vmem:[%s2 + $0xa0] sm:$0xff]
  %v1913 = vld [vmem:[%s2 + $0xa8] sm:$0xff]
  %v1914 = vld [vmem:[%s2 + $0xb0] sm:$0xff]
  %v1915 = vld [vmem:[%s2 + $0xb8] sm:$0xff]
  %v1916 = vld [vmem:[%s2 + $0xc0] sm:$0xff]
  %v1917 = vld [vmem:[%s2 + $0xc8] sm:$0xff]
  %v1918 = vld [vmem:[%s2 + $0xd0] sm:$0xff]
  %v1919 = vld [vmem:[%s2 + $0xd8] sm:$0xff]
  %v1920 = vld [vmem:[%s2 + $0xe0] sm:$0xff]
  %v1921 = vld [vmem:[%s2 + $0xe8] sm:$0xff]
  %v1922 = vld [vmem:[%s2 + $0xf0] sm:$0xff]
  %v1923 = vld [vmem:[%s2 + $0xf8] sm:$0xff]
  %v1924 = vld [vmem:[%s2 + $0x100] sm:$0xff]
  %v1925 = vld [vmem:[%s2 + $0x108] sm:$0xff]
  %v1926 = vld [vmem:[%s2 + $0x110] sm:$0xff]
  %v1927 = vld [vmem:[%s2 + $0x118] sm:$0xff]
  %v1928 = vld [vmem:[%s2 + $0x120] sm:$0xff]
  %v1929 = vld [vmem:[%s2 + $0x128] sm:$0xff]
  %v1930 = vld [vmem:[%s2 + $0x130] sm:$0xff]
  %v1931 = vld [vmem:[%s2 + $0x138] sm:$0xff]
  %v1932 = vld [vmem:[%s2 + $0x140] sm:$0xff]
  %v1933 = vld [vmem:[%s2 + $0x148] sm:$0xff]
  %v1934 = vld [vmem:[%s2 + $0x150] sm:$0xff]
  %v1935 = vld [vmem:[%s2 + $0x158] sm:$0xff]
  %v1936 = vld [vmem:[%s2 + $0x160] sm:$0xff]
  %v1937 = vld [vmem:[%s2 + $0x168] sm:$0xff]
  %v1938 = vld [vmem:[%s2 + $0x170] sm:$0xff]
  %v1939 = vld [vmem:[%s2 + $0x178] sm:$0xff]
  %1940 = vmatprep.subr.mxu0 %v1893
  %1941 = vmatpush1.msra.mxu0 %v1892
  %1942 = vmatprep.subr.mxu0 %v1896
  %1943 = vmatpush1.msra.mxu0 %v1895
  %1944 = vmatprep.subr.mxu0 %v1899
  %1945 = vmatpush1.msra.mxu0 %v1898
  %1946 = vmatprep.subr.mxu0 %v1902
  %1947 = vmatpush1.msra.mxu0 %v1901
  %1948 = vmatprep.subr.mxu0 %v1905
  %1949 = vmatpush1.msra.mxu0 %v1904
  %1950 = vmatprep.subr.mxu0 %v1908
  %1951 = vmatpush1.msra.mxu0 %v1907
  %1952 = vmatprep.subr.mxu0 %v1911
  %1953 = vmatpush1.msra.mxu0 %v1910
  %1954 = vmatprep.subr.mxu0 %v1914
  %1955 = vmatpush1.msra.mxu0 %v1913
  %1956 = vmatprep.subr.mxu0 %v1917
  %1957 = vmatpush1.msra.mxu0 %v1916
  %1958 = vmatprep.subr.mxu0 %v1920
  %1959 = vmatpush1.msra.mxu0 %v1919
  %1960 = vmatprep.subr.mxu0 %v1923
  %1961 = vmatpush1.msra.mxu0 %v1922
  %1962 = vmatprep.subr.mxu0 %v1926
  %1963 = vmatpush1.msra.mxu0 %v1925
  %1964 = vmatprep.subr.mxu0 %v1929
  %1965 = vmatpush1.msra.mxu0 %v1928
  %1966 = vmatprep.subr.mxu0 %v1932
  %1967 = vmatpush1.msra.mxu0 %v1931
  %1968 = vmatprep.subr.mxu0 %v1935
  %1969 = vmatpush1.msra.mxu0 %v1934
  %1970 = vmatprep.subr.mxu0 %v1938
  %1971 = vmatpush1.msra.mxu0 %v1937
  %1972 = vmatprep.subr.mxu0 0.0
  %1973 = vmatpush1.msra.mxu0 0.0
  %1974 = vmatprep.subr.mxu0 0.0
  %1975 = vmatpush1.msra.mxu0 0.0
  %1976 = vmatprep.subr.mxu0 0.0
  %1977 = vmatpush1.msra.mxu0 0.0
  %1978 = vmatprep.subr.mxu0 0.0
  %1979 = vmatpush1.msra.mxu0 0.0
  %1980 = vmatprep.subr.mxu0 0.0
  %1981 = vmatpush1.msra.mxu0 0.0
  %1982 = vmatprep.subr.mxu0 0.0
  %1983 = vmatpush1.msra.mxu0 0.0
  %1984 = vmatprep.subr.mxu0 0.0
  %1985 = vmatpush1.msra.mxu0 0.0
  %1986 = vmatprep.subr.mxu0 0.0
  %1987 = vmatpush1.msra.mxu0 0.0
  %1988 = vmatprep.subr.mxu0 0.0
  %1989 = vmatpush1.msra.mxu0 0.0
  %1990 = vmatprep.subr.mxu0 0.0
  %1991 = vmatpush1.msra.mxu0 0.0
  %1992 = vmatprep.subr.mxu0 0.0
  %1993 = vmatpush1.msra.mxu0 0.0
  %1994 = vmatprep.subr.mxu0 0.0
  %1995 = vmatpush1.msra.mxu0 0.0
  %1996 = vmatprep.subr.mxu0 0.0
  %1997 = vmatpush1.msra.mxu0 0.0
  %1998 = vmatprep.subr.mxu0 0.0
  %1999 = vmatpush1.msra.mxu0 0.0
  %2000 = vmatprep.subr.mxu0 0.0
  %2001 = vmatpush1.msra.mxu0 0.0
  %2002 = vmatprep.subr.mxu0 0.0
  %2003 = vmatpush1.msra.mxu0 0.0
  %2004 = vmatprep.mubr.f32.mxu0 0.0
  %2005 = vmatmul.mubr.f32.gmra.mrb[0].mxu0 %v1885
  %v2006 = vpop.f32.mrb[0].mxu0
  %v2007 = vadd.f32 %v366, %v2006
  %v2008 = vpop.f32.mrb[0].mxu0
  %v2009 = vadd.f32 %v370, %v2008
  %2010 = vdwg.mxu0
  %2011 = vmatprep.subr.mxu0 0.0
  %2012 = vmatpush1.msra.mxu0 %v1894
  %2013 = vmatprep.subr.mxu0 0.0
  %2014 = vmatpush1.msra.mxu0 %v1897
  %2015 = vmatprep.subr.mxu0 0.0
  %2016 = vmatpush1.msra.mxu0 %v1900
  %2017 = vmatprep.subr.mxu0 0.0
  %2018 = vmatpush1.msra.mxu0 %v1903
  %2019 = vmatprep.subr.mxu0 0.0
  %2020 = vmatpush1.msra.mxu0 %v1906
  %2021 = vmatprep.subr.mxu0 0.0
  %2022 = vmatpush1.msra.mxu0 %v1909
  %2023 = vmatprep.subr.mxu0 0.0
  %2024 = vmatpush1.msra.mxu0 %v1912
  %2025 = vmatprep.subr.mxu0 0.0
  %2026 = vmatpush1.msra.mxu0 %v1915
  %2027 = vmatprep.subr.mxu0 0.0
  %2028 = vmatpush1.msra.mxu0 %v1918
  %2029 = vmatprep.subr.mxu0 0.0
  %2030 = vmatpush1.msra.mxu0 %v1921
  %2031 = vmatprep.subr.mxu0 0.0
  %2032 = vmatpush1.msra.mxu0 %v1924
  %2033 = vmatprep.subr.mxu0 0.0
  %2034 = vmatpush1.msra.mxu0 %v1927
  %2035 = vmatprep.subr.mxu0 0.0
  %2036 = vmatpush1.msra.mxu0 %v1930
  %2037 = vmatprep.subr.mxu0 0.0
  %2038 = vmatpush1.msra.mxu0 %v1933
  %2039 = vmatprep.subr.mxu0 0.0
  %2040 = vmatpush1.msra.mxu0 %v1936
  %2041 = vmatprep.subr.mxu0 0.0
  %2042 = vmatpush1.msra.mxu0 %v1939
  %2043 = vmatprep.subr.mxu0 0.0
  %2044 = vmatpush1.msra.mxu0 0.0
  %2045 = vmatprep.subr.mxu0 0.0
  %2046 = vmatpush1.msra.mxu0 0.0
  %2047 = vmatprep.subr.mxu0 0.0
  %2048 = vmatpush1.msra.mxu0 0.0
  %2049 = vmatprep.subr.mxu0 0.0
  %2050 = vmatpush1.msra.mxu0 0.0
  %2051 = vmatprep.subr.mxu0 0.0
  %2052 = vmatpush1.msra.mxu0 0.0
  %2053 = vmatprep.subr.mxu0 0.0
  %2054 = vmatpush1.msra.mxu0 0.0
  %2055 = vmatprep.subr.mxu0 0.0
  %2056 = vmatpush1.msra.mxu0 0.0
  %2057 = vmatprep.subr.mxu0 0.0
  %2058 = vmatpush1.msra.mxu0 0.0
  %2059 = vmatprep.subr.mxu0 0.0
  %2060 = vmatpush1.msra.mxu0 0.0
  %2061 = vmatprep.subr.mxu0 0.0
  %2062 = vmatpush1.msra.mxu0 0.0
  %2063 = vmatprep.subr.mxu0 0.0
  %2064 = vmatpush1.msra.mxu0 0.0
  %2065 = vmatprep.subr.mxu0 0.0
  %2066 = vmatpush1.msra.mxu0 0.0
  %2067 = vmatprep.subr.mxu0 0.0
  %2068 = vmatpush1.msra.mxu0 0.0
  %2069 = vmatprep.subr.mxu0 0.0
  %2070 = vmatpush1.msra.mxu0 0.0
  %2071 = vmatprep.subr.mxu0 0.0
  %2072 = vmatpush1.msra.mxu0 0.0
  %2073 = vmatprep.subr.mxu0 0.0
  %2074 = vmatpush1.msra.mxu0 0.0
  %2075 = vmatprep.mubr.f32.mxu0 0.0
  %2076 = vmatmul.mubr.f32.gmra.mrb[0].mxu0 %v1885
  %v2077 = vpop.f32.mrb[0].mxu0
  %v2078 = vadd.f32 %v374, %v2077
  %v2079 = vpop.f32.mrb[0].mxu0
  %2080 = vdwg.mxu0
  %v2081 = vadd.f32 %v1889, %v2007
  %v2082 = vxor.u32 %v2081, 2147483648
  %v2083 = vmul.f32 %v2082, 1.442695
  %v2084 = vpow.pop %v2083
  %v2085 = vadd.f32 %v2084, 1.0
  %v2086 = vrcp.pop %v2085
  %v2087 = vmul.f32 1.0, %v2086
  %v2088 = vadd.f32 %v1890, %v2009
  %v2089 = vxor.u32 %v2088, 2147483648
  %v2090 = vmul.f32 %v2089, 1.442695
  %v2091 = vpow.pop %v2090
  %v2092 = vadd.f32 %v2091, 1.0
  %v2093 = vrcp.pop %v2092
  %v2094 = vmul.f32 1.0, %v2093
  %v2095 = vmul.f32 %v2087, %v2078
  %v2096 = vadd.f32 %v1891, %v2095
  %v2097 = vtanh.pop %v2096
  %v2098 = vsub.f32 1.0, %v2094
  %v2099 = vmul.f32 %v2098, %v2097
  %v2100 = vmul.f32 %v2094, %v1885
  %v2101 = vadd.f32 %v2099, %v2100
  %s2102 = scalar_lea.vmem [#allocation2], 56
  %2103 = vst [vmem:[%s2102] sm:$0xff] %v2101
  %v2104 = vld [vmem:[#allocation2] sm:$0xff]
  %v2105 = vld [vmem:[#allocation2 + $0x8] sm:$0xff]
  %v2106 = vld [vmem:[#allocation2 + $0x10] sm:$0xff]
  %v2107 = vld [vmem:[#allocation2 + $0x18] sm:$0xff]
  %v2108 = vld [vmem:[#allocation2 + $0x20] sm:$0xff]
  %v2109 = vld [vmem:[#allocation2 + $0x28] sm:$0xff]
  %v2110 = vld [vmem:[#allocation2 + $0x30] sm:$0xff]
  %v2111 = vld [vmem:[#allocation2 + $0x38] sm:$0xff]
  %v2112 = vld [vmem:[%s5] sm:$0xff]
  %v2113 = vld [vmem:[%s5 + $0x8] sm:$0xff]
  %v2114 = vld [vmem:[%s5 + $0x10] sm:$0xff]
  %v2115 = vld [vmem:[%s5 + $0x18] sm:$0xff]
  %v2116 = vld [vmem:[%s5 + $0x20] sm:$0xff]
  %v2117 = vld [vmem:[%s5 + $0x28] sm:$0xff]
  %v2118 = vld [vmem:[%s5 + $0x30] sm:$0xff]
  %v2119 = vld [vmem:[%s5 + $0x38] sm:$0xff]
  %v2120 = vld [vmem:[%s5 + $0x40] sm:$0xff]
  %v2121 = vld [vmem:[%s5 + $0x48] sm:$0xff]
  %v2122 = vld [vmem:[%s5 + $0x50] sm:$0xff]
  %v2123 = vld [vmem:[%s5 + $0x58] sm:$0xff]
  %v2124 = vld [vmem:[%s5 + $0x60] sm:$0xff]
  %v2125 = vld [vmem:[%s5 + $0x68] sm:$0xff]
  %v2126 = vld [vmem:[%s5 + $0x70] sm:$0xff]
  %v2127 = vld [vmem:[%s5 + $0x78] sm:$0xff]
  %v2128 = vld [vmem:[%s5 + $0x80] sm:$0xff]
  %v2129 = vld [vmem:[%s5 + $0x88] sm:$0xff]
  %v2130 = vld [vmem:[%s5 + $0x90] sm:$0xff]
  %v2131 = vld [vmem:[%s5 + $0x98] sm:$0xff]
  %v2132 = vld [vmem:[%s5 + $0xa0] sm:$0xff]
  %v2133 = vld [vmem:[%s5 + $0xa8] sm:$0xff]
  %v2134 = vld [vmem:[%s5 + $0xb0] sm:$0xff]
  %v2135 = vld [vmem:[%s5 + $0xb8] sm:$0xff]
  %v2136 = vld [vmem:[%s5 + $0xc0] sm:$0xff]
  %v2137 = vld [vmem:[%s5 + $0xc8] sm:$0xff]
  %v2138 = vld [vmem:[%s5 + $0xd0] sm:$0xff]
  %v2139 = vld [vmem:[%s5 + $0xd8] sm:$0xff]
  %v2140 = vld [vmem:[%s5 + $0xe0] sm:$0xff]
  %v2141 = vld [vmem:[%s5 + $0xe8] sm:$0xff]
  %v2142 = vld [vmem:[%s5 + $0xf0] sm:$0xff]
  %v2143 = vld [vmem:[%s5 + $0xf8] sm:$0xff]
  %v2144 = vld [vmem:[%s5 + $0x100] sm:$0xff]
  %v2145 = vld [vmem:[%s5 + $0x108] sm:$0xff]
  %v2146 = vld [vmem:[%s5 + $0x110] sm:$0xff]
  %v2147 = vld [vmem:[%s5 + $0x118] sm:$0xff]
  %v2148 = vld [vmem:[%s5 + $0x120] sm:$0xff]
  %v2149 = vld [vmem:[%s5 + $0x128] sm:$0xff]
  %v2150 = vld [vmem:[%s5 + $0x130] sm:$0xff]
  %v2151 = vld [vmem:[%s5 + $0x138] sm:$0xff]
  %v2152 = vld [vmem:[%s5 + $0x140] sm:$0xff]
  %v2153 = vld [vmem:[%s5 + $0x148] sm:$0xff]
  %v2154 = vld [vmem:[%s5 + $0x150] sm:$0xff]
  %v2155 = vld [vmem:[%s5 + $0x158] sm:$0xff]
  %v2156 = vld [vmem:[%s5 + $0x160] sm:$0xff]
  %v2157 = vld [vmem:[%s5 + $0x168] sm:$0xff]
  %v2158 = vld [vmem:[%s5 + $0x170] sm:$0xff]
  %v2159 = vld [vmem:[%s5 + $0x178] sm:$0xff]
  %v2160 = vld [vmem:[%s7] sm:$0x7]
  %v2162 = vlaneseq
  %v2163 = vshrl.u32 %v2162, 7
  %v2164 = vsub.s32 0, %v2163
  %v2165 = vrot.slane %v2160, %v2164
  %v2166 = vlaneseq
  %v2167 = vshrl.u32 %v2166, 7
  %v2168 = vsub.s32 1, %v2167
  %v2169 = vrot.slane %v2160, %v2168
  %v2170 = vlaneseq
  %v2171 = vshrl.u32 %v2170, 7
  %v2172 = vsub.s32 2, %v2171
  %v2173 = vrot.slane %v2160, %v2172
  %2177 = vmatprep.subr.mxu0 %v2113
  %2178 = vmatpush1.msra.mxu0 %v2112
  %2179 = vmatprep.subr.mxu0 %v2116
  %2180 = vmatpush1.msra.mxu0 %v2115
  %2181 = vmatprep.subr.mxu0 %v2119
  %2182 = vmatpush1.msra.mxu0 %v2118
  %2183 = vmatprep.subr.mxu0 %v2122
  %2184 = vmatpush1.msra.mxu0 %v2121
  %2185 = vmatprep.subr.mxu0 %v2125
  %2186 = vmatpush1.msra.mxu0 %v2124
  %2187 = vmatprep.subr.mxu0 %v2128
  %2188 = vmatpush1.msra.mxu0 %v2127
  %2189 = vmatprep.subr.mxu0 %v2131
  %2190 = vmatpush1.msra.mxu0 %v2130
  %2191 = vmatprep.subr.mxu0 %v2134
  %2192 = vmatpush1.msra.mxu0 %v2133
  %2193 = vmatprep.subr.mxu0 %v2137
  %2194 = vmatpush1.msra.mxu0 %v2136
  %2195 = vmatprep.subr.mxu0 %v2140
  %2196 = vmatpush1.msra.mxu0 %v2139
  %2197 = vmatprep.subr.mxu0 %v2143
  %2198 = vmatpush1.msra.mxu0 %v2142
  %2199 = vmatprep.subr.mxu0 %v2146
  %2200 = vmatpush1.msra.mxu0 %v2145
  %2201 = vmatprep.subr.mxu0 %v2149
  %2202 = vmatpush1.msra.mxu0 %v2148
  %2203 = vmatprep.subr.mxu0 %v2152
  %2204 = vmatpush1.msra.mxu0 %v2151
  %2205 = vmatprep.subr.mxu0 %v2155
  %2206 = vmatpush1.msra.mxu0 %v2154
  %2207 = vmatprep.subr.mxu0 %v2158
  %2208 = vmatpush1.msra.mxu0 %v2157
  %2209 = vmatprep.subr.mxu0 0.0
  %2210 = vmatpush1.msra.mxu0 0.0
  %2211 = vmatprep.subr.mxu0 0.0
  %2212 = vmatpush1.msra.mxu0 0.0
  %2213 = vmatprep.subr.mxu0 0.0
  %2214 = vmatpush1.msra.mxu0 0.0
  %2215 = vmatprep.subr.mxu0 0.0
  %2216 = vmatpush1.msra.mxu0 0.0
  %2217 = vmatprep.subr.mxu0 0.0
  %2218 = vmatpush1.msra.mxu0 0.0
  %2219 = vmatprep.subr.mxu0 0.0
  %2220 = vmatpush1.msra.mxu0 0.0
  %2221 = vmatprep.subr.mxu0 0.0
  %2222 = vmatpush1.msra.mxu0 0.0
  %2223 = vmatprep.subr.mxu0 0.0
  %2224 = vmatpush1.msra.mxu0 0.0
  %2225 = vmatprep.subr.mxu0 0.0
  %2226 = vmatpush1.msra.mxu0 0.0
  %2227 = vmatprep.subr.mxu0 0.0
  %2228 = vmatpush1.msra.mxu0 0.0
  %2229 = vmatprep.subr.mxu0 0.0
  %2230 = vmatpush1.msra.mxu0 0.0
  %2231 = vmatprep.subr.mxu0 0.0
  %2232 = vmatpush1.msra.mxu0 0.0
  %2233 = vmatprep.subr.mxu0 0.0
  %2234 = vmatpush1.msra.mxu0 0.0
  %2235 = vmatprep.subr.mxu0 0.0
  %2236 = vmatpush1.msra.mxu0 0.0
  %2237 = vmatprep.subr.mxu0 0.0
  %2238 = vmatpush1.msra.mxu0 0.0
  %2239 = vmatprep.subr.mxu0 0.0
  %2240 = vmatpush1.msra.mxu0 0.0
  %2241 = vmatprep.mubr.f32.mxu0 0.0
  %2242 = vmatmul.mubr.f32.gmra.mrb[0].mxu0 %v2104
  %v2243 = vpop.f32.mrb[0].mxu0
  %v2244 = vadd.f32 %v2165, %v2243
  %v2245 = vpop.f32.mrb[0].mxu0
  %v2246 = vadd.f32 %v2169, %v2245
  %2247 = vmatprep.mubr.f32.mxu0 0.0
  %2248 = vmatmul.mubr.f32.gmra.mrb[0].mxu0 %v2105
  %v2249 = vpop.f32.mrb[0].mxu0
  %v2250 = vadd.f32 %v2165, %v2249
  %v2251 = vpop.f32.mrb[0].mxu0
  %v2252 = vadd.f32 %v2169, %v2251
  %2253 = vmatprep.mubr.f32.mxu0 0.0
  %2254 = vmatmul.mubr.f32.gmra.mrb[0].mxu0 %v2106
  %v2255 = vpop.f32.mrb[0].mxu0
  %v2256 = vadd.f32 %v2165, %v2255
  %v2257 = vpop.f32.mrb[0].mxu0
  %v2258 = vadd.f32 %v2169, %v2257
  %2259 = vmatprep.mubr.f32.mxu0 0.0
  %2260 = vmatmul.mubr.f32.gmra.mrb[0].mxu0 %v2107
  %v2261 = vpop.f32.mrb[0].mxu0
  %v2262 = vadd.f32 %v2165, %v2261
  %v2263 = vpop.f32.mrb[0].mxu0
  %v2264 = vadd.f32 %v2169, %v2263
  %2265 = vmatprep.mubr.f32.mxu0 0.0
  %2266 = vmatmul.mubr.f32.gmra.mrb[0].mxu0 %v2108
  %v2267 = vpop.f32.mrb[0].mxu0
  %v2268 = vadd.f32 %v2165, %v2267
  %v2269 = vpop.f32.mrb[0].mxu0
  %v2270 = vadd.f32 %v2169, %v2269
  %2271 = vmatprep.mubr.f32.mxu0 0.0
  %2272 = vmatmul.mubr.f32.gmra.mrb[0].mxu0 %v2109
  %v2273 = vpop.f32.mrb[0].mxu0
  %v2274 = vadd.f32 %v2165, %v2273
  %v2275 = vpop.f32.mrb[0].mxu0
  %v2276 = vadd.f32 %v2169, %v2275
  %2277 = vmatprep.mubr.f32.mxu0 0.0
  %2278 = vmatmul.mubr.f32.gmra.mrb[0].mxu0 %v2110
  %v2279 = vpop.f32.mrb[0].mxu0
  %v2280 = vadd.f32 %v2165, %v2279
  %v2281 = vpop.f32.mrb[0].mxu0
  %v2282 = vadd.f32 %v2169, %v2281
  %2283 = vmatprep.mubr.f32.mxu0 0.0
  %2284 = vmatmul.mubr.f32.gmra.mrb[0].mxu0 %v2111
  %v2285 = vpop.f32.mrb[0].mxu0
  %v2286 = vadd.f32 %v2165, %v2285
  %v2287 = vpop.f32.mrb[0].mxu0
  %v2288 = vadd.f32 %v2169, %v2287
  %2289 = vdwg.mxu0
  %2290 = vmatprep.subr.mxu0 0.0
  %2291 = vmatpush1.msra.mxu0 %v2114
  %2292 = vmatprep.subr.mxu0 0.0
  %2293 = vmatpush1.msra.mxu0 %v2117
  %2294 = vmatprep.subr.mxu0 0.0
  %2295 = vmatpush1.msra.mxu0 %v2120
  %2296 = vmatprep.subr.mxu0 0.0
  %2297 = vmatpush1.msra.mxu0 %v2123
  %2298 = vmatprep.subr.mxu0 0.0
  %2299 = vmatpush1.msra.mxu0 %v2126
  %2300 = vmatprep.subr.mxu0 0.0
  %2301 = vmatpush1.msra.mxu0 %v2129
  %2302 = vmatprep.subr.mxu0 0.0
  %2303 = vmatpush1.msra.mxu0 %v2132
  %2304 = vmatprep.subr.mxu0 0.0
  %2305 = vmatpush1.msra.mxu0 %v2135
  %2306 = vmatprep.subr.mxu0 0.0
  %2307 = vmatpush1.msra.mxu0 %v2138
  %2308 = vmatprep.subr.mxu0 0.0
  %2309 = vmatpush1.msra.mxu0 %v2141
  %2310 = vmatprep.subr.mxu0 0.0
  %2311 = vmatpush1.msra.mxu0 %v2144
  %2312 = vmatprep.subr.mxu0 0.0
  %2313 = vmatpush1.msra.mxu0 %v2147
  %2314 = vmatprep.subr.mxu0 0.0
  %2315 = vmatpush1.msra.mxu0 %v2150
  %2316 = vmatprep.subr.mxu0 0.0
  %2317 = vmatpush1.msra.mxu0 %v2153
  %2318 = vmatprep.subr.mxu0 0.0
  %2319 = vmatpush1.msra.mxu0 %v2156
  %2320 = vmatprep.subr.mxu0 0.0
  %2321 = vmatpush1.msra.mxu0 %v2159
  %2322 = vmatprep.subr.mxu0 0.0
  %2323 = vmatpush1.msra.mxu0 0.0
  %2324 = vmatprep.subr.mxu0 0.0
  %2325 = vmatpush1.msra.mxu0 0.0
  %2326 = vmatprep.subr.mxu0 0.0
  %2327 = vmatpush1.msra.mxu0 0.0
  %2328 = vmatprep.subr.mxu0 0.0
  %2329 = vmatpush1.msra.mxu0 0.0
  %2330 = vmatprep.subr.mxu0 0.0
  %2331 = vmatpush1.msra.mxu0 0.0
  %2332 = vmatprep.subr.mxu0 0.0
  %2333 = vmatpush1.msra.mxu0 0.0
  %2334 = vmatprep.subr.mxu0 0.0
  %2335 = vmatpush1.msra.mxu0 0.0
  %2336 = vmatprep.subr.mxu0 0.0
  %2337 = vmatpush1.msra.mxu0 0.0
  %2338 = vmatprep.subr.mxu0 0.0
  %2339 = vmatpush1.msra.mxu0 0.0
  %2340 = vmatprep.subr.mxu0 0.0
  %2341 = vmatpush1.msra.mxu0 0.0
  %2342 = vmatprep.subr.mxu0 0.0
  %2343 = vmatpush1.msra.mxu0 0.0
  %2344 = vmatprep.subr.mxu0 0.0
  %2345 = vmatpush1.msra.mxu0 0.0
  %2346 = vmatprep.subr.mxu0 0.0
  %2347 = vmatpush1.msra.mxu0 0.0
  %2348 = vmatprep.subr.mxu0 0.0
  %2349 = vmatpush1.msra.mxu0 0.0
  %2350 = vmatprep.subr.mxu0 0.0
  %2351 = vmatpush1.msra.mxu0 0.0
  %2352 = vmatprep.subr.mxu0 0.0
  %2353 = vmatpush1.msra.mxu0 0.0
  %2354 = vmatprep.mubr.f32.mxu0 0.0
  %2355 = vmatmul.mubr.f32.gmra.mrb[0].mxu0 %v2104
  %v2356 = vpop.f32.mrb[0].mxu0
  %v2357 = vadd.f32 %v2173, %v2356
  %v2358 = vpop.f32.mrb[0].mxu0
  %2359 = vmatprep.mubr.f32.mxu0 0.0
  %2360 = vmatmul.mubr.f32.gmra.mrb[0].mxu0 %v2105
  %v2361 = vpop.f32.mrb[0].mxu0
  %v2362 = vadd.f32 %v2173, %v2361
  %v2363 = vpop.f32.mrb[0].mxu0
  %2364 = vmatprep.mubr.f32.mxu0 0.0
  %2365 = vmatmul.mubr.f32.gmra.mrb[0].mxu0 %v2106
  %v2366 = vpop.f32.mrb[0].mxu0
  %v2367 = vadd.f32 %v2173, %v2366
  %v2368 = vpop.f32.mrb[0].mxu0
  %2369 = vmatprep.mubr.f32.mxu0 0.0
  %2370 = vmatmul.mubr.f32.gmra.mrb[0].mxu0 %v2107
  %v2371 = vpop.f32.mrb[0].mxu0
  %v2372 = vadd.f32 %v2173, %v2371
  %v2373 = vpop.f32.mrb[0].mxu0
  %2374 = vmatprep.mubr.f32.mxu0 0.0
  %2375 = vmatmul.mubr.f32.gmra.mrb[0].mxu0 %v2108
  %v2376 = vpop.f32.mrb[0].mxu0
  %v2377 = vadd.f32 %v2173, %v2376
  %v2378 = vpop.f32.mrb[0].mxu0
  %2379 = vmatprep.mubr.f32.mxu0 0.0
  %2380 = vmatmul.mubr.f32.gmra.mrb[0].mxu0 %v2109
  %v2381 = vpop.f32.mrb[0].mxu0
  %v2382 = vadd.f32 %v2173, %v2381
  %v2383 = vpop.f32.mrb[0].mxu0
  %2384 = vmatprep.mubr.f32.mxu0 0.0
  %2385 = vmatmul.mubr.f32.gmra.mrb[0].mxu0 %v2110
  %v2386 = vpop.f32.mrb[0].mxu0
  %v2387 = vadd.f32 %v2173, %v2386
  %v2388 = vpop.f32.mrb[0].mxu0
  %2389 = vmatprep.mubr.f32.mxu0 0.0
  %2390 = vmatmul.mubr.f32.gmra.mrb[0].mxu0 %v2111
  %v2391 = vpop.f32.mrb[0].mxu0
  %v2392 = vadd.f32 %v2173, %v2391
  %v2393 = vpop.f32.mrb[0].mxu0
  %2394 = vdwg.mxu0
  %2395 = vst [vmem:[#allocation4] sm:$0xff] %v2244
  %2396 = vst [vmem:[#allocation4 + $0x8] sm:$0xff] %v2246
  %2397 = vst [vmem:[#allocation4 + $0x10] sm:$0xff] %v2357
  %2398 = vst [vmem:[#allocation4 + $0x18] sm:$0xff] %v2250
  %2399 = vst [vmem:[#allocation4 + $0x20] sm:$0xff] %v2252
  %2400 = vst [vmem:[#allocation4 + $0x28] sm:$0xff] %v2362
  %2401 = vst [vmem:[#allocation4 + $0x30] sm:$0xff] %v2256
  %2402 = vst [vmem:[#allocation4 + $0x38] sm:$0xff] %v2258
  %2403 = vst [vmem:[#allocation4 + $0x40] sm:$0xff] %v2367
  %2404 = vst [vmem:[#allocation4 + $0x48] sm:$0xff] %v2262
  %2405 = vst [vmem:[#allocation4 + $0x50] sm:$0xff] %v2264
  %2406 = vst [vmem:[#allocation4 + $0x58] sm:$0xff] %v2372
  %2407 = vst [vmem:[#allocation4 + $0x60] sm:$0xff] %v2268
  %2408 = vst [vmem:[#allocation4 + $0x68] sm:$0xff] %v2270
  %2409 = vst [vmem:[#allocation4 + $0x70] sm:$0xff] %v2377
  %2410 = vst [vmem:[#allocation4 + $0x78] sm:$0xff] %v2274
  %2411 = vst [vmem:[#allocation4 + $0x80] sm:$0xff] %v2276
  %2412 = vst [vmem:[#allocation4 + $0x88] sm:$0xff] %v2382
  %2413 = vst [vmem:[#allocation4 + $0x90] sm:$0xff] %v2280
  %2414 = vst [vmem:[#allocation4 + $0x98] sm:$0xff] %v2282
  %2415 = vst [vmem:[#allocation4 + $0xa0] sm:$0xff] %v2387
  %2416 = vst [vmem:[#allocation4 + $0xa8] sm:$0xff] %v2286
  %2417 = vst [vmem:[#allocation4 + $0xb0] sm:$0xff] %v2288
  %2418 = vst [vmem:[#allocation4 + $0xb8] sm:$0xff] %v2392
  %v2419 = vld [vmem:[%s8] sm:$0x7]
  %v2421 = vlaneseq
  %v2422 = vshrl.u32 %v2421, 7
  %v2423 = vsub.s32 0, %v2422
  %v2424 = vrot.slane %v2419, %v2423
  %v2425 = vlaneseq
  %v2426 = vshrl.u32 %v2425, 7
  %v2427 = vsub.s32 1, %v2426
  %v2428 = vrot.slane %v2419, %v2427
  %v2429 = vlaneseq
  %v2430 = vshrl.u32 %v2429, 7
  %v2431 = vsub.s32 2, %v2430
  %v2432 = vrot.slane %v2419, %v2431
  %v2436 = vld [vmem:[#allocation4] sm:$0xff]
  %v2437 = vld [vmem:[#allocation4 + $0x8] sm:$0xff]
  %v2438 = vld [vmem:[#allocation4 + $0x10] sm:$0xff]
  %v2439 = vld [vmem:[%s6] sm:$0xff]
  %v2440 = vld [vmem:[%s6 + $0x8] sm:$0xff]
  %v2441 = vld [vmem:[%s6 + $0x10] sm:$0xff]
  %v2442 = vld [vmem:[%s6 + $0x18] sm:$0xff]
  %v2443 = vld [vmem:[%s6 + $0x20] sm:$0xff]
  %v2444 = vld [vmem:[%s6 + $0x28] sm:$0xff]
  %v2445 = vld [vmem:[%s6 + $0x30] sm:$0xff]
  %v2446 = vld [vmem:[%s6 + $0x38] sm:$0xff]
  %v2447 = vld [vmem:[%s6 + $0x40] sm:$0xff]
  %v2448 = vld [vmem:[%s6 + $0x48] sm:$0xff]
  %v2449 = vld [vmem:[%s6 + $0x50] sm:$0xff]
  %v2450 = vld [vmem:[%s6 + $0x58] sm:$0xff]
  %v2451 = vld [vmem:[%s6 + $0x60] sm:$0xff]
  %v2452 = vld [vmem:[%s6 + $0x68] sm:$0xff]
  %v2453 = vld [vmem:[%s6 + $0x70] sm:$0xff]
  %v2454 = vld [vmem:[%s6 + $0x78] sm:$0xff]
  %v2455 = vld [vmem:[%s6 + $0x80] sm:$0xff]
  %v2456 = vld [vmem:[%s6 + $0x88] sm:$0xff]
  %v2457 = vld [vmem:[%s6 + $0x90] sm:$0xff]
  %v2458 = vld [vmem:[%s6 + $0x98] sm:$0xff]
  %v2459 = vld [vmem:[%s6 + $0xa0] sm:$0xff]
  %v2460 = vld [vmem:[%s6 + $0xa8] sm:$0xff]
  %v2461 = vld [vmem:[%s6 + $0xb0] sm:$0xff]
  %v2462 = vld [vmem:[%s6 + $0xb8] sm:$0xff]
  %v2463 = vld [vmem:[%s6 + $0xc0] sm:$0xff]
  %v2464 = vld [vmem:[%s6 + $0xc8] sm:$0xff]
  %v2465 = vld [vmem:[%s6 + $0xd0] sm:$0xff]
  %v2466 = vld [vmem:[%s6 + $0xd8] sm:$0xff]
  %v2467 = vld [vmem:[%s6 + $0xe0] sm:$0xff]
  %v2468 = vld [vmem:[%s6 + $0xe8] sm:$0xff]
  %v2469 = vld [vmem:[%s6 + $0xf0] sm:$0xff]
  %v2470 = vld [vmem:[%s6 + $0xf8] sm:$0xff]
  %v2471 = vld [vmem:[%s6 + $0x100] sm:$0xff]
  %v2472 = vld [vmem:[%s6 + $0x108] sm:$0xff]
  %v2473 = vld [vmem:[%s6 + $0x110] sm:$0xff]
  %v2474 = vld [vmem:[%s6 + $0x118] sm:$0xff]
  %v2475 = vld [vmem:[%s6 + $0x120] sm:$0xff]
  %v2476 = vld [vmem:[%s6 + $0x128] sm:$0xff]
  %v2477 = vld [vmem:[%s6 + $0x130] sm:$0xff]
  %v2478 = vld [vmem:[%s6 + $0x138] sm:$0xff]
  %v2479 = vld [vmem:[%s6 + $0x140] sm:$0xff]
  %v2480 = vld [vmem:[%s6 + $0x148] sm:$0xff]
  %v2481 = vld [vmem:[%s6 + $0x150] sm:$0xff]
  %v2482 = vld [vmem:[%s6 + $0x158] sm:$0xff]
  %v2483 = vld [vmem:[%s6 + $0x160] sm:$0xff]
  %v2484 = vld [vmem:[%s6 + $0x168] sm:$0xff]
  %v2485 = vld [vmem:[%s6 + $0x170] sm:$0xff]
  %v2486 = vld [vmem:[%s6 + $0x178] sm:$0xff]
  %2487 = vmatprep.subr.mxu0 %v2440
  %2488 = vmatpush1.msra.mxu0 %v2439
  %2489 = vmatprep.subr.mxu0 %v2443
  %2490 = vmatpush1.msra.mxu0 %v2442
  %2491 = vmatprep.subr.mxu0 %v2446
  %2492 = vmatpush1.msra.mxu0 %v2445
  %2493 = vmatprep.subr.mxu0 %v2449
  %2494 = vmatpush1.msra.mxu0 %v2448
  %2495 = vmatprep.subr.mxu0 %v2452
  %2496 = vmatpush1.msra.mxu0 %v2451
  %2497 = vmatprep.subr.mxu0 %v2455
  %2498 = vmatpush1.msra.mxu0 %v2454
  %2499 = vmatprep.subr.mxu0 %v2458
  %2500 = vmatpush1.msra.mxu0 %v2457
  %2501 = vmatprep.subr.mxu0 %v2461
  %2502 = vmatpush1.msra.mxu0 %v2460
  %2503 = vmatprep.subr.mxu0 %v2464
  %2504 = vmatpush1.msra.mxu0 %v2463
  %2505 = vmatprep.subr.mxu0 %v2467
  %2506 = vmatpush1.msra.mxu0 %v2466
  %2507 = vmatprep.subr.mxu0 %v2470
  %2508 = vmatpush1.msra.mxu0 %v2469
  %2509 = vmatprep.subr.mxu0 %v2473
  %2510 = vmatpush1.msra.mxu0 %v2472
  %2511 = vmatprep.subr.mxu0 %v2476
  %2512 = vmatpush1.msra.mxu0 %v2475
  %2513 = vmatprep.subr.mxu0 %v2479
  %2514 = vmatpush1.msra.mxu0 %v2478
  %2515 = vmatprep.subr.mxu0 %v2482
  %2516 = vmatpush1.msra.mxu0 %v2481
  %2517 = vmatprep.subr.mxu0 %v2485
  %2518 = vmatpush1.msra.mxu0 %v2484
  %2519 = vmatprep.subr.mxu0 0.0
  %2520 = vmatpush1.msra.mxu0 0.0
  %2521 = vmatprep.subr.mxu0 0.0
  %2522 = vmatpush1.msra.mxu0 0.0
  %2523 = vmatprep.subr.mxu0 0.0
  %2524 = vmatpush1.msra.mxu0 0.0
  %2525 = vmatprep.subr.mxu0 0.0
  %2526 = vmatpush1.msra.mxu0 0.0
  %2527 = vmatprep.subr.mxu0 0.0
  %2528 = vmatpush1.msra.mxu0 0.0
  %2529 = vmatprep.subr.mxu0 0.0
  %2530 = vmatpush1.msra.mxu0 0.0
  %2531 = vmatprep.subr.mxu0 0.0
  %2532 = vmatpush1.msra.mxu0 0.0
  %2533 = vmatprep.subr.mxu0 0.0
  %2534 = vmatpush1.msra.mxu0 0.0
  %2535 = vmatprep.subr.mxu0 0.0
  %2536 = vmatpush1.msra.mxu0 0.0
  %2537 = vmatprep.subr.mxu0 0.0
  %2538 = vmatpush1.msra.mxu0 0.0
  %2539 = vmatprep.subr.mxu0 0.0
  %2540 = vmatpush1.msra.mxu0 0.0
  %2541 = vmatprep.subr.mxu0 0.0
  %2542 = vmatpush1.msra.mxu0 0.0
  %2543 = vmatprep.subr.mxu0 0.0
  %2544 = vmatpush1.msra.mxu0 0.0
  %2545 = vmatprep.subr.mxu0 0.0
  %2546 = vmatpush1.msra.mxu0 0.0
  %2547 = vmatprep.subr.mxu0 0.0
  %2548 = vmatpush1.msra.mxu0 0.0
  %2549 = vmatprep.subr.mxu0 0.0
  %2550 = vmatpush1.msra.mxu0 0.0
  %2551 = vmatprep.mubr.f32.mxu0 0.0
  %2552 = vmatmul.mubr.f32.gmra.mrb[0].mxu0 0.0
  %v2553 = vpop.f32.mrb[0].mxu0
  %v2554 = vadd.f32 %v2424, %v2553
  %v2555 = vpop.f32.mrb[0].mxu0
  %v2556 = vadd.f32 %v2428, %v2555
  %2557 = vdwg.mxu0
  %2558 = vmatprep.subr.mxu0 0.0
  %2559 = vmatpush1.msra.mxu0 %v2441
  %2560 = vmatprep.subr.mxu0 0.0
  %2561 = vmatpush1.msra.mxu0 %v2444
  %2562 = vmatprep.subr.mxu0 0.0
  %2563 = vmatpush1.msra.mxu0 %v2447
  %2564 = vmatprep.subr.mxu0 0.0
  %2565 = vmatpush1.msra.mxu0 %v2450
  %2566 = vmatprep.subr.mxu0 0.0
  %2567 = vmatpush1.msra.mxu0 %v2453
  %2568 = vmatprep.subr.mxu0 0.0
  %2569 = vmatpush1.msra.mxu0 %v2456
  %2570 = vmatprep.subr.mxu0 0.0
  %2571 = vmatpush1.msra.mxu0 %v2459
  %2572 = vmatprep.subr.mxu0 0.0
  %2573 = vmatpush1.msra.mxu0 %v2462
  %2574 = vmatprep.subr.mxu0 0.0
  %2575 = vmatpush1.msra.mxu0 %v2465
  %2576 = vmatprep.subr.mxu0 0.0
  %2577 = vmatpush1.msra.mxu0 %v2468
  %2578 = vmatprep.subr.mxu0 0.0
  %2579 = vmatpush1.msra.mxu0 %v2471
  %2580 = vmatprep.subr.mxu0 0.0
  %2581 = vmatpush1.msra.mxu0 %v2474
  %2582 = vmatprep.subr.mxu0 0.0
  %2583 = vmatpush1.msra.mxu0 %v2477
  %2584 = vmatprep.subr.mxu0 0.0
  %2585 = vmatpush1.msra.mxu0 %v2480
  %2586 = vmatprep.subr.mxu0 0.0
  %2587 = vmatpush1.msra.mxu0 %v2483
  %2588 = vmatprep.subr.mxu0 0.0
  %2589 = vmatpush1.msra.mxu0 %v2486
  %2590 = vmatprep.subr.mxu0 0.0
  %2591 = vmatpush1.msra.mxu0 0.0
  %2592 = vmatprep.subr.mxu0 0.0
  %2593 = vmatpush1.msra.mxu0 0.0
  %2594 = vmatprep.subr.mxu0 0.0
  %2595 = vmatpush1.msra.mxu0 0.0
  %2596 = vmatprep.subr.mxu0 0.0
  %2597 = vmatpush1.msra.mxu0 0.0
  %2598 = vmatprep.subr.mxu0 0.0
  %2599 = vmatpush1.msra.mxu0 0.0
  %2600 = vmatprep.subr.mxu0 0.0
  %2601 = vmatpush1.msra.mxu0 0.0
  %2602 = vmatprep.subr.mxu0 0.0
  %2603 = vmatpush1.msra.mxu0 0.0
  %2604 = vmatprep.subr.mxu0 0.0
  %2605 = vmatpush1.msra.mxu0 0.0
  %2606 = vmatprep.subr.mxu0 0.0
  %2607 = vmatpush1.msra.mxu0 0.0
  %2608 = vmatprep.subr.mxu0 0.0
  %2609 = vmatpush1.msra.mxu0 0.0
  %2610 = vmatprep.subr.mxu0 0.0
  %2611 = vmatpush1.msra.mxu0 0.0
  %2612 = vmatprep.subr.mxu0 0.0
  %2613 = vmatpush1.msra.mxu0 0.0
  %2614 = vmatprep.subr.mxu0 0.0
  %2615 = vmatpush1.msra.mxu0 0.0
  %2616 = vmatprep.subr.mxu0 0.0
  %2617 = vmatpush1.msra.mxu0 0.0
  %2618 = vmatprep.subr.mxu0 0.0
  %2619 = vmatpush1.msra.mxu0 0.0
  %2620 = vmatprep.subr.mxu0 0.0
  %2621 = vmatpush1.msra.mxu0 0.0
  %2622 = vmatprep.mubr.f32.mxu0 0.0
  %2623 = vmatmul.mubr.f32.gmra.mrb[0].mxu0 0.0
  %v2624 = vpop.f32.mrb[0].mxu0
  %v2625 = vadd.f32 %v2432, %v2624
  %v2626 = vpop.f32.mrb[0].mxu0
  %2627 = vdwg.mxu0
  %v2628 = vadd.f32 %v2436, %v2554
  %v2629 = vxor.u32 %v2628, 2147483648
  %v2630 = vmul.f32 %v2629, 1.442695
  %v2631 = vpow.pop %v2630
  %v2632 = vadd.f32 %v2631, 1.0
  %v2633 = vrcp.pop %v2632
  %v2634 = vmul.f32 1.0, %v2633
  %v2635 = vadd.f32 %v2437, %v2556
  %v2636 = vxor.u32 %v2635, 2147483648
  %v2637 = vmul.f32 %v2636, 1.442695
  %v2638 = vpow.pop %v2637
  %v2639 = vadd.f32 %v2638, 1.0
  %v2640 = vrcp.pop %v2639
  %v2641 = vmul.f32 1.0, %v2640
  %v2642 = vmul.f32 %v2634, %v2625
  %v2643 = vadd.f32 %v2438, %v2642
  %v2644 = vtanh.pop %v2643
  %v2645 = vsub.f32 1.0, %v2641
  %v2646 = vmul.f32 %v2645, %v2644
  %v2647 = vmul.f32 %v2641, 0.0
  %v2648 = vadd.f32 %v2646, %v2647
  %2649 = vst [vmem:[#allocation3] sm:$0xff] %v2648
  %v2650 = vld [vmem:[%s592] sm:$0xff]
  %v2651 = vld [vmem:[%s592 + $0x8] sm:$0xff]
  %v2652 = vld [vmem:[%s592 + $0x10] sm:$0xff]
  %v2653 = vld [vmem:[%s6] sm:$0xff]
  %v2654 = vld [vmem:[%s6 + $0x8] sm:$0xff]
  %v2655 = vld [vmem:[%s6 + $0x10] sm:$0xff]
  %v2656 = vld [vmem:[%s6 + $0x18] sm:$0xff]
  %v2657 = vld [vmem:[%s6 + $0x20] sm:$0xff]
  %v2658 = vld [vmem:[%s6 + $0x28] sm:$0xff]
  %v2659 = vld [vmem:[%s6 + $0x30] sm:$0xff]
  %v2660 = vld [vmem:[%s6 + $0x38] sm:$0xff]
  %v2661 = vld [vmem:[%s6 + $0x40] sm:$0xff]
  %v2662 = vld [vmem:[%s6 + $0x48] sm:$0xff]
  %v2663 = vld [vmem:[%s6 + $0x50] sm:$0xff]
  %v2664 = vld [vmem:[%s6 + $0x58] sm:$0xff]
  %v2665 = vld [vmem:[%s6 + $0x60] sm:$0xff]
  %v2666 = vld [vmem:[%s6 + $0x68] sm:$0xff]
  %v2667 = vld [vmem:[%s6 + $0x70] sm:$0xff]
  %v2668 = vld [vmem:[%s6 + $0x78] sm:$0xff]
  %v2669 = vld [vmem:[%s6 + $0x80] sm:$0xff]
  %v2670 = vld [vmem:[%s6 + $0x88] sm:$0xff]
  %v2671 = vld [vmem:[%s6 + $0x90] sm:$0xff]
  %v2672 = vld [vmem:[%s6 + $0x98] sm:$0xff]
  %v2673 = vld [vmem:[%s6 + $0xa0] sm:$0xff]
  %v2674 = vld [vmem:[%s6 + $0xa8] sm:$0xff]
  %v2675 = vld [vmem:[%s6 + $0xb0] sm:$0xff]
  %v2676 = vld [vmem:[%s6 + $0xb8] sm:$0xff]
  %v2677 = vld [vmem:[%s6 + $0xc0] sm:$0xff]
  %v2678 = vld [vmem:[%s6 + $0xc8] sm:$0xff]
  %v2679 = vld [vmem:[%s6 + $0xd0] sm:$0xff]
  %v2680 = vld [vmem:[%s6 + $0xd8] sm:$0xff]
  %v2681 = vld [vmem:[%s6 + $0xe0] sm:$0xff]
  %v2682 = vld [vmem:[%s6 + $0xe8] sm:$0xff]
  %v2683 = vld [vmem:[%s6 + $0xf0] sm:$0xff]
  %v2684 = vld [vmem:[%s6 + $0xf8] sm:$0xff]
  %v2685 = vld [vmem:[%s6 + $0x100] sm:$0xff]
  %v2686 = vld [vmem:[%s6 + $0x108] sm:$0xff]
  %v2687 = vld [vmem:[%s6 + $0x110] sm:$0xff]
  %v2688 = vld [vmem:[%s6 + $0x118] sm:$0xff]
  %v2689 = vld [vmem:[%s6 + $0x120] sm:$0xff]
  %v2690 = vld [vmem:[%s6 + $0x128] sm:$0xff]
  %v2691 = vld [vmem:[%s6 + $0x130] sm:$0xff]
  %v2692 = vld [vmem:[%s6 + $0x138] sm:$0xff]
  %v2693 = vld [vmem:[%s6 + $0x140] sm:$0xff]
  %v2694 = vld [vmem:[%s6 + $0x148] sm:$0xff]
  %v2695 = vld [vmem:[%s6 + $0x150] sm:$0xff]
  %v2696 = vld [vmem:[%s6 + $0x158] sm:$0xff]
  %v2697 = vld [vmem:[%s6 + $0x160] sm:$0xff]
  %v2698 = vld [vmem:[%s6 + $0x168] sm:$0xff]
  %v2699 = vld [vmem:[%s6 + $0x170] sm:$0xff]
  %v2700 = vld [vmem:[%s6 + $0x178] sm:$0xff]
  %2701 = vmatprep.subr.mxu0 %v2654
  %2702 = vmatpush1.msra.mxu0 %v2653
  %2703 = vmatprep.subr.mxu0 %v2657
  %2704 = vmatpush1.msra.mxu0 %v2656
  %2705 = vmatprep.subr.mxu0 %v2660
  %2706 = vmatpush1.msra.mxu0 %v2659
  %2707 = vmatprep.subr.mxu0 %v2663
  %2708 = vmatpush1.msra.mxu0 %v2662
  %2709 = vmatprep.subr.mxu0 %v2666
  %2710 = vmatpush1.msra.mxu0 %v2665
  %2711 = vmatprep.subr.mxu0 %v2669
  %2712 = vmatpush1.msra.mxu0 %v2668
  %2713 = vmatprep.subr.mxu0 %v2672
  %2714 = vmatpush1.msra.mxu0 %v2671
  %2715 = vmatprep.subr.mxu0 %v2675
  %2716 = vmatpush1.msra.mxu0 %v2674
  %2717 = vmatprep.subr.mxu0 %v2678
  %2718 = vmatpush1.msra.mxu0 %v2677
  %2719 = vmatprep.subr.mxu0 %v2681
  %2720 = vmatpush1.msra.mxu0 %v2680
  %2721 = vmatprep.subr.mxu0 %v2684
  %2722 = vmatpush1.msra.mxu0 %v2683
  %2723 = vmatprep.subr.mxu0 %v2687
  %2724 = vmatpush1.msra.mxu0 %v2686
  %2725 = vmatprep.subr.mxu0 %v2690
  %2726 = vmatpush1.msra.mxu0 %v2689
  %2727 = vmatprep.subr.mxu0 %v2693
  %2728 = vmatpush1.msra.mxu0 %v2692
  %2729 = vmatprep.subr.mxu0 %v2696
  %2730 = vmatpush1.msra.mxu0 %v2695
  %2731 = vmatprep.subr.mxu0 %v2699
  %2732 = vmatpush1.msra.mxu0 %v2698
  %2733 = vmatprep.subr.mxu0 0.0
  %2734 = vmatpush1.msra.mxu0 0.0
  %2735 = vmatprep.subr.mxu0 0.0
  %2736 = vmatpush1.msra.mxu0 0.0
  %2737 = vmatprep.subr.mxu0 0.0
  %2738 = vmatpush1.msra.mxu0 0.0
  %2739 = vmatprep.subr.mxu0 0.0
  %2740 = vmatpush1.msra.mxu0 0.0
  %2741 = vmatprep.subr.mxu0 0.0
  %2742 = vmatpush1.msra.mxu0 0.0
  %2743 = vmatprep.subr.mxu0 0.0
  %2744 = vmatpush1.msra.mxu0 0.0
  %2745 = vmatprep.subr.mxu0 0.0
  %2746 = vmatpush1.msra.mxu0 0.0
  %2747 = vmatprep.subr.mxu0 0.0
  %2748 = vmatpush1.msra.mxu0 0.0
  %2749 = vmatprep.subr.mxu0 0.0
  %2750 = vmatpush1.msra.mxu0 0.0
  %2751 = vmatprep.subr.mxu0 0.0
  %2752 = vmatpush1.msra.mxu0 0.0
  %2753 = vmatprep.subr.mxu0 0.0
  %2754 = vmatpush1.msra.mxu0 0.0
  %2755 = vmatprep.subr.mxu0 0.0
  %2756 = vmatpush1.msra.mxu0 0.0
  %2757 = vmatprep.subr.mxu0 0.0
  %2758 = vmatpush1.msra.mxu0 0.0
  %2759 = vmatprep.subr.mxu0 0.0
  %2760 = vmatpush1.msra.mxu0 0.0
  %2761 = vmatprep.subr.mxu0 0.0
  %2762 = vmatpush1.msra.mxu0 0.0
  %2763 = vmatprep.subr.mxu0 0.0
  %2764 = vmatpush1.msra.mxu0 0.0
  %2765 = vmatprep.mubr.f32.mxu0 0.0
  %2766 = vmatmul.mubr.f32.gmra.mrb[0].mxu0 %v2648
  %v2767 = vpop.f32.mrb[0].mxu0
  %v2768 = vadd.f32 %v2424, %v2767
  %v2769 = vpop.f32.mrb[0].mxu0
  %v2770 = vadd.f32 %v2428, %v2769
  %2771 = vdwg.mxu0
  %2772 = vmatprep.subr.mxu0 0.0
  %2773 = vmatpush1.msra.mxu0 %v2655
  %2774 = vmatprep.subr.mxu0 0.0
  %2775 = vmatpush1.msra.mxu0 %v2658
  %2776 = vmatprep.subr.mxu0 0.0
  %2777 = vmatpush1.msra.mxu0 %v2661
  %2778 = vmatprep.subr.mxu0 0.0
  %2779 = vmatpush1.msra.mxu0 %v2664
  %2780 = vmatprep.subr.mxu0 0.0
  %2781 = vmatpush1.msra.mxu0 %v2667
  %2782 = vmatprep.subr.mxu0 0.0
  %2783 = vmatpush1.msra.mxu0 %v2670
  %2784 = vmatprep.subr.mxu0 0.0
  %2785 = vmatpush1.msra.mxu0 %v2673
  %2786 = vmatprep.subr.mxu0 0.0
  %2787 = vmatpush1.msra.mxu0 %v2676
  %2788 = vmatprep.subr.mxu0 0.0
  %2789 = vmatpush1.msra.mxu0 %v2679
  %2790 = vmatprep.subr.mxu0 0.0
  %2791 = vmatpush1.msra.mxu0 %v2682
  %2792 = vmatprep.subr.mxu0 0.0
  %2793 = vmatpush1.msra.mxu0 %v2685
  %2794 = vmatprep.subr.mxu0 0.0
  %2795 = vmatpush1.msra.mxu0 %v2688
  %2796 = vmatprep.subr.mxu0 0.0
  %2797 = vmatpush1.msra.mxu0 %v2691
  %2798 = vmatprep.subr.mxu0 0.0
  %2799 = vmatpush1.msra.mxu0 %v2694
  %2800 = vmatprep.subr.mxu0 0.0
  %2801 = vmatpush1.msra.mxu0 %v2697
  %2802 = vmatprep.subr.mxu0 0.0
  %2803 = vmatpush1.msra.mxu0 %v2700
  %2804 = vmatprep.subr.mxu0 0.0
  %2805 = vmatpush1.msra.mxu0 0.0
  %2806 = vmatprep.subr.mxu0 0.0
  %2807 = vmatpush1.msra.mxu0 0.0
  %2808 = vmatprep.subr.mxu0 0.0
  %2809 = vmatpush1.msra.mxu0 0.0
  %2810 = vmatprep.subr.mxu0 0.0
  %2811 = vmatpush1.msra.mxu0 0.0
  %2812 = vmatprep.subr.mxu0 0.0
  %2813 = vmatpush1.msra.mxu0 0.0
  %2814 = vmatprep.subr.mxu0 0.0
  %2815 = vmatpush1.msra.mxu0 0.0
  %2816 = vmatprep.subr.mxu0 0.0
  %2817 = vmatpush1.msra.mxu0 0.0
  %2818 = vmatprep.subr.mxu0 0.0
  %2819 = vmatpush1.msra.mxu0 0.0
  %2820 = vmatprep.subr.mxu0 0.0
  %2821 = vmatpush1.msra.mxu0 0.0
  %2822 = vmatprep.subr.mxu0 0.0
  %2823 = vmatpush1.msra.mxu0 0.0
  %2824 = vmatprep.subr.mxu0 0.0
  %2825 = vmatpush1.msra.mxu0 0.0
  %2826 = vmatprep.subr.mxu0 0.0
  %2827 = vmatpush1.msra.mxu0 0.0
  %2828 = vmatprep.subr.mxu0 0.0
  %2829 = vmatpush1.msra.mxu0 0.0
  %2830 = vmatprep.subr.mxu0 0.0
  %2831 = vmatpush1.msra.mxu0 0.0
  %2832 = vmatprep.subr.mxu0 0.0
  %2833 = vmatpush1.msra.mxu0 0.0
  %2834 = vmatprep.subr.mxu0 0.0
  %2835 = vmatpush1.msra.mxu0 0.0
  %2836 = vmatprep.mubr.f32.mxu0 0.0
  %2837 = vmatmul.mubr.f32.gmra.mrb[0].mxu0 %v2648
  %v2838 = vpop.f32.mrb[0].mxu0
  %v2839 = vadd.f32 %v2432, %v2838
  %v2840 = vpop.f32.mrb[0].mxu0
  %2841 = vdwg.mxu0
  %v2842 = vadd.f32 %v2650, %v2768
  %v2843 = vxor.u32 %v2842, 2147483648
  %v2844 = vmul.f32 %v2843, 1.442695
  %v2845 = vpow.pop %v2844
  %v2846 = vadd.f32 %v2845, 1.0
  %v2847 = vrcp.pop %v2846
  %v2848 = vmul.f32 1.0, %v2847
  %v2849 = vadd.f32 %v2651, %v2770
  %v2850 = vxor.u32 %v2849, 2147483648
  %v2851 = vmul.f32 %v2850, 1.442695
  %v2852 = vpow.pop %v2851
  %v2853 = vadd.f32 %v2852, 1.0
  %v2854 = vrcp.pop %v2853
  %v2855 = vmul.f32 1.0, %v2854
  %v2856 = vmul.f32 %v2848, %v2839
  %v2857 = vadd.f32 %v2652, %v2856
  %v2858 = vtanh.pop %v2857
  %v2859 = vsub.f32 1.0, %v2855
  %v2860 = vmul.f32 %v2859, %v2858
  %v2861 = vmul.f32 %v2855, %v2648
  %v2862 = vadd.f32 %v2860, %v2861
  %s2863 = scalar_lea.vmem [#allocation3], 8
  %2864 = vst [vmem:[%s2863] sm:$0xff] %v2862
  %v2865 = vld [vmem:[%s808] sm:$0xff]
  %v2866 = vld [vmem:[%s808 + $0x8] sm:$0xff]
  %v2867 = vld [vmem:[%s808 + $0x10] sm:$0xff]
  %v2868 = vld [vmem:[%s6] sm:$0xff]
  %v2869 = vld [vmem:[%s6 + $0x8] sm:$0xff]
  %v2870 = vld [vmem:[%s6 + $0x10] sm:$0xff]
  %v2871 = vld [vmem:[%s6 + $0x18] sm:$0xff]
  %v2872 = vld [vmem:[%s6 + $0x20] sm:$0xff]
  %v2873 = vld [vmem:[%s6 + $0x28] sm:$0xff]
  %v2874 = vld [vmem:[%s6 + $0x30] sm:$0xff]
  %v2875 = vld [vmem:[%s6 + $0x38] sm:$0xff]
  %v2876 = vld [vmem:[%s6 + $0x40] sm:$0xff]
  %v2877 = vld [vmem:[%s6 + $0x48] sm:$0xff]
  %v2878 = vld [vmem:[%s6 + $0x50] sm:$0xff]
  %v2879 = vld [vmem:[%s6 + $0x58] sm:$0xff]
  %v2880 = vld [vmem:[%s6 + $0x60] sm:$0xff]
  %v2881 = vld [vmem:[%s6 + $0x68] sm:$0xff]
  %v2882 = vld [vmem:[%s6 + $0x70] sm:$0xff]
  %v2883 = vld [vmem:[%s6 + $0x78] sm:$0xff]
  %v2884 = vld [vmem:[%s6 + $0x80] sm:$0xff]
  %v2885 = vld [vmem:[%s6 + $0x88] sm:$0xff]
  %v2886 = vld [vmem:[%s6 + $0x90] sm:$0xff]
  %v2887 = vld [vmem:[%s6 + $0x98] sm:$0xff]
  %v2888 = vld [vmem:[%s6 + $0xa0] sm:$0xff]
  %v2889 = vld [vmem:[%s6 + $0xa8] sm:$0xff]
  %v2890 = vld [vmem:[%s6 + $0xb0] sm:$0xff]
  %v2891 = vld [vmem:[%s6 + $0xb8] sm:$0xff]
  %v2892 = vld [vmem:[%s6 + $0xc0] sm:$0xff]
  %v2893 = vld [vmem:[%s6 + $0xc8] sm:$0xff]
  %v2894 = vld [vmem:[%s6 + $0xd0] sm:$0xff]
  %v2895 = vld [vmem:[%s6 + $0xd8] sm:$0xff]
  %v2896 = vld [vmem:[%s6 + $0xe0] sm:$0xff]
  %v2897 = vld [vmem:[%s6 + $0xe8] sm:$0xff]
  %v2898 = vld [vmem:[%s6 + $0xf0] sm:$0xff]
  %v2899 = vld [vmem:[%s6 + $0xf8] sm:$0xff]
  %v2900 = vld [vmem:[%s6 + $0x100] sm:$0xff]
  %v2901 = vld [vmem:[%s6 + $0x108] sm:$0xff]
  %v2902 = vld [vmem:[%s6 + $0x110] sm:$0xff]
  %v2903 = vld [vmem:[%s6 + $0x118] sm:$0xff]
  %v2904 = vld [vmem:[%s6 + $0x120] sm:$0xff]
  %v2905 = vld [vmem:[%s6 + $0x128] sm:$0xff]
  %v2906 = vld [vmem:[%s6 + $0x130] sm:$0xff]
  %v2907 = vld [vmem:[%s6 + $0x138] sm:$0xff]
  %v2908 = vld [vmem:[%s6 + $0x140] sm:$0xff]
  %v2909 = vld [vmem:[%s6 + $0x148] sm:$0xff]
  %v2910 = vld [vmem:[%s6 + $0x150] sm:$0xff]
  %v2911 = vld [vmem:[%s6 + $0x158] sm:$0xff]
  %v2912 = vld [vmem:[%s6 + $0x160] sm:$0xff]
  %v2913 = vld [vmem:[%s6 + $0x168] sm:$0xff]
  %v2914 = vld [vmem:[%s6 + $0x170] sm:$0xff]
  %v2915 = vld [vmem:[%s6 + $0x178] sm:$0xff]
  %2916 = vmatprep.subr.mxu0 %v2869
  %2917 = vmatpush1.msra.mxu0 %v2868
  %2918 = vmatprep.subr.mxu0 %v2872
  %2919 = vmatpush1.msra.mxu0 %v2871
  %2920 = vmatprep.subr.mxu0 %v2875
  %2921 = vmatpush1.msra.mxu0 %v2874
  %2922 = vmatprep.subr.mxu0 %v2878
  %2923 = vmatpush1.msra.mxu0 %v2877
  %2924 = vmatprep.subr.mxu0 %v2881
  %2925 = vmatpush1.msra.mxu0 %v2880
  %2926 = vmatprep.subr.mxu0 %v2884
  %2927 = vmatpush1.msra.mxu0 %v2883
  %2928 = vmatprep.subr.mxu0 %v2887
  %2929 = vmatpush1.msra.mxu0 %v2886
  %2930 = vmatprep.subr.mxu0 %v2890
  %2931 = vmatpush1.msra.mxu0 %v2889
  %2932 = vmatprep.subr.mxu0 %v2893
  %2933 = vmatpush1.msra.mxu0 %v2892
  %2934 = vmatprep.subr.mxu0 %v2896
  %2935 = vmatpush1.msra.mxu0 %v2895
  %2936 = vmatprep.subr.mxu0 %v2899
  %2937 = vmatpush1.msra.mxu0 %v2898
  %2938 = vmatprep.subr.mxu0 %v2902
  %2939 = vmatpush1.msra.mxu0 %v2901
  %2940 = vmatprep.subr.mxu0 %v2905
  %2941 = vmatpush1.msra.mxu0 %v2904
  %2942 = vmatprep.subr.mxu0 %v2908
  %2943 = vmatpush1.msra.mxu0 %v2907
  %2944 = vmatprep.subr.mxu0 %v2911
  %2945 = vmatpush1.msra.mxu0 %v2910
  %2946 = vmatprep.subr.mxu0 %v2914
  %2947 = vmatpush1.msra.mxu0 %v2913
  %2948 = vmatprep.subr.mxu0 0.0
  %2949 = vmatpush1.msra.mxu0 0.0
  %2950 = vmatprep.subr.mxu0 0.0
  %2951 = vmatpush1.msra.mxu0 0.0
  %2952 = vmatprep.subr.mxu0 0.0
  %2953 = vmatpush1.msra.mxu0 0.0
  %2954 = vmatprep.subr.mxu0 0.0
  %2955 = vmatpush1.msra.mxu0 0.0
  %2956 = vmatprep.subr.mxu0 0.0
  %2957 = vmatpush1.msra.mxu0 0.0
  %2958 = vmatprep.subr.mxu0 0.0
  %2959 = vmatpush1.msra.mxu0 0.0
  %2960 = vmatprep.subr.mxu0 0.0
  %2961 = vmatpush1.msra.mxu0 0.0
  %2962 = vmatprep.subr.mxu0 0.0
  %2963 = vmatpush1.msra.mxu0 0.0
  %2964 = vmatprep.subr.mxu0 0.0
  %2965 = vmatpush1.msra.mxu0 0.0
  %2966 = vmatprep.subr.mxu0 0.0
  %2967 = vmatpush1.msra.mxu0 0.0
  %2968 = vmatprep.subr.mxu0 0.0
  %2969 = vmatpush1.msra.mxu0 0.0
  %2970 = vmatprep.subr.mxu0 0.0
  %2971 = vmatpush1.msra.mxu0 0.0
  %2972 = vmatprep.subr.mxu0 0.0
  %2973 = vmatpush1.msra.mxu0 0.0
  %2974 = vmatprep.subr.mxu0 0.0
  %2975 = vmatpush1.msra.mxu0 0.0
  %2976 = vmatprep.subr.mxu0 0.0
  %2977 = vmatpush1.msra.mxu0 0.0
  %2978 = vmatprep.subr.mxu0 0.0
  %2979 = vmatpush1.msra.mxu0 0.0
  %2980 = vmatprep.mubr.f32.mxu0 0.0
  %2981 = vmatmul.mubr.f32.gmra.mrb[0].mxu0 %v2862
  %v2982 = vpop.f32.mrb[0].mxu0
  %v2983 = vadd.f32 %v2424, %v2982
  %v2984 = vpop.f32.mrb[0].mxu0
  %v2985 = vadd.f32 %v2428, %v2984
  %2986 = vdwg.mxu0
  %2987 = vmatprep.subr.mxu0 0.0
  %2988 = vmatpush1.msra.mxu0 %v2870
  %2989 = vmatprep.subr.mxu0 0.0
  %2990 = vmatpush1.msra.mxu0 %v2873
  %2991 = vmatprep.subr.mxu0 0.0
  %2992 = vmatpush1.msra.mxu0 %v2876
  %2993 = vmatprep.subr.mxu0 0.0
  %2994 = vmatpush1.msra.mxu0 %v2879
  %2995 = vmatprep.subr.mxu0 0.0
  %2996 = vmatpush1.msra.mxu0 %v2882
  %2997 = vmatprep.subr.mxu0 0.0
  %2998 = vmatpush1.msra.mxu0 %v2885
  %2999 = vmatprep.subr.mxu0 0.0
  %3000 = vmatpush1.msra.mxu0 %v2888
  %3001 = vmatprep.subr.mxu0 0.0
  %3002 = vmatpush1.msra.mxu0 %v2891
  %3003 = vmatprep.subr.mxu0 0.0
  %3004 = vmatpush1.msra.mxu0 %v2894
  %3005 = vmatprep.subr.mxu0 0.0
  %3006 = vmatpush1.msra.mxu0 %v2897
  %3007 = vmatprep.subr.mxu0 0.0
  %3008 = vmatpush1.msra.mxu0 %v2900
  %3009 = vmatprep.subr.mxu0 0.0
  %3010 = vmatpush1.msra.mxu0 %v2903
  %3011 = vmatprep.subr.mxu0 0.0
  %3012 = vmatpush1.msra.mxu0 %v2906
  %3013 = vmatprep.subr.mxu0 0.0
  %3014 = vmatpush1.msra.mxu0 %v2909
  %3015 = vmatprep.subr.mxu0 0.0
  %3016 = vmatpush1.msra.mxu0 %v2912
  %3017 = vmatprep.subr.mxu0 0.0
  %3018 = vmatpush1.msra.mxu0 %v2915
  %3019 = vmatprep.subr.mxu0 0.0
  %3020 = vmatpush1.msra.mxu0 0.0
  %3021 = vmatprep.subr.mxu0 0.0
  %3022 = vmatpush1.msra.mxu0 0.0
  %3023 = vmatprep.subr.mxu0 0.0
  %3024 = vmatpush1.msra.mxu0 0.0
  %3025 = vmatprep.subr.mxu0 0.0
  %3026 = vmatpush1.msra.mxu0 0.0
  %3027 = vmatprep.subr.mxu0 0.0
  %3028 = vmatpush1.msra.mxu0 0.0
  %3029 = vmatprep.subr.mxu0 0.0
  %3030 = vmatpush1.msra.mxu0 0.0
  %3031 = vmatprep.subr.mxu0 0.0
  %3032 = vmatpush1.msra.mxu0 0.0
  %3033 = vmatprep.subr.mxu0 0.0
  %3034 = vmatpush1.msra.mxu0 0.0
  %3035 = vmatprep.subr.mxu0 0.0
  %3036 = vmatpush1.msra.mxu0 0.0
  %3037 = vmatprep.subr.mxu0 0.0
  %3038 = vmatpush1.msra.mxu0 0.0
  %3039 = vmatprep.subr.mxu0 0.0
  %3040 = vmatpush1.msra.mxu0 0.0
  %3041 = vmatprep.subr.mxu0 0.0
  %3042 = vmatpush1.msra.mxu0 0.0
  %3043 = vmatprep.subr.mxu0 0.0
  %3044 = vmatpush1.msra.mxu0 0.0
  %3045 = vmatprep.subr.mxu0 0.0
  %3046 = vmatpush1.msra.mxu0 0.0
  %3047 = vmatprep.subr.mxu0 0.0
  %3048 = vmatpush1.msra.mxu0 0.0
  %3049 = vmatprep.subr.mxu0 0.0
  %3050 = vmatpush1.msra.mxu0 0.0
  %3051 = vmatprep.mubr.f32.mxu0 0.0
  %3052 = vmatmul.mubr.f32.gmra.mrb[0].mxu0 %v2862
  %v3053 = vpop.f32.mrb[0].mxu0
  %v3054 = vadd.f32 %v2432, %v3053
  %v3055 = vpop.f32.mrb[0].mxu0
  %3056 = vdwg.mxu0
  %v3057 = vadd.f32 %v2865, %v2983
  %v3058 = vxor.u32 %v3057, 2147483648
  %v3059 = vmul.f32 %v3058, 1.442695
  %v3060 = vpow.pop %v3059
  %v3061 = vadd.f32 %v3060, 1.0
  %v3062 = vrcp.pop %v3061
  %v3063 = vmul.f32 1.0, %v3062
  %v3064 = vadd.f32 %v2866, %v2985
  %v3065 = vxor.u32 %v3064, 2147483648
  %v3066 = vmul.f32 %v3065, 1.442695
  %v3067 = vpow.pop %v3066
  %v3068 = vadd.f32 %v3067, 1.0
  %v3069 = vrcp.pop %v3068
  %v3070 = vmul.f32 1.0, %v3069
  %v3071 = vmul.f32 %v3063, %v3054
  %v3072 = vadd.f32 %v2867, %v3071
  %v3073 = vtanh.pop %v3072
  %v3074 = vsub.f32 1.0, %v3070
  %v3075 = vmul.f32 %v3074, %v3073
  %v3076 = vmul.f32 %v3070, %v2862
  %v3077 = vadd.f32 %v3075, %v3076
  %s3078 = scalar_lea.vmem [#allocation3], 16
  %3079 = vst [vmem:[%s3078] sm:$0xff] %v3077
  %v3080 = vld [vmem:[%s1024] sm:$0xff]
  %v3081 = vld [vmem:[%s1024 + $0x8] sm:$0xff]
  %v3082 = vld [vmem:[%s1024 + $0x10] sm:$0xff]
  %v3083 = vld [vmem:[%s6] sm:$0xff]
  %v3084 = vld [vmem:[%s6 + $0x8] sm:$0xff]
  %v3085 = vld [vmem:[%s6 + $0x10] sm:$0xff]
  %v3086 = vld [vmem:[%s6 + $0x18] sm:$0xff]
  %v3087 = vld [vmem:[%s6 + $0x20] sm:$0xff]
  %v3088 = vld [vmem:[%s6 + $0x28] sm:$0xff]
  %v3089 = vld [vmem:[%s6 + $0x30] sm:$0xff]
  %v3090 = vld [vmem:[%s6 + $0x38] sm:$0xff]
  %v3091 = vld [vmem:[%s6 + $0x40] sm:$0xff]
  %v3092 = vld [vmem:[%s6 + $0x48] sm:$0xff]
  %v3093 = vld [vmem:[%s6 + $0x50] sm:$0xff]
  %v3094 = vld [vmem:[%s6 + $0x58] sm:$0xff]
  %v3095 = vld [vmem:[%s6 + $0x60] sm:$0xff]
  %v3096 = vld [vmem:[%s6 + $0x68] sm:$0xff]
  %v3097 = vld [vmem:[%s6 + $0x70] sm:$0xff]
  %v3098 = vld [vmem:[%s6 + $0x78] sm:$0xff]
  %v3099 = vld [vmem:[%s6 + $0x80] sm:$0xff]
  %v3100 = vld [vmem:[%s6 + $0x88] sm:$0xff]
  %v3101 = vld [vmem:[%s6 + $0x90] sm:$0xff]
  %v3102 = vld [vmem:[%s6 + $0x98] sm:$0xff]
  %v3103 = vld [vmem:[%s6 + $0xa0] sm:$0xff]
  %v3104 = vld [vmem:[%s6 + $0xa8] sm:$0xff]
  %v3105 = vld [vmem:[%s6 + $0xb0] sm:$0xff]
  %v3106 = vld [vmem:[%s6 + $0xb8] sm:$0xff]
  %v3107 = vld [vmem:[%s6 + $0xc0] sm:$0xff]
  %v3108 = vld [vmem:[%s6 + $0xc8] sm:$0xff]
  %v3109 = vld [vmem:[%s6 + $0xd0] sm:$0xff]
  %v3110 = vld [vmem:[%s6 + $0xd8] sm:$0xff]
  %v3111 = vld [vmem:[%s6 + $0xe0] sm:$0xff]
  %v3112 = vld [vmem:[%s6 + $0xe8] sm:$0xff]
  %v3113 = vld [vmem:[%s6 + $0xf0] sm:$0xff]
  %v3114 = vld [vmem:[%s6 + $0xf8] sm:$0xff]
  %v3115 = vld [vmem:[%s6 + $0x100] sm:$0xff]
  %v3116 = vld [vmem:[%s6 + $0x108] sm:$0xff]
  %v3117 = vld [vmem:[%s6 + $0x110] sm:$0xff]
  %v3118 = vld [vmem:[%s6 + $0x118] sm:$0xff]
  %v3119 = vld [vmem:[%s6 + $0x120] sm:$0xff]
  %v3120 = vld [vmem:[%s6 + $0x128] sm:$0xff]
  %v3121 = vld [vmem:[%s6 + $0x130] sm:$0xff]
  %v3122 = vld [vmem:[%s6 + $0x138] sm:$0xff]
  %v3123 = vld [vmem:[%s6 + $0x140] sm:$0xff]
  %v3124 = vld [vmem:[%s6 + $0x148] sm:$0xff]
  %v3125 = vld [vmem:[%s6 + $0x150] sm:$0xff]
  %v3126 = vld [vmem:[%s6 + $0x158] sm:$0xff]
  %v3127 = vld [vmem:[%s6 + $0x160] sm:$0xff]
  %v3128 = vld [vmem:[%s6 + $0x168] sm:$0xff]
  %v3129 = vld [vmem:[%s6 + $0x170] sm:$0xff]
  %v3130 = vld [vmem:[%s6 + $0x178] sm:$0xff]
  %3131 = vmatprep.subr.mxu0 %v3084
  %3132 = vmatpush1.msra.mxu0 %v3083
  %3133 = vmatprep.subr.mxu0 %v3087
  %3134 = vmatpush1.msra.mxu0 %v3086
  %3135 = vmatprep.subr.mxu0 %v3090
  %3136 = vmatpush1.msra.mxu0 %v3089
  %3137 = vmatprep.subr.mxu0 %v3093
  %3138 = vmatpush1.msra.mxu0 %v3092
  %3139 = vmatprep.subr.mxu0 %v3096
  %3140 = vmatpush1.msra.mxu0 %v3095
  %3141 = vmatprep.subr.mxu0 %v3099
  %3142 = vmatpush1.msra.mxu0 %v3098
  %3143 = vmatprep.subr.mxu0 %v3102
  %3144 = vmatpush1.msra.mxu0 %v3101
  %3145 = vmatprep.subr.mxu0 %v3105
  %3146 = vmatpush1.msra.mxu0 %v3104
  %3147 = vmatprep.subr.mxu0 %v3108
  %3148 = vmatpush1.msra.mxu0 %v3107
  %3149 = vmatprep.subr.mxu0 %v3111
  %3150 = vmatpush1.msra.mxu0 %v3110
  %3151 = vmatprep.subr.mxu0 %v3114
  %3152 = vmatpush1.msra.mxu0 %v3113
  %3153 = vmatprep.subr.mxu0 %v3117
  %3154 = vmatpush1.msra.mxu0 %v3116
  %3155 = vmatprep.subr.mxu0 %v3120
  %3156 = vmatpush1.msra.mxu0 %v3119
  %3157 = vmatprep.subr.mxu0 %v3123
  %3158 = vmatpush1.msra.mxu0 %v3122
  %3159 = vmatprep.subr.mxu0 %v3126
  %3160 = vmatpush1.msra.mxu0 %v3125
  %3161 = vmatprep.subr.mxu0 %v3129
  %3162 = vmatpush1.msra.mxu0 %v3128
  %3163 = vmatprep.subr.mxu0 0.0
  %3164 = vmatpush1.msra.mxu0 0.0
  %3165 = vmatprep.subr.mxu0 0.0
  %3166 = vmatpush1.msra.mxu0 0.0
  %3167 = vmatprep.subr.mxu0 0.0
  %3168 = vmatpush1.msra.mxu0 0.0
  %3169 = vmatprep.subr.mxu0 0.0
  %3170 = vmatpush1.msra.mxu0 0.0
  %3171 = vmatprep.subr.mxu0 0.0
  %3172 = vmatpush1.msra.mxu0 0.0
  %3173 = vmatprep.subr.mxu0 0.0
  %3174 = vmatpush1.msra.mxu0 0.0
  %3175 = vmatprep.subr.mxu0 0.0
  %3176 = vmatpush1.msra.mxu0 0.0
  %3177 = vmatprep.subr.mxu0 0.0
  %3178 = vmatpush1.msra.mxu0 0.0
  %3179 = vmatprep.subr.mxu0 0.0
  %3180 = vmatpush1.msra.mxu0 0.0
  %3181 = vmatprep.subr.mxu0 0.0
  %3182 = vmatpush1.msra.mxu0 0.0
  %3183 = vmatprep.subr.mxu0 0.0
  %3184 = vmatpush1.msra.mxu0 0.0
  %3185 = vmatprep.subr.mxu0 0.0
  %3186 = vmatpush1.msra.mxu0 0.0
  %3187 = vmatprep.subr.mxu0 0.0
  %3188 = vmatpush1.msra.mxu0 0.0
  %3189 = vmatprep.subr.mxu0 0.0
  %3190 = vmatpush1.msra.mxu0 0.0
  %3191 = vmatprep.subr.mxu0 0.0
  %3192 = vmatpush1.msra.mxu0 0.0
  %3193 = vmatprep.subr.mxu0 0.0
  %3194 = vmatpush1.msra.mxu0 0.0
  %3195 = vmatprep.mubr.f32.mxu0 0.0
  %3196 = vmatmul.mubr.f32.gmra.mrb[0].mxu0 %v3077
  %v3197 = vpop.f32.mrb[0].mxu0
  %v3198 = vadd.f32 %v2424, %v3197
  %v3199 = vpop.f32.mrb[0].mxu0
  %v3200 = vadd.f32 %v2428, %v3199
  %3201 = vdwg.mxu0
  %3202 = vmatprep.subr.mxu0 0.0
  %3203 = vmatpush1.msra.mxu0 %v3085
  %3204 = vmatprep.subr.mxu0 0.0
  %3205 = vmatpush1.msra.mxu0 %v3088
  %3206 = vmatprep.subr.mxu0 0.0
  %3207 = vmatpush1.msra.mxu0 %v3091
  %3208 = vmatprep.subr.mxu0 0.0
  %3209 = vmatpush1.msra.mxu0 %v3094
  %3210 = vmatprep.subr.mxu0 0.0
  %3211 = vmatpush1.msra.mxu0 %v3097
  %3212 = vmatprep.subr.mxu0 0.0
  %3213 = vmatpush1.msra.mxu0 %v3100
  %3214 = vmatprep.subr.mxu0 0.0
  %3215 = vmatpush1.msra.mxu0 %v3103
  %3216 = vmatprep.subr.mxu0 0.0
  %3217 = vmatpush1.msra.mxu0 %v3106
  %3218 = vmatprep.subr.mxu0 0.0
  %3219 = vmatpush1.msra.mxu0 %v3109
  %3220 = vmatprep.subr.mxu0 0.0
  %3221 = vmatpush1.msra.mxu0 %v3112
  %3222 = vmatprep.subr.mxu0 0.0
  %3223 = vmatpush1.msra.mxu0 %v3115
  %3224 = vmatprep.subr.mxu0 0.0
  %3225 = vmatpush1.msra.mxu0 %v3118
  %3226 = vmatprep.subr.mxu0 0.0
  %3227 = vmatpush1.msra.mxu0 %v3121
  %3228 = vmatprep.subr.mxu0 0.0
  %3229 = vmatpush1.msra.mxu0 %v3124
  %3230 = vmatprep.subr.mxu0 0.0
  %3231 = vmatpush1.msra.mxu0 %v3127
  %3232 = vmatprep.subr.mxu0 0.0
  %3233 = vmatpush1.msra.mxu0 %v3130
  %3234 = vmatprep.subr.mxu0 0.0
  %3235 = vmatpush1.msra.mxu0 0.0
  %3236 = vmatprep.subr.mxu0 0.0
  %3237 = vmatpush1.msra.mxu0 0.0
  %3238 = vmatprep.subr.mxu0 0.0
  %3239 = vmatpush1.msra.mxu0 0.0
  %3240 = vmatprep.subr.mxu0 0.0
  %3241 = vmatpush1.msra.mxu0 0.0
  %3242 = vmatprep.subr.mxu0 0.0
  %3243 = vmatpush1.msra.mxu0 0.0
  %3244 = vmatprep.subr.mxu0 0.0
  %3245 = vmatpush1.msra.mxu0 0.0
  %3246 = vmatprep.subr.mxu0 0.0
  %3247 = vmatpush1.msra.mxu0 0.0
  %3248 = vmatprep.subr.mxu0 0.0
  %3249 = vmatpush1.msra.mxu0 0.0
  %3250 = vmatprep.subr.mxu0 0.0
  %3251 = vmatpush1.msra.mxu0 0.0
  %3252 = vmatprep.subr.mxu0 0.0
  %3253 = vmatpush1.msra.mxu0 0.0
  %3254 = vmatprep.subr.mxu0 0.0
  %3255 = vmatpush1.msra.mxu0 0.0
  %3256 = vmatprep.subr.mxu0 0.0
  %3257 = vmatpush1.msra.mxu0 0.0
  %3258 = vmatprep.subr.mxu0 0.0
  %3259 = vmatpush1.msra.mxu0 0.0
  %3260 = vmatprep.subr.mxu0 0.0
  %3261 = vmatpush1.msra.mxu0 0.0
  %3262 = vmatprep.subr.mxu0 0.0
  %3263 = vmatpush1.msra.mxu0 0.0
  %3264 = vmatprep.subr.mxu0 0.0
  %3265 = vmatpush1.msra.mxu0 0.0
  %3266 = vmatprep.mubr.f32.mxu0 0.0
  %3267 = vmatmul.mubr.f32.gmra.mrb[0].mxu0 %v3077
  %v3268 = vpop.f32.mrb[0].mxu0
  %v3269 = vadd.f32 %v2432, %v3268
  %v3270 = vpop.f32.mrb[0].mxu0
  %3271 = vdwg.mxu0
  %v3272 = vadd.f32 %v3080, %v3198
  %v3273 = vxor.u32 %v3272, 2147483648
  %v3274 = vmul.f32 %v3273, 1.442695
  %v3275 = vpow.pop %v3274
  %v3276 = vadd.f32 %v3275, 1.0
  %v3277 = vrcp.pop %v3276
  %v3278 = vmul.f32 1.0, %v3277
  %v3279 = vadd.f32 %v3081, %v3200
  %v3280 = vxor.u32 %v3279, 2147483648
  %v3281 = vmul.f32 %v3280, 1.442695
  %v3282 = vpow.pop %v3281
  %v3283 = vadd.f32 %v3282, 1.0
  %v3284 = vrcp.pop %v3283
  %v3285 = vmul.f32 1.0, %v3284
  %v3286 = vmul.f32 %v3278, %v3269
  %v3287 = vadd.f32 %v3082, %v3286
  %v3288 = vtanh.pop %v3287
  %v3289 = vsub.f32 1.0, %v3285
  %v3290 = vmul.f32 %v3289, %v3288
  %v3291 = vmul.f32 %v3285, %v3077
  %v3292 = vadd.f32 %v3290, %v3291
  %s3293 = scalar_lea.vmem [#allocation3], 24
  %3294 = vst [vmem:[%s3293] sm:$0xff] %v3292
  %v3295 = vld [vmem:[%s1240] sm:$0xff]
  %v3296 = vld [vmem:[%s1240 + $0x8] sm:$0xff]
  %v3297 = vld [vmem:[%s1240 + $0x10] sm:$0xff]
  %v3298 = vld [vmem:[%s6] sm:$0xff]
  %v3299 = vld [vmem:[%s6 + $0x8] sm:$0xff]
  %v3300 = vld [vmem:[%s6 + $0x10] sm:$0xff]
  %v3301 = vld [vmem:[%s6 + $0x18] sm:$0xff]
  %v3302 = vld [vmem:[%s6 + $0x20] sm:$0xff]
  %v3303 = vld [vmem:[%s6 + $0x28] sm:$0xff]
  %v3304 = vld [vmem:[%s6 + $0x30] sm:$0xff]
  %v3305 = vld [vmem:[%s6 + $0x38] sm:$0xff]
  %v3306 = vld [vmem:[%s6 + $0x40] sm:$0xff]
  %v3307 = vld [vmem:[%s6 + $0x48] sm:$0xff]
  %v3308 = vld [vmem:[%s6 + $0x50] sm:$0xff]
  %v3309 = vld [vmem:[%s6 + $0x58] sm:$0xff]
  %v3310 = vld [vmem:[%s6 + $0x60] sm:$0xff]
  %v3311 = vld [vmem:[%s6 + $0x68] sm:$0xff]
  %v3312 = vld [vmem:[%s6 + $0x70] sm:$0xff]
  %v3313 = vld [vmem:[%s6 + $0x78] sm:$0xff]
  %v3314 = vld [vmem:[%s6 + $0x80] sm:$0xff]
  %v3315 = vld [vmem:[%s6 + $0x88] sm:$0xff]
  %v3316 = vld [vmem:[%s6 + $0x90] sm:$0xff]
  %v3317 = vld [vmem:[%s6 + $0x98] sm:$0xff]
  %v3318 = vld [vmem:[%s6 + $0xa0] sm:$0xff]
  %v3319 = vld [vmem:[%s6 + $0xa8] sm:$0xff]
  %v3320 = vld [vmem:[%s6 + $0xb0] sm:$0xff]
  %v3321 = vld [vmem:[%s6 + $0xb8] sm:$0xff]
  %v3322 = vld [vmem:[%s6 + $0xc0] sm:$0xff]
  %v3323 = vld [vmem:[%s6 + $0xc8] sm:$0xff]
  %v3324 = vld [vmem:[%s6 + $0xd0] sm:$0xff]
  %v3325 = vld [vmem:[%s6 + $0xd8] sm:$0xff]
  %v3326 = vld [vmem:[%s6 + $0xe0] sm:$0xff]
  %v3327 = vld [vmem:[%s6 + $0xe8] sm:$0xff]
  %v3328 = vld [vmem:[%s6 + $0xf0] sm:$0xff]
  %v3329 = vld [vmem:[%s6 + $0xf8] sm:$0xff]
  %v3330 = vld [vmem:[%s6 + $0x100] sm:$0xff]
  %v3331 = vld [vmem:[%s6 + $0x108] sm:$0xff]
  %v3332 = vld [vmem:[%s6 + $0x110] sm:$0xff]
  %v3333 = vld [vmem:[%s6 + $0x118] sm:$0xff]
  %v3334 = vld [vmem:[%s6 + $0x120] sm:$0xff]
  %v3335 = vld [vmem:[%s6 + $0x128] sm:$0xff]
  %v3336 = vld [vmem:[%s6 + $0x130] sm:$0xff]
  %v3337 = vld [vmem:[%s6 + $0x138] sm:$0xff]
  %v3338 = vld [vmem:[%s6 + $0x140] sm:$0xff]
  %v3339 = vld [vmem:[%s6 + $0x148] sm:$0xff]
  %v3340 = vld [vmem:[%s6 + $0x150] sm:$0xff]
  %v3341 = vld [vmem:[%s6 + $0x158] sm:$0xff]
  %v3342 = vld [vmem:[%s6 + $0x160] sm:$0xff]
  %v3343 = vld [vmem:[%s6 + $0x168] sm:$0xff]
  %v3344 = vld [vmem:[%s6 + $0x170] sm:$0xff]
  %v3345 = vld [vmem:[%s6 + $0x178] sm:$0xff]
  %3346 = vmatprep.subr.mxu0 %v3299
  %3347 = vmatpush1.msra.mxu0 %v3298
  %3348 = vmatprep.subr.mxu0 %v3302
  %3349 = vmatpush1.msra.mxu0 %v3301
  %3350 = vmatprep.subr.mxu0 %v3305
  %3351 = vmatpush1.msra.mxu0 %v3304
  %3352 = vmatprep.subr.mxu0 %v3308
  %3353 = vmatpush1.msra.mxu0 %v3307
  %3354 = vmatprep.subr.mxu0 %v3311
  %3355 = vmatpush1.msra.mxu0 %v3310
  %3356 = vmatprep.subr.mxu0 %v3314
  %3357 = vmatpush1.msra.mxu0 %v3313
  %3358 = vmatprep.subr.mxu0 %v3317
  %3359 = vmatpush1.msra.mxu0 %v3316
  %3360 = vmatprep.subr.mxu0 %v3320
  %3361 = vmatpush1.msra.mxu0 %v3319
  %3362 = vmatprep.subr.mxu0 %v3323
  %3363 = vmatpush1.msra.mxu0 %v3322
  %3364 = vmatprep.subr.mxu0 %v3326
  %3365 = vmatpush1.msra.mxu0 %v3325
  %3366 = vmatprep.subr.mxu0 %v3329
  %3367 = vmatpush1.msra.mxu0 %v3328
  %3368 = vmatprep.subr.mxu0 %v3332
  %3369 = vmatpush1.msra.mxu0 %v3331
  %3370 = vmatprep.subr.mxu0 %v3335
  %3371 = vmatpush1.msra.mxu0 %v3334
  %3372 = vmatprep.subr.mxu0 %v3338
  %3373 = vmatpush1.msra.mxu0 %v3337
  %3374 = vmatprep.subr.mxu0 %v3341
  %3375 = vmatpush1.msra.mxu0 %v3340
  %3376 = vmatprep.subr.mxu0 %v3344
  %3377 = vmatpush1.msra.mxu0 %v3343
  %3378 = vmatprep.subr.mxu0 0.0
  %3379 = vmatpush1.msra.mxu0 0.0
  %3380 = vmatprep.subr.mxu0 0.0
  %3381 = vmatpush1.msra.mxu0 0.0
  %3382 = vmatprep.subr.mxu0 0.0
  %3383 = vmatpush1.msra.mxu0 0.0
  %3384 = vmatprep.subr.mxu0 0.0
  %3385 = vmatpush1.msra.mxu0 0.0
  %3386 = vmatprep.subr.mxu0 0.0
  %3387 = vmatpush1.msra.mxu0 0.0
  %3388 = vmatprep.subr.mxu0 0.0
  %3389 = vmatpush1.msra.mxu0 0.0
  %3390 = vmatprep.subr.mxu0 0.0
  %3391 = vmatpush1.msra.mxu0 0.0
  %3392 = vmatprep.subr.mxu0 0.0
  %3393 = vmatpush1.msra.mxu0 0.0
  %3394 = vmatprep.subr.mxu0 0.0
  %3395 = vmatpush1.msra.mxu0 0.0
  %3396 = vmatprep.subr.mxu0 0.0
  %3397 = vmatpush1.msra.mxu0 0.0
  %3398 = vmatprep.subr.mxu0 0.0
  %3399 = vmatpush1.msra.mxu0 0.0
  %3400 = vmatprep.subr.mxu0 0.0
  %3401 = vmatpush1.msra.mxu0 0.0
  %3402 = vmatprep.subr.mxu0 0.0
  %3403 = vmatpush1.msra.mxu0 0.0
  %3404 = vmatprep.subr.mxu0 0.0
  %3405 = vmatpush1.msra.mxu0 0.0
  %3406 = vmatprep.subr.mxu0 0.0
  %3407 = vmatpush1.msra.mxu0 0.0
  %3408 = vmatprep.subr.mxu0 0.0
  %3409 = vmatpush1.msra.mxu0 0.0
  %3410 = vmatprep.mubr.f32.mxu0 0.0
  %3411 = vmatmul.mubr.f32.gmra.mrb[0].mxu0 %v3292
  %v3412 = vpop.f32.mrb[0].mxu0
  %v3413 = vadd.f32 %v2424, %v3412
  %v3414 = vpop.f32.mrb[0].mxu0
  %v3415 = vadd.f32 %v2428, %v3414
  %3416 = vdwg.mxu0
  %3417 = vmatprep.subr.mxu0 0.0
  %3418 = vmatpush1.msra.mxu0 %v3300
  %3419 = vmatprep.subr.mxu0 0.0
  %3420 = vmatpush1.msra.mxu0 %v3303
  %3421 = vmatprep.subr.mxu0 0.0
  %3422 = vmatpush1.msra.mxu0 %v3306
  %3423 = vmatprep.subr.mxu0 0.0
  %3424 = vmatpush1.msra.mxu0 %v3309
  %3425 = vmatprep.subr.mxu0 0.0
  %3426 = vmatpush1.msra.mxu0 %v3312
  %3427 = vmatprep.subr.mxu0 0.0
  %3428 = vmatpush1.msra.mxu0 %v3315
  %3429 = vmatprep.subr.mxu0 0.0
  %3430 = vmatpush1.msra.mxu0 %v3318
  %3431 = vmatprep.subr.mxu0 0.0
  %3432 = vmatpush1.msra.mxu0 %v3321
  %3433 = vmatprep.subr.mxu0 0.0
  %3434 = vmatpush1.msra.mxu0 %v3324
  %3435 = vmatprep.subr.mxu0 0.0
  %3436 = vmatpush1.msra.mxu0 %v3327
  %3437 = vmatprep.subr.mxu0 0.0
  %3438 = vmatpush1.msra.mxu0 %v3330
  %3439 = vmatprep.subr.mxu0 0.0
  %3440 = vmatpush1.msra.mxu0 %v3333
  %3441 = vmatprep.subr.mxu0 0.0
  %3442 = vmatpush1.msra.mxu0 %v3336
  %3443 = vmatprep.subr.mxu0 0.0
  %3444 = vmatpush1.msra.mxu0 %v3339
  %3445 = vmatprep.subr.mxu0 0.0
  %3446 = vmatpush1.msra.mxu0 %v3342
  %3447 = vmatprep.subr.mxu0 0.0
  %3448 = vmatpush1.msra.mxu0 %v3345
  %3449 = vmatprep.subr.mxu0 0.0
  %3450 = vmatpush1.msra.mxu0 0.0
  %3451 = vmatprep.subr.mxu0 0.0
  %3452 = vmatpush1.msra.mxu0 0.0
  %3453 = vmatprep.subr.mxu0 0.0
  %3454 = vmatpush1.msra.mxu0 0.0
  %3455 = vmatprep.subr.mxu0 0.0
  %3456 = vmatpush1.msra.mxu0 0.0
  %3457 = vmatprep.subr.mxu0 0.0
  %3458 = vmatpush1.msra.mxu0 0.0
  %3459 = vmatprep.subr.mxu0 0.0
  %3460 = vmatpush1.msra.mxu0 0.0
  %3461 = vmatprep.subr.mxu0 0.0
  %3462 = vmatpush1.msra.mxu0 0.0
  %3463 = vmatprep.subr.mxu0 0.0
  %3464 = vmatpush1.msra.mxu0 0.0
  %3465 = vmatprep.subr.mxu0 0.0
  %3466 = vmatpush1.msra.mxu0 0.0
  %3467 = vmatprep.subr.mxu0 0.0
  %3468 = vmatpush1.msra.mxu0 0.0
  %3469 = vmatprep.subr.mxu0 0.0
  %3470 = vmatpush1.msra.mxu0 0.0
  %3471 = vmatprep.subr.mxu0 0.0
  %3472 = vmatpush1.msra.mxu0 0.0
  %3473 = vmatprep.subr.mxu0 0.0
  %3474 = vmatpush1.msra.mxu0 0.0
  %3475 = vmatprep.subr.mxu0 0.0
  %3476 = vmatpush1.msra.mxu0 0.0
  %3477 = vmatprep.subr.mxu0 0.0
  %3478 = vmatpush1.msra.mxu0 0.0
  %3479 = vmatprep.subr.mxu0 0.0
  %3480 = vmatpush1.msra.mxu0 0.0
  %3481 = vmatprep.mubr.f32.mxu0 0.0
  %3482 = vmatmul.mubr.f32.gmra.mrb[0].mxu0 %v3292
  %v3483 = vpop.f32.mrb[0].mxu0
  %v3484 = vadd.f32 %v2432, %v3483
  %v3485 = vpop.f32.mrb[0].mxu0
  %3486 = vdwg.mxu0
  %v3487 = vadd.f32 %v3295, %v3413
  %v3488 = vxor.u32 %v3487, 2147483648
  %v3489 = vmul.f32 %v3488, 1.442695
  %v3490 = vpow.pop %v3489
  %v3491 = vadd.f32 %v3490, 1.0
  %v3492 = vrcp.pop %v3491
  %v3493 = vmul.f32 1.0, %v3492
  %v3494 = vadd.f32 %v3296, %v3415
  %v3495 = vxor.u32 %v3494, 2147483648
  %v3496 = vmul.f32 %v3495, 1.442695
  %v3497 = vpow.pop %v3496
  %v3498 = vadd.f32 %v3497, 1.0
  %v3499 = vrcp.pop %v3498
  %v3500 = vmul.f32 1.0, %v3499
  %v3501 = vmul.f32 %v3493, %v3484
  %v3502 = vadd.f32 %v3297, %v3501
  %v3503 = vtanh.pop %v3502
  %v3504 = vsub.f32 1.0, %v3500
  %v3505 = vmul.f32 %v3504, %v3503
  %v3506 = vmul.f32 %v3500, %v3292
  %v3507 = vadd.f32 %v3505, %v3506
  %s3508 = scalar_lea.vmem [#allocation3], 32
  %3509 = vst [vmem:[%s3508] sm:$0xff] %v3507
  %v3510 = vld [vmem:[%s1456] sm:$0xff]
  %v3511 = vld [vmem:[%s1456 + $0x8] sm:$0xff]
  %v3512 = vld [vmem:[%s1456 + $0x10] sm:$0xff]
  %v3513 = vld [vmem:[%s6] sm:$0xff]
  %v3514 = vld [vmem:[%s6 + $0x8] sm:$0xff]
  %v3515 = vld [vmem:[%s6 + $0x10] sm:$0xff]
  %v3516 = vld [vmem:[%s6 + $0x18] sm:$0xff]
  %v3517 = vld [vmem:[%s6 + $0x20] sm:$0xff]
  %v3518 = vld [vmem:[%s6 + $0x28] sm:$0xff]
  %v3519 = vld [vmem:[%s6 + $0x30] sm:$0xff]
  %v3520 = vld [vmem:[%s6 + $0x38] sm:$0xff]
  %v3521 = vld [vmem:[%s6 + $0x40] sm:$0xff]
  %v3522 = vld [vmem:[%s6 + $0x48] sm:$0xff]
  %v3523 = vld [vmem:[%s6 + $0x50] sm:$0xff]
  %v3524 = vld [vmem:[%s6 + $0x58] sm:$0xff]
  %v3525 = vld [vmem:[%s6 + $0x60] sm:$0xff]
  %v3526 = vld [vmem:[%s6 + $0x68] sm:$0xff]
  %v3527 = vld [vmem:[%s6 + $0x70] sm:$0xff]
  %v3528 = vld [vmem:[%s6 + $0x78] sm:$0xff]
  %v3529 = vld [vmem:[%s6 + $0x80] sm:$0xff]
  %v3530 = vld [vmem:[%s6 + $0x88] sm:$0xff]
  %v3531 = vld [vmem:[%s6 + $0x90] sm:$0xff]
  %v3532 = vld [vmem:[%s6 + $0x98] sm:$0xff]
  %v3533 = vld [vmem:[%s6 + $0xa0] sm:$0xff]
  %v3534 = vld [vmem:[%s6 + $0xa8] sm:$0xff]
  %v3535 = vld [vmem:[%s6 + $0xb0] sm:$0xff]
  %v3536 = vld [vmem:[%s6 + $0xb8] sm:$0xff]
  %v3537 = vld [vmem:[%s6 + $0xc0] sm:$0xff]
  %v3538 = vld [vmem:[%s6 + $0xc8] sm:$0xff]
  %v3539 = vld [vmem:[%s6 + $0xd0] sm:$0xff]
  %v3540 = vld [vmem:[%s6 + $0xd8] sm:$0xff]
  %v3541 = vld [vmem:[%s6 + $0xe0] sm:$0xff]
  %v3542 = vld [vmem:[%s6 + $0xe8] sm:$0xff]
  %v3543 = vld [vmem:[%s6 + $0xf0] sm:$0xff]
  %v3544 = vld [vmem:[%s6 + $0xf8] sm:$0xff]
  %v3545 = vld [vmem:[%s6 + $0x100] sm:$0xff]
  %v3546 = vld [vmem:[%s6 + $0x108] sm:$0xff]
  %v3547 = vld [vmem:[%s6 + $0x110] sm:$0xff]
  %v3548 = vld [vmem:[%s6 + $0x118] sm:$0xff]
  %v3549 = vld [vmem:[%s6 + $0x120] sm:$0xff]
  %v3550 = vld [vmem:[%s6 + $0x128] sm:$0xff]
  %v3551 = vld [vmem:[%s6 + $0x130] sm:$0xff]
  %v3552 = vld [vmem:[%s6 + $0x138] sm:$0xff]
  %v3553 = vld [vmem:[%s6 + $0x140] sm:$0xff]
  %v3554 = vld [vmem:[%s6 + $0x148] sm:$0xff]
  %v3555 = vld [vmem:[%s6 + $0x150] sm:$0xff]
  %v3556 = vld [vmem:[%s6 + $0x158] sm:$0xff]
  %v3557 = vld [vmem:[%s6 + $0x160] sm:$0xff]
  %v3558 = vld [vmem:[%s6 + $0x168] sm:$0xff]
  %v3559 = vld [vmem:[%s6 + $0x170] sm:$0xff]
  %v3560 = vld [vmem:[%s6 + $0x178] sm:$0xff]
  %3561 = vmatprep.subr.mxu0 %v3514
  %3562 = vmatpush1.msra.mxu0 %v3513
  %3563 = vmatprep.subr.mxu0 %v3517
  %3564 = vmatpush1.msra.mxu0 %v3516
  %3565 = vmatprep.subr.mxu0 %v3520
  %3566 = vmatpush1.msra.mxu0 %v3519
  %3567 = vmatprep.subr.mxu0 %v3523
  %3568 = vmatpush1.msra.mxu0 %v3522
  %3569 = vmatprep.subr.mxu0 %v3526
  %3570 = vmatpush1.msra.mxu0 %v3525
  %3571 = vmatprep.subr.mxu0 %v3529
  %3572 = vmatpush1.msra.mxu0 %v3528
  %3573 = vmatprep.subr.mxu0 %v3532
  %3574 = vmatpush1.msra.mxu0 %v3531
  %3575 = vmatprep.subr.mxu0 %v3535
  %3576 = vmatpush1.msra.mxu0 %v3534
  %3577 = vmatprep.subr.mxu0 %v3538
  %3578 = vmatpush1.msra.mxu0 %v3537
  %3579 = vmatprep.subr.mxu0 %v3541
  %3580 = vmatpush1.msra.mxu0 %v3540
  %3581 = vmatprep.subr.mxu0 %v3544
  %3582 = vmatpush1.msra.mxu0 %v3543
  %3583 = vmatprep.subr.mxu0 %v3547
  %3584 = vmatpush1.msra.mxu0 %v3546
  %3585 = vmatprep.subr.mxu0 %v3550
  %3586 = vmatpush1.msra.mxu0 %v3549
  %3587 = vmatprep.subr.mxu0 %v3553
  %3588 = vmatpush1.msra.mxu0 %v3552
  %3589 = vmatprep.subr.mxu0 %v3556
  %3590 = vmatpush1.msra.mxu0 %v3555
  %3591 = vmatprep.subr.mxu0 %v3559
  %3592 = vmatpush1.msra.mxu0 %v3558
  %3593 = vmatprep.subr.mxu0 0.0
  %3594 = vmatpush1.msra.mxu0 0.0
  %3595 = vmatprep.subr.mxu0 0.0
  %3596 = vmatpush1.msra.mxu0 0.0
  %3597 = vmatprep.subr.mxu0 0.0
  %3598 = vmatpush1.msra.mxu0 0.0
  %3599 = vmatprep.subr.mxu0 0.0
  %3600 = vmatpush1.msra.mxu0 0.0
  %3601 = vmatprep.subr.mxu0 0.0
  %3602 = vmatpush1.msra.mxu0 0.0
  %3603 = vmatprep.subr.mxu0 0.0
  %3604 = vmatpush1.msra.mxu0 0.0
  %3605 = vmatprep.subr.mxu0 0.0
  %3606 = vmatpush1.msra.mxu0 0.0
  %3607 = vmatprep.subr.mxu0 0.0
  %3608 = vmatpush1.msra.mxu0 0.0
  %3609 = vmatprep.subr.mxu0 0.0
  %3610 = vmatpush1.msra.mxu0 0.0
  %3611 = vmatprep.subr.mxu0 0.0
  %3612 = vmatpush1.msra.mxu0 0.0
  %3613 = vmatprep.subr.mxu0 0.0
  %3614 = vmatpush1.msra.mxu0 0.0
  %3615 = vmatprep.subr.mxu0 0.0
  %3616 = vmatpush1.msra.mxu0 0.0
  %3617 = vmatprep.subr.mxu0 0.0
  %3618 = vmatpush1.msra.mxu0 0.0
  %3619 = vmatprep.subr.mxu0 0.0
  %3620 = vmatpush1.msra.mxu0 0.0
  %3621 = vmatprep.subr.mxu0 0.0
  %3622 = vmatpush1.msra.mxu0 0.0
  %3623 = vmatprep.subr.mxu0 0.0
  %3624 = vmatpush1.msra.mxu0 0.0
  %3625 = vmatprep.mubr.f32.mxu0 0.0
  %3626 = vmatmul.mubr.f32.gmra.mrb[0].mxu0 %v3507
  %v3627 = vpop.f32.mrb[0].mxu0
  %v3628 = vadd.f32 %v2424, %v3627
  %v3629 = vpop.f32.mrb[0].mxu0
  %v3630 = vadd.f32 %v2428, %v3629
  %3631 = vdwg.mxu0
  %3632 = vmatprep.subr.mxu0 0.0
  %3633 = vmatpush1.msra.mxu0 %v3515
  %3634 = vmatprep.subr.mxu0 0.0
  %3635 = vmatpush1.msra.mxu0 %v3518
  %3636 = vmatprep.subr.mxu0 0.0
  %3637 = vmatpush1.msra.mxu0 %v3521
  %3638 = vmatprep.subr.mxu0 0.0
  %3639 = vmatpush1.msra.mxu0 %v3524
  %3640 = vmatprep.subr.mxu0 0.0
  %3641 = vmatpush1.msra.mxu0 %v3527
  %3642 = vmatprep.subr.mxu0 0.0
  %3643 = vmatpush1.msra.mxu0 %v3530
  %3644 = vmatprep.subr.mxu0 0.0
  %3645 = vmatpush1.msra.mxu0 %v3533
  %3646 = vmatprep.subr.mxu0 0.0
  %3647 = vmatpush1.msra.mxu0 %v3536
  %3648 = vmatprep.subr.mxu0 0.0
  %3649 = vmatpush1.msra.mxu0 %v3539
  %3650 = vmatprep.subr.mxu0 0.0
  %3651 = vmatpush1.msra.mxu0 %v3542
  %3652 = vmatprep.subr.mxu0 0.0
  %3653 = vmatpush1.msra.mxu0 %v3545
  %3654 = vmatprep.subr.mxu0 0.0
  %3655 = vmatpush1.msra.mxu0 %v3548
  %3656 = vmatprep.subr.mxu0 0.0
  %3657 = vmatpush1.msra.mxu0 %v3551
  %3658 = vmatprep.subr.mxu0 0.0
  %3659 = vmatpush1.msra.mxu0 %v3554
  %3660 = vmatprep.subr.mxu0 0.0
  %3661 = vmatpush1.msra.mxu0 %v3557
  %3662 = vmatprep.subr.mxu0 0.0
  %3663 = vmatpush1.msra.mxu0 %v3560
  %3664 = vmatprep.subr.mxu0 0.0
  %3665 = vmatpush1.msra.mxu0 0.0
  %3666 = vmatprep.subr.mxu0 0.0
  %3667 = vmatpush1.msra.mxu0 0.0
  %3668 = vmatprep.subr.mxu0 0.0
  %3669 = vmatpush1.msra.mxu0 0.0
  %3670 = vmatprep.subr.mxu0 0.0
  %3671 = vmatpush1.msra.mxu0 0.0
  %3672 = vmatprep.subr.mxu0 0.0
  %3673 = vmatpush1.msra.mxu0 0.0
  %3674 = vmatprep.subr.mxu0 0.0
  %3675 = vmatpush1.msra.mxu0 0.0
  %3676 = vmatprep.subr.mxu0 0.0
  %3677 = vmatpush1.msra.mxu0 0.0
  %3678 = vmatprep.subr.mxu0 0.0
  %3679 = vmatpush1.msra.mxu0 0.0
  %3680 = vmatprep.subr.mxu0 0.0
  %3681 = vmatpush1.msra.mxu0 0.0
  %3682 = vmatprep.subr.mxu0 0.0
  %3683 = vmatpush1.msra.mxu0 0.0
  %3684 = vmatprep.subr.mxu0 0.0
  %3685 = vmatpush1.msra.mxu0 0.0
  %3686 = vmatprep.subr.mxu0 0.0
  %3687 = vmatpush1.msra.mxu0 0.0
  %3688 = vmatprep.subr.mxu0 0.0
  %3689 = vmatpush1.msra.mxu0 0.0
  %3690 = vmatprep.subr.mxu0 0.0
  %3691 = vmatpush1.msra.mxu0 0.0
  %3692 = vmatprep.subr.mxu0 0.0
  %3693 = vmatpush1.msra.mxu0 0.0
  %3694 = vmatprep.subr.mxu0 0.0
  %3695 = vmatpush1.msra.mxu0 0.0
  %3696 = vmatprep.mubr.f32.mxu0 0.0
  %3697 = vmatmul.mubr.f32.gmra.mrb[0].mxu0 %v3507
  %v3698 = vpop.f32.mrb[0].mxu0
  %v3699 = vadd.f32 %v2432, %v3698
  %v3700 = vpop.f32.mrb[0].mxu0
  %3701 = vdwg.mxu0
  %v3702 = vadd.f32 %v3510, %v3628
  %v3703 = vxor.u32 %v3702, 2147483648
  %v3704 = vmul.f32 %v3703, 1.442695
  %v3705 = vpow.pop %v3704
  %v3706 = vadd.f32 %v3705, 1.0
  %v3707 = vrcp.pop %v3706
  %v3708 = vmul.f32 1.0, %v3707
  %v3709 = vadd.f32 %v3511, %v3630
  %v3710 = vxor.u32 %v3709, 2147483648
  %v3711 = vmul.f32 %v3710, 1.442695
  %v3712 = vpow.pop %v3711
  %v3713 = vadd.f32 %v3712, 1.0
  %v3714 = vrcp.pop %v3713
  %v3715 = vmul.f32 1.0, %v3714
  %v3716 = vmul.f32 %v3708, %v3699
  %v3717 = vadd.f32 %v3512, %v3716
  %v3718 = vtanh.pop %v3717
  %v3719 = vsub.f32 1.0, %v3715
  %v3720 = vmul.f32 %v3719, %v3718
  %v3721 = vmul.f32 %v3715, %v3507
  %v3722 = vadd.f32 %v3720, %v3721
  %s3723 = scalar_lea.vmem [#allocation3], 40
  %3724 = vst [vmem:[%s3723] sm:$0xff] %v3722
  %v3725 = vld [vmem:[%s1672] sm:$0xff]
  %v3726 = vld [vmem:[%s1672 + $0x8] sm:$0xff]
  %v3727 = vld [vmem:[%s1672 + $0x10] sm:$0xff]
  %v3728 = vld [vmem:[%s6] sm:$0xff]
  %v3729 = vld [vmem:[%s6 + $0x8] sm:$0xff]
  %v3730 = vld [vmem:[%s6 + $0x10] sm:$0xff]
  %v3731 = vld [vmem:[%s6 + $0x18] sm:$0xff]
  %v3732 = vld [vmem:[%s6 + $0x20] sm:$0xff]
  %v3733 = vld [vmem:[%s6 + $0x28] sm:$0xff]
  %v3734 = vld [vmem:[%s6 + $0x30] sm:$0xff]
  %v3735 = vld [vmem:[%s6 + $0x38] sm:$0xff]
  %v3736 = vld [vmem:[%s6 + $0x40] sm:$0xff]
  %v3737 = vld [vmem:[%s6 + $0x48] sm:$0xff]
  %v3738 = vld [vmem:[%s6 + $0x50] sm:$0xff]
  %v3739 = vld [vmem:[%s6 + $0x58] sm:$0xff]
  %v3740 = vld [vmem:[%s6 + $0x60] sm:$0xff]
  %v3741 = vld [vmem:[%s6 + $0x68] sm:$0xff]
  %v3742 = vld [vmem:[%s6 + $0x70] sm:$0xff]
  %v3743 = vld [vmem:[%s6 + $0x78] sm:$0xff]
  %v3744 = vld [vmem:[%s6 + $0x80] sm:$0xff]
  %v3745 = vld [vmem:[%s6 + $0x88] sm:$0xff]
  %v3746 = vld [vmem:[%s6 + $0x90] sm:$0xff]
  %v3747 = vld [vmem:[%s6 + $0x98] sm:$0xff]
  %v3748 = vld [vmem:[%s6 + $0xa0] sm:$0xff]
  %v3749 = vld [vmem:[%s6 + $0xa8] sm:$0xff]
  %v3750 = vld [vmem:[%s6 + $0xb0] sm:$0xff]
  %v3751 = vld [vmem:[%s6 + $0xb8] sm:$0xff]
  %v3752 = vld [vmem:[%s6 + $0xc0] sm:$0xff]
  %v3753 = vld [vmem:[%s6 + $0xc8] sm:$0xff]
  %v3754 = vld [vmem:[%s6 + $0xd0] sm:$0xff]
  %v3755 = vld [vmem:[%s6 + $0xd8] sm:$0xff]
  %v3756 = vld [vmem:[%s6 + $0xe0] sm:$0xff]
  %v3757 = vld [vmem:[%s6 + $0xe8] sm:$0xff]
  %v3758 = vld [vmem:[%s6 + $0xf0] sm:$0xff]
  %v3759 = vld [vmem:[%s6 + $0xf8] sm:$0xff]
  %v3760 = vld [vmem:[%s6 + $0x100] sm:$0xff]
  %v3761 = vld [vmem:[%s6 + $0x108] sm:$0xff]
  %v3762 = vld [vmem:[%s6 + $0x110] sm:$0xff]
  %v3763 = vld [vmem:[%s6 + $0x118] sm:$0xff]
  %v3764 = vld [vmem:[%s6 + $0x120] sm:$0xff]
  %v3765 = vld [vmem:[%s6 + $0x128] sm:$0xff]
  %v3766 = vld [vmem:[%s6 + $0x130] sm:$0xff]
  %v3767 = vld [vmem:[%s6 + $0x138] sm:$0xff]
  %v3768 = vld [vmem:[%s6 + $0x140] sm:$0xff]
  %v3769 = vld [vmem:[%s6 + $0x148] sm:$0xff]
  %v3770 = vld [vmem:[%s6 + $0x150] sm:$0xff]
  %v3771 = vld [vmem:[%s6 + $0x158] sm:$0xff]
  %v3772 = vld [vmem:[%s6 + $0x160] sm:$0xff]
  %v3773 = vld [vmem:[%s6 + $0x168] sm:$0xff]
  %v3774 = vld [vmem:[%s6 + $0x170] sm:$0xff]
  %v3775 = vld [vmem:[%s6 + $0x178] sm:$0xff]
  %3776 = vmatprep.subr.mxu0 %v3729
  %3777 = vmatpush1.msra.mxu0 %v3728
  %3778 = vmatprep.subr.mxu0 %v3732
  %3779 = vmatpush1.msra.mxu0 %v3731
  %3780 = vmatprep.subr.mxu0 %v3735
  %3781 = vmatpush1.msra.mxu0 %v3734
  %3782 = vmatprep.subr.mxu0 %v3738
  %3783 = vmatpush1.msra.mxu0 %v3737
  %3784 = vmatprep.subr.mxu0 %v3741
  %3785 = vmatpush1.msra.mxu0 %v3740
  %3786 = vmatprep.subr.mxu0 %v3744
  %3787 = vmatpush1.msra.mxu0 %v3743
  %3788 = vmatprep.subr.mxu0 %v3747
  %3789 = vmatpush1.msra.mxu0 %v3746
  %3790 = vmatprep.subr.mxu0 %v3750
  %3791 = vmatpush1.msra.mxu0 %v3749
  %3792 = vmatprep.subr.mxu0 %v3753
  %3793 = vmatpush1.msra.mxu0 %v3752
  %3794 = vmatprep.subr.mxu0 %v3756
  %3795 = vmatpush1.msra.mxu0 %v3755
  %3796 = vmatprep.subr.mxu0 %v3759
  %3797 = vmatpush1.msra.mxu0 %v3758
  %3798 = vmatprep.subr.mxu0 %v3762
  %3799 = vmatpush1.msra.mxu0 %v3761
  %3800 = vmatprep.subr.mxu0 %v3765
  %3801 = vmatpush1.msra.mxu0 %v3764
  %3802 = vmatprep.subr.mxu0 %v3768
  %3803 = vmatpush1.msra.mxu0 %v3767
  %3804 = vmatprep.subr.mxu0 %v3771
  %3805 = vmatpush1.msra.mxu0 %v3770
  %3806 = vmatprep.subr.mxu0 %v3774
  %3807 = vmatpush1.msra.mxu0 %v3773
  %3808 = vmatprep.subr.mxu0 0.0
  %3809 = vmatpush1.msra.mxu0 0.0
  %3810 = vmatprep.subr.mxu0 0.0
  %3811 = vmatpush1.msra.mxu0 0.0
  %3812 = vmatprep.subr.mxu0 0.0
  %3813 = vmatpush1.msra.mxu0 0.0
  %3814 = vmatprep.subr.mxu0 0.0
  %3815 = vmatpush1.msra.mxu0 0.0
  %3816 = vmatprep.subr.mxu0 0.0
  %3817 = vmatpush1.msra.mxu0 0.0
  %3818 = vmatprep.subr.mxu0 0.0
  %3819 = vmatpush1.msra.mxu0 0.0
  %3820 = vmatprep.subr.mxu0 0.0
  %3821 = vmatpush1.msra.mxu0 0.0
  %3822 = vmatprep.subr.mxu0 0.0
  %3823 = vmatpush1.msra.mxu0 0.0
  %3824 = vmatprep.subr.mxu0 0.0
  %3825 = vmatpush1.msra.mxu0 0.0
  %3826 = vmatprep.subr.mxu0 0.0
  %3827 = vmatpush1.msra.mxu0 0.0
  %3828 = vmatprep.subr.mxu0 0.0
  %3829 = vmatpush1.msra.mxu0 0.0
  %3830 = vmatprep.subr.mxu0 0.0
  %3831 = vmatpush1.msra.mxu0 0.0
  %3832 = vmatprep.subr.mxu0 0.0
  %3833 = vmatpush1.msra.mxu0 0.0
  %3834 = vmatprep.subr.mxu0 0.0
  %3835 = vmatpush1.msra.mxu0 0.0
  %3836 = vmatprep.subr.mxu0 0.0
  %3837 = vmatpush1.msra.mxu0 0.0
  %3838 = vmatprep.subr.mxu0 0.0
  %3839 = vmatpush1.msra.mxu0 0.0
  %3840 = vmatprep.mubr.f32.mxu0 0.0
  %3841 = vmatmul.mubr.f32.gmra.mrb[0].mxu0 %v3722
  %v3842 = vpop.f32.mrb[0].mxu0
  %v3843 = vadd.f32 %v2424, %v3842
  %v3844 = vpop.f32.mrb[0].mxu0
  %v3845 = vadd.f32 %v2428, %v3844
  %3846 = vdwg.mxu0
  %3847 = vmatprep.subr.mxu0 0.0
  %3848 = vmatpush1.msra.mxu0 %v3730
  %3849 = vmatprep.subr.mxu0 0.0
  %3850 = vmatpush1.msra.mxu0 %v3733
  %3851 = vmatprep.subr.mxu0 0.0
  %3852 = vmatpush1.msra.mxu0 %v3736
  %3853 = vmatprep.subr.mxu0 0.0
  %3854 = vmatpush1.msra.mxu0 %v3739
  %3855 = vmatprep.subr.mxu0 0.0
  %3856 = vmatpush1.msra.mxu0 %v3742
  %3857 = vmatprep.subr.mxu0 0.0
  %3858 = vmatpush1.msra.mxu0 %v3745
  %3859 = vmatprep.subr.mxu0 0.0
  %3860 = vmatpush1.msra.mxu0 %v3748
  %3861 = vmatprep.subr.mxu0 0.0
  %3862 = vmatpush1.msra.mxu0 %v3751
  %3863 = vmatprep.subr.mxu0 0.0
  %3864 = vmatpush1.msra.mxu0 %v3754
  %3865 = vmatprep.subr.mxu0 0.0
  %3866 = vmatpush1.msra.mxu0 %v3757
  %3867 = vmatprep.subr.mxu0 0.0
  %3868 = vmatpush1.msra.mxu0 %v3760
  %3869 = vmatprep.subr.mxu0 0.0
  %3870 = vmatpush1.msra.mxu0 %v3763
  %3871 = vmatprep.subr.mxu0 0.0
  %3872 = vmatpush1.msra.mxu0 %v3766
  %3873 = vmatprep.subr.mxu0 0.0
  %3874 = vmatpush1.msra.mxu0 %v3769
  %3875 = vmatprep.subr.mxu0 0.0
  %3876 = vmatpush1.msra.mxu0 %v3772
  %3877 = vmatprep.subr.mxu0 0.0
  %3878 = vmatpush1.msra.mxu0 %v3775
  %3879 = vmatprep.subr.mxu0 0.0
  %3880 = vmatpush1.msra.mxu0 0.0
  %3881 = vmatprep.subr.mxu0 0.0
  %3882 = vmatpush1.msra.mxu0 0.0
  %3883 = vmatprep.subr.mxu0 0.0
  %3884 = vmatpush1.msra.mxu0 0.0
  %3885 = vmatprep.subr.mxu0 0.0
  %3886 = vmatpush1.msra.mxu0 0.0
  %3887 = vmatprep.subr.mxu0 0.0
  %3888 = vmatpush1.msra.mxu0 0.0
  %3889 = vmatprep.subr.mxu0 0.0
  %3890 = vmatpush1.msra.mxu0 0.0
  %3891 = vmatprep.subr.mxu0 0.0
  %3892 = vmatpush1.msra.mxu0 0.0
  %3893 = vmatprep.subr.mxu0 0.0
  %3894 = vmatpush1.msra.mxu0 0.0
  %3895 = vmatprep.subr.mxu0 0.0
  %3896 = vmatpush1.msra.mxu0 0.0
  %3897 = vmatprep.subr.mxu0 0.0
  %3898 = vmatpush1.msra.mxu0 0.0
  %3899 = vmatprep.subr.mxu0 0.0
  %3900 = vmatpush1.msra.mxu0 0.0
  %3901 = vmatprep.subr.mxu0 0.0
  %3902 = vmatpush1.msra.mxu0 0.0
  %3903 = vmatprep.subr.mxu0 0.0
  %3904 = vmatpush1.msra.mxu0 0.0
  %3905 = vmatprep.subr.mxu0 0.0
  %3906 = vmatpush1.msra.mxu0 0.0
  %3907 = vmatprep.subr.mxu0 0.0
  %3908 = vmatpush1.msra.mxu0 0.0
  %3909 = vmatprep.subr.mxu0 0.0
  %3910 = vmatpush1.msra.mxu0 0.0
  %3911 = vmatprep.mubr.f32.mxu0 0.0
  %3912 = vmatmul.mubr.f32.gmra.mrb[0].mxu0 %v3722
  %v3913 = vpop.f32.mrb[0].mxu0
  %v3914 = vadd.f32 %v2432, %v3913
  %v3915 = vpop.f32.mrb[0].mxu0
  %3916 = vdwg.mxu0
  %v3917 = vadd.f32 %v3725, %v3843
  %v3918 = vxor.u32 %v3917, 2147483648
  %v3919 = vmul.f32 %v3918, 1.442695
  %v3920 = vpow.pop %v3919
  %v3921 = vadd.f32 %v3920, 1.0
  %v3922 = vrcp.pop %v3921
  %v3923 = vmul.f32 1.0, %v3922
  %v3924 = vadd.f32 %v3726, %v3845
  %v3925 = vxor.u32 %v3924, 2147483648
  %v3926 = vmul.f32 %v3925, 1.442695
  %v3927 = vpow.pop %v3926
  %v3928 = vadd.f32 %v3927, 1.0
  %v3929 = vrcp.pop %v3928
  %v3930 = vmul.f32 1.0, %v3929
  %v3931 = vmul.f32 %v3923, %v3914
  %v3932 = vadd.f32 %v3727, %v3931
  %v3933 = vtanh.pop %v3932
  %v3934 = vsub.f32 1.0, %v3930
  %v3935 = vmul.f32 %v3934, %v3933
  %v3936 = vmul.f32 %v3930, %v3722
  %v3937 = vadd.f32 %v3935, %v3936
  %s3938 = scalar_lea.vmem [#allocation3], 48
  %3939 = vst [vmem:[%s3938] sm:$0xff] %v3937
  %v3940 = vld [vmem:[%s1888] sm:$0xff]
  %v3941 = vld [vmem:[%s1888 + $0x8] sm:$0xff]
  %v3942 = vld [vmem:[%s1888 + $0x10] sm:$0xff]
  %v3943 = vld [vmem:[%s6] sm:$0xff]
  %v3944 = vld [vmem:[%s6 + $0x8] sm:$0xff]
  %v3945 = vld [vmem:[%s6 + $0x10] sm:$0xff]
  %v3946 = vld [vmem:[%s6 + $0x18] sm:$0xff]
  %v3947 = vld [vmem:[%s6 + $0x20] sm:$0xff]
  %v3948 = vld [vmem:[%s6 + $0x28] sm:$0xff]
  %v3949 = vld [vmem:[%s6 + $0x30] sm:$0xff]
  %v3950 = vld [vmem:[%s6 + $0x38] sm:$0xff]
  %v3951 = vld [vmem:[%s6 + $0x40] sm:$0xff]
  %v3952 = vld [vmem:[%s6 + $0x48] sm:$0xff]
  %v3953 = vld [vmem:[%s6 + $0x50] sm:$0xff]
  %v3954 = vld [vmem:[%s6 + $0x58] sm:$0xff]
  %v3955 = vld [vmem:[%s6 + $0x60] sm:$0xff]
  %v3956 = vld [vmem:[%s6 + $0x68] sm:$0xff]
  %v3957 = vld [vmem:[%s6 + $0x70] sm:$0xff]
  %v3958 = vld [vmem:[%s6 + $0x78] sm:$0xff]
  %v3959 = vld [vmem:[%s6 + $0x80] sm:$0xff]
  %v3960 = vld [vmem:[%s6 + $0x88] sm:$0xff]
  %v3961 = vld [vmem:[%s6 + $0x90] sm:$0xff]
  %v3962 = vld [vmem:[%s6 + $0x98] sm:$0xff]
  %v3963 = vld [vmem:[%s6 + $0xa0] sm:$0xff]
  %v3964 = vld [vmem:[%s6 + $0xa8] sm:$0xff]
  %v3965 = vld [vmem:[%s6 + $0xb0] sm:$0xff]
  %v3966 = vld [vmem:[%s6 + $0xb8] sm:$0xff]
  %v3967 = vld [vmem:[%s6 + $0xc0] sm:$0xff]
  %v3968 = vld [vmem:[%s6 + $0xc8] sm:$0xff]
  %v3969 = vld [vmem:[%s6 + $0xd0] sm:$0xff]
  %v3970 = vld [vmem:[%s6 + $0xd8] sm:$0xff]
  %v3971 = vld [vmem:[%s6 + $0xe0] sm:$0xff]
  %v3972 = vld [vmem:[%s6 + $0xe8] sm:$0xff]
  %v3973 = vld [vmem:[%s6 + $0xf0] sm:$0xff]
  %v3974 = vld [vmem:[%s6 + $0xf8] sm:$0xff]
  %v3975 = vld [vmem:[%s6 + $0x100] sm:$0xff]
  %v3976 = vld [vmem:[%s6 + $0x108] sm:$0xff]
  %v3977 = vld [vmem:[%s6 + $0x110] sm:$0xff]
  %v3978 = vld [vmem:[%s6 + $0x118] sm:$0xff]
  %v3979 = vld [vmem:[%s6 + $0x120] sm:$0xff]
  %v3980 = vld [vmem:[%s6 + $0x128] sm:$0xff]
  %v3981 = vld [vmem:[%s6 + $0x130] sm:$0xff]
  %v3982 = vld [vmem:[%s6 + $0x138] sm:$0xff]
  %v3983 = vld [vmem:[%s6 + $0x140] sm:$0xff]
  %v3984 = vld [vmem:[%s6 + $0x148] sm:$0xff]
  %v3985 = vld [vmem:[%s6 + $0x150] sm:$0xff]
  %v3986 = vld [vmem:[%s6 + $0x158] sm:$0xff]
  %v3987 = vld [vmem:[%s6 + $0x160] sm:$0xff]
  %v3988 = vld [vmem:[%s6 + $0x168] sm:$0xff]
  %v3989 = vld [vmem:[%s6 + $0x170] sm:$0xff]
  %v3990 = vld [vmem:[%s6 + $0x178] sm:$0xff]
  %3991 = vmatprep.subr.mxu0 %v3944
  %3992 = vmatpush1.msra.mxu0 %v3943
  %3993 = vmatprep.subr.mxu0 %v3947
  %3994 = vmatpush1.msra.mxu0 %v3946
  %3995 = vmatprep.subr.mxu0 %v3950
  %3996 = vmatpush1.msra.mxu0 %v3949
  %3997 = vmatprep.subr.mxu0 %v3953
  %3998 = vmatpush1.msra.mxu0 %v3952
  %3999 = vmatprep.subr.mxu0 %v3956
  %4000 = vmatpush1.msra.mxu0 %v3955
  %4001 = vmatprep.subr.mxu0 %v3959
  %4002 = vmatpush1.msra.mxu0 %v3958
  %4003 = vmatprep.subr.mxu0 %v3962
  %4004 = vmatpush1.msra.mxu0 %v3961
  %4005 = vmatprep.subr.mxu0 %v3965
  %4006 = vmatpush1.msra.mxu0 %v3964
  %4007 = vmatprep.subr.mxu0 %v3968
  %4008 = vmatpush1.msra.mxu0 %v3967
  %4009 = vmatprep.subr.mxu0 %v3971
  %4010 = vmatpush1.msra.mxu0 %v3970
  %4011 = vmatprep.subr.mxu0 %v3974
  %4012 = vmatpush1.msra.mxu0 %v3973
  %4013 = vmatprep.subr.mxu0 %v3977
  %4014 = vmatpush1.msra.mxu0 %v3976
  %4015 = vmatprep.subr.mxu0 %v3980
  %4016 = vmatpush1.msra.mxu0 %v3979
  %4017 = vmatprep.subr.mxu0 %v3983
  %4018 = vmatpush1.msra.mxu0 %v3982
  %4019 = vmatprep.subr.mxu0 %v3986
  %4020 = vmatpush1.msra.mxu0 %v3985
  %4021 = vmatprep.subr.mxu0 %v3989
  %4022 = vmatpush1.msra.mxu0 %v3988
  %4023 = vmatprep.subr.mxu0 0.0
  %4024 = vmatpush1.msra.mxu0 0.0
  %4025 = vmatprep.subr.mxu0 0.0
  %4026 = vmatpush1.msra.mxu0 0.0
  %4027 = vmatprep.subr.mxu0 0.0
  %4028 = vmatpush1.msra.mxu0 0.0
  %4029 = vmatprep.subr.mxu0 0.0
  %4030 = vmatpush1.msra.mxu0 0.0
  %4031 = vmatprep.subr.mxu0 0.0
  %4032 = vmatpush1.msra.mxu0 0.0
  %4033 = vmatprep.subr.mxu0 0.0
  %4034 = vmatpush1.msra.mxu0 0.0
  %4035 = vmatprep.subr.mxu0 0.0
  %4036 = vmatpush1.msra.mxu0 0.0
  %4037 = vmatprep.subr.mxu0 0.0
  %4038 = vmatpush1.msra.mxu0 0.0
  %4039 = vmatprep.subr.mxu0 0.0
  %4040 = vmatpush1.msra.mxu0 0.0
  %4041 = vmatprep.subr.mxu0 0.0
  %4042 = vmatpush1.msra.mxu0 0.0
  %4043 = vmatprep.subr.mxu0 0.0
  %4044 = vmatpush1.msra.mxu0 0.0
  %4045 = vmatprep.subr.mxu0 0.0
  %4046 = vmatpush1.msra.mxu0 0.0
  %4047 = vmatprep.subr.mxu0 0.0
  %4048 = vmatpush1.msra.mxu0 0.0
  %4049 = vmatprep.subr.mxu0 0.0
  %4050 = vmatpush1.msra.mxu0 0.0
  %4051 = vmatprep.subr.mxu0 0.0
  %4052 = vmatpush1.msra.mxu0 0.0
  %4053 = vmatprep.subr.mxu0 0.0
  %4054 = vmatpush1.msra.mxu0 0.0
  %4055 = vmatprep.mubr.f32.mxu0 0.0
  %4056 = vmatmul.mubr.f32.gmra.mrb[0].mxu0 %v3937
  %v4057 = vpop.f32.mrb[0].mxu0
  %v4058 = vadd.f32 %v2424, %v4057
  %v4059 = vpop.f32.mrb[0].mxu0
  %v4060 = vadd.f32 %v2428, %v4059
  %4061 = vdwg.mxu0
  %4062 = vmatprep.subr.mxu0 0.0
  %4063 = vmatpush1.msra.mxu0 %v3945
  %4064 = vmatprep.subr.mxu0 0.0
  %4065 = vmatpush1.msra.mxu0 %v3948
  %4066 = vmatprep.subr.mxu0 0.0
  %4067 = vmatpush1.msra.mxu0 %v3951
  %4068 = vmatprep.subr.mxu0 0.0
  %4069 = vmatpush1.msra.mxu0 %v3954
  %4070 = vmatprep.subr.mxu0 0.0
  %4071 = vmatpush1.msra.mxu0 %v3957
  %4072 = vmatprep.subr.mxu0 0.0
  %4073 = vmatpush1.msra.mxu0 %v3960
  %4074 = vmatprep.subr.mxu0 0.0
  %4075 = vmatpush1.msra.mxu0 %v3963
  %4076 = vmatprep.subr.mxu0 0.0
  %4077 = vmatpush1.msra.mxu0 %v3966
  %4078 = vmatprep.subr.mxu0 0.0
  %4079 = vmatpush1.msra.mxu0 %v3969
  %4080 = vmatprep.subr.mxu0 0.0
  %4081 = vmatpush1.msra.mxu0 %v3972
  %4082 = vmatprep.subr.mxu0 0.0
  %4083 = vmatpush1.msra.mxu0 %v3975
  %4084 = vmatprep.subr.mxu0 0.0
  %4085 = vmatpush1.msra.mxu0 %v3978
  %4086 = vmatprep.subr.mxu0 0.0
  %4087 = vmatpush1.msra.mxu0 %v3981
  %4088 = vmatprep.subr.mxu0 0.0
  %4089 = vmatpush1.msra.mxu0 %v3984
  %4090 = vmatprep.subr.mxu0 0.0
  %4091 = vmatpush1.msra.mxu0 %v3987
  %4092 = vmatprep.subr.mxu0 0.0
  %4093 = vmatpush1.msra.mxu0 %v3990
  %4094 = vmatprep.subr.mxu0 0.0
  %4095 = vmatpush1.msra.mxu0 0.0
  %4096 = vmatprep.subr.mxu0 0.0
  %4097 = vmatpush1.msra.mxu0 0.0
  %4098 = vmatprep.subr.mxu0 0.0
  %4099 = vmatpush1.msra.mxu0 0.0
  %4100 = vmatprep.subr.mxu0 0.0
  %4101 = vmatpush1.msra.mxu0 0.0
  %4102 = vmatprep.subr.mxu0 0.0
  %4103 = vmatpush1.msra.mxu0 0.0
  %4104 = vmatprep.subr.mxu0 0.0
  %4105 = vmatpush1.msra.mxu0 0.0
  %4106 = vmatprep.subr.mxu0 0.0
  %4107 = vmatpush1.msra.mxu0 0.0
  %4108 = vmatprep.subr.mxu0 0.0
  %4109 = vmatpush1.msra.mxu0 0.0
  %4110 = vmatprep.subr.mxu0 0.0
  %4111 = vmatpush1.msra.mxu0 0.0
  %4112 = vmatprep.subr.mxu0 0.0
  %4113 = vmatpush1.msra.mxu0 0.0
  %4114 = vmatprep.subr.mxu0 0.0
  %4115 = vmatpush1.msra.mxu0 0.0
  %4116 = vmatprep.subr.mxu0 0.0
  %4117 = vmatpush1.msra.mxu0 0.0
  %4118 = vmatprep.subr.mxu0 0.0
  %4119 = vmatpush1.msra.mxu0 0.0
  %4120 = vmatprep.subr.mxu0 0.0
  %4121 = vmatpush1.msra.mxu0 0.0
  %4122 = vmatprep.subr.mxu0 0.0
  %4123 = vmatpush1.msra.mxu0 0.0
  %4124 = vmatprep.subr.mxu0 0.0
  %4125 = vmatpush1.msra.mxu0 0.0
  %4126 = vmatprep.mubr.f32.mxu0 0.0
  %4127 = vmatmul.mubr.f32.gmra.mrb[0].mxu0 %v3937
  %v4128 = vpop.f32.mrb[0].mxu0
  %v4129 = vadd.f32 %v2432, %v4128
  %v4130 = vpop.f32.mrb[0].mxu0
  %4131 = vdwg.mxu0
  %v4132 = vadd.f32 %v3940, %v4058
  %v4133 = vxor.u32 %v4132, 2147483648
  %v4134 = vmul.f32 %v4133, 1.442695
  %v4135 = vpow.pop %v4134
  %v4136 = vadd.f32 %v4135, 1.0
  %v4137 = vrcp.pop %v4136
  %v4138 = vmul.f32 1.0, %v4137
  %v4139 = vadd.f32 %v3941, %v4060
  %v4140 = vxor.u32 %v4139, 2147483648
  %v4141 = vmul.f32 %v4140, 1.442695
  %v4142 = vpow.pop %v4141
  %v4143 = vadd.f32 %v4142, 1.0
  %v4144 = vrcp.pop %v4143
  %v4145 = vmul.f32 1.0, %v4144
  %v4146 = vmul.f32 %v4138, %v4129
  %v4147 = vadd.f32 %v3942, %v4146
  %v4148 = vtanh.pop %v4147
  %v4149 = vsub.f32 1.0, %v4145
  %v4150 = vmul.f32 %v4149, %v4148
  %v4151 = vmul.f32 %v4145, %v3937
  %v4152 = vadd.f32 %v4150, %v4151
  %s4153 = scalar_lea.vmem [#allocation3], 56
  %4154 = vst [vmem:[%s4153] sm:$0xff] %v4152
  %v4155 = vld [vmem:[#allocation3] sm:$0xff]
  %v4156 = vld [vmem:[#allocation3 + $0x8] sm:$0xff]
  %v4157 = vld [vmem:[#allocation3 + $0x10] sm:$0xff]
  %v4158 = vld [vmem:[#allocation3 + $0x18] sm:$0xff]
  %v4159 = vld [vmem:[#allocation3 + $0x20] sm:$0xff]
  %v4160 = vld [vmem:[#allocation3 + $0x28] sm:$0xff]
  %v4161 = vld [vmem:[#allocation3 + $0x30] sm:$0xff]
  %v4162 = vld [vmem:[#allocation3 + $0x38] sm:$0xff]
  %v4163 = vld [vmem:[%s9] sm:$0xff]
  %v4164 = vld [vmem:[%s9 + $0x8] sm:$0xff]
  %v4165 = vld [vmem:[%s9 + $0x10] sm:$0xff]
  %v4166 = vld [vmem:[%s9 + $0x18] sm:$0xff]
  %v4167 = vld [vmem:[%s9 + $0x20] sm:$0xff]
  %v4168 = vld [vmem:[%s9 + $0x28] sm:$0xff]
  %v4169 = vld [vmem:[%s9 + $0x30] sm:$0xff]
  %v4170 = vld [vmem:[%s9 + $0x38] sm:$0xff]
  %v4171 = vld [vmem:[%s9 + $0x40] sm:$0xff]
  %v4172 = vld [vmem:[%s9 + $0x48] sm:$0xff]
  %v4173 = vld [vmem:[%s9 + $0x50] sm:$0xff]
  %v4174 = vld [vmem:[%s9 + $0x58] sm:$0xff]
  %v4175 = vld [vmem:[%s9 + $0x60] sm:$0xff]
  %v4176 = vld [vmem:[%s9 + $0x68] sm:$0xff]
  %v4177 = vld [vmem:[%s9 + $0x70] sm:$0xff]
  %v4178 = vld [vmem:[%s9 + $0x78] sm:$0xff]
  %v4179 = vld [vmem:[%s10] sm:$0x1]
  %v4181 = vlaneseq
  %v4182 = vshrl.u32 %v4181, 7
  %v4183 = vsub.s32 0, %v4182
  %v4184 = vrot.slane %v4179, %v4183
  %4186 = vmatprep.subr.mxu0 0.0
  %4187 = vmatpush1.msra.mxu0 %v4163
  %4188 = vmatprep.subr.mxu0 0.0
  %4189 = vmatpush1.msra.mxu0 %v4164
  %4190 = vmatprep.subr.mxu0 0.0
  %4191 = vmatpush1.msra.mxu0 %v4165
  %4192 = vmatprep.subr.mxu0 0.0
  %4193 = vmatpush1.msra.mxu0 %v4166
  %4194 = vmatprep.subr.mxu0 0.0
  %4195 = vmatpush1.msra.mxu0 %v4167
  %4196 = vmatprep.subr.mxu0 0.0
  %4197 = vmatpush1.msra.mxu0 %v4168
  %4198 = vmatprep.subr.mxu0 0.0
  %4199 = vmatpush1.msra.mxu0 %v4169
  %4200 = vmatprep.subr.mxu0 0.0
  %4201 = vmatpush1.msra.mxu0 %v4170
  %4202 = vmatprep.subr.mxu0 0.0
  %4203 = vmatpush1.msra.mxu0 %v4171
  %4204 = vmatprep.subr.mxu0 0.0
  %4205 = vmatpush1.msra.mxu0 %v4172
  %4206 = vmatprep.subr.mxu0 0.0
  %4207 = vmatpush1.msra.mxu0 %v4173
  %4208 = vmatprep.subr.mxu0 0.0
  %4209 = vmatpush1.msra.mxu0 %v4174
  %4210 = vmatprep.subr.mxu0 0.0
  %4211 = vmatpush1.msra.mxu0 %v4175
  %4212 = vmatprep.subr.mxu0 0.0
  %4213 = vmatpush1.msra.mxu0 %v4176
  %4214 = vmatprep.subr.mxu0 0.0
  %4215 = vmatpush1.msra.mxu0 %v4177
  %4216 = vmatprep.subr.mxu0 0.0
  %4217 = vmatpush1.msra.mxu0 %v4178
  %4218 = vmatprep.subr.mxu0 0.0
  %4219 = vmatpush1.msra.mxu0 0.0
  %4220 = vmatprep.subr.mxu0 0.0
  %4221 = vmatpush1.msra.mxu0 0.0
  %4222 = vmatprep.subr.mxu0 0.0
  %4223 = vmatpush1.msra.mxu0 0.0
  %4224 = vmatprep.subr.mxu0 0.0
  %4225 = vmatpush1.msra.mxu0 0.0
  %4226 = vmatprep.subr.mxu0 0.0
  %4227 = vmatpush1.msra.mxu0 0.0
  %4228 = vmatprep.subr.mxu0 0.0
  %4229 = vmatpush1.msra.mxu0 0.0
  %4230 = vmatprep.subr.mxu0 0.0
  %4231 = vmatpush1.msra.mxu0 0.0
  %4232 = vmatprep.subr.mxu0 0.0
  %4233 = vmatpush1.msra.mxu0 0.0
  %4234 = vmatprep.subr.mxu0 0.0
  %4235 = vmatpush1.msra.mxu0 0.0
  %4236 = vmatprep.subr.mxu0 0.0
  %4237 = vmatpush1.msra.mxu0 0.0
  %4238 = vmatprep.subr.mxu0 0.0
  %4239 = vmatpush1.msra.mxu0 0.0
  %4240 = vmatprep.subr.mxu0 0.0
  %4241 = vmatpush1.msra.mxu0 0.0
  %4242 = vmatprep.subr.mxu0 0.0
  %4243 = vmatpush1.msra.mxu0 0.0
  %4244 = vmatprep.subr.mxu0 0.0
  %4245 = vmatpush1.msra.mxu0 0.0
  %4246 = vmatprep.subr.mxu0 0.0
  %4247 = vmatpush1.msra.mxu0 0.0
  %4248 = vmatprep.subr.mxu0 0.0
  %4249 = vmatpush1.msra.mxu0 0.0
  %4250 = vmatprep.mubr.f32.mxu0 0.0
  %4251 = vmatmul.mubr.f32.gmra.mrb[0].mxu0 %v4155
  %v4252 = vpop.f32.mrb[0].mxu0
  %v4253 = vadd.f32 %v4184, %v4252
  %v4254 = vpop.f32.mrb[0].mxu0
  %4255 = vmatprep.mubr.f32.mxu0 0.0
  %4256 = vmatmul.mubr.f32.gmra.mrb[0].mxu0 %v4156
  %v4257 = vpop.f32.mrb[0].mxu0
  %v4258 = vadd.f32 %v4184, %v4257
  %v4259 = vpop.f32.mrb[0].mxu0
  %4260 = vmatprep.mubr.f32.mxu0 0.0
  %4261 = vmatmul.mubr.f32.gmra.mrb[0].mxu0 %v4157
  %v4262 = vpop.f32.mrb[0].mxu0
  %v4263 = vadd.f32 %v4184, %v4262
  %v4264 = vpop.f32.mrb[0].mxu0
  %4265 = vmatprep.mubr.f32.mxu0 0.0
  %4266 = vmatmul.mubr.f32.gmra.mrb[0].mxu0 %v4158
  %v4267 = vpop.f32.mrb[0].mxu0
  %v4268 = vadd.f32 %v4184, %v4267
  %v4269 = vpop.f32.mrb[0].mxu0
  %4270 = vmatprep.mubr.f32.mxu0 0.0
  %4271 = vmatmul.mubr.f32.gmra.mrb[0].mxu0 %v4159
  %v4272 = vpop.f32.mrb[0].mxu0
  %v4273 = vadd.f32 %v4184, %v4272
  %v4274 = vpop.f32.mrb[0].mxu0
  %4275 = vmatprep.mubr.f32.mxu0 0.0
  %4276 = vmatmul.mubr.f32.gmra.mrb[0].mxu0 %v4160
  %v4277 = vpop.f32.mrb[0].mxu0
  %v4278 = vadd.f32 %v4184, %v4277
  %v4279 = vpop.f32.mrb[0].mxu0
  %4280 = vmatprep.mubr.f32.mxu0 0.0
  %4281 = vmatmul.mubr.f32.gmra.mrb[0].mxu0 %v4161
  %v4282 = vpop.f32.mrb[0].mxu0
  %v4283 = vadd.f32 %v4184, %v4282
  %v4284 = vpop.f32.mrb[0].mxu0
  %4285 = vmatprep.mubr.f32.mxu0 0.0
  %4286 = vmatmul.mubr.f32.gmra.mrb[0].mxu0 %v4162
  %v4287 = vpop.f32.mrb[0].mxu0
  %v4288 = vadd.f32 %v4184, %v4287
  %v4289 = vpop.f32.mrb[0].mxu0
  %4290 = vdwg.mxu0
  %4291 = vst [vmem:[%s13] sm:$0xff] %v4253
  %4292 = vst [vmem:[%s13 + $0x8] sm:$0xff] %v4258
  %4293 = vst [vmem:[%s13 + $0x10] sm:$0xff] %v4263
  %4294 = vst [vmem:[%s13 + $0x18] sm:$0xff] %v4268
  %4295 = vst [vmem:[%s13 + $0x20] sm:$0xff] %v4273
  %4296 = vst [vmem:[%s13 + $0x28] sm:$0xff] %v4278
  %4297 = vst [vmem:[%s13 + $0x30] sm:$0xff] %v4283
  %4298 = vst [vmem:[%s13 + $0x38] sm:$0xff] %v4288
  %v4299 = vadd.f32 %v4155, %v4156
  %v4300 = vadd.f32 %v4299, %v4157
  %v4301 = vadd.f32 %v4300, %v4158
  %v4302 = vadd.f32 %v4301, %v4159
  %v4303 = vadd.f32 %v4302, %v4160
  %v4304 = vadd.f32 %v4303, %v4161
  %v4305 = vadd.f32 %v4304, %v4162
  %v4306 = vrcp.pop 8.0
  %v4307 = vmul.f32 %v4305, %v4306
  %v4308 = vld [vmem:[%s11] sm:$0xff]
  %v4309 = vld [vmem:[%s11 + $0x8] sm:$0xff]
  %v4310 = vld [vmem:[%s11 + $0x10] sm:$0xff]
  %v4311 = vld [vmem:[%s11 + $0x18] sm:$0xff]
  %v4312 = vld [vmem:[%s11 + $0x20] sm:$0xff]
  %v4313 = vld [vmem:[%s11 + $0x28] sm:$0xff]
  %v4314 = vld [vmem:[%s11 + $0x30] sm:$0xff]
  %v4315 = vld [vmem:[%s11 + $0x38] sm:$0xff]
  %v4316 = vld [vmem:[%s11 + $0x40] sm:$0xff]
  %v4317 = vld [vmem:[%s11 + $0x48] sm:$0xff]
  %v4318 = vld [vmem:[%s11 + $0x50] sm:$0xff]
  %v4319 = vld [vmem:[%s11 + $0x58] sm:$0xff]
  %v4320 = vld [vmem:[%s11 + $0x60] sm:$0xff]
  %v4321 = vld [vmem:[%s11 + $0x68] sm:$0xff]
  %v4322 = vld [vmem:[%s11 + $0x70] sm:$0xff]
  %v4323 = vld [vmem:[%s11 + $0x78] sm:$0xff]
  %v4324 = vld [vmem:[%s12] sm:$0x1]
  %v4326 = vlaneseq
  %v4327 = vshrl.u32 %v4326, 7
  %v4328 = vsub.s32 0, %v4327
  %v4329 = vrot.slane %v4324, %v4328
  %4331 = vmatprep.subr.mxu0 0.0
  %4332 = vmatpush1.msra.mxu0 %v4308
  %4333 = vmatprep.subr.mxu0 0.0
  %4334 = vmatpush1.msra.mxu0 %v4309
  %4335 = vmatprep.subr.mxu0 0.0
  %4336 = vmatpush1.msra.mxu0 %v4310
  %4337 = vmatprep.subr.mxu0 0.0
  %4338 = vmatpush1.msra.mxu0 %v4311
  %4339 = vmatprep.subr.mxu0 0.0
  %4340 = vmatpush1.msra.mxu0 %v4312
  %4341 = vmatprep.subr.mxu0 0.0
  %4342 = vmatpush1.msra.mxu0 %v4313
  %4343 = vmatprep.subr.mxu0 0.0
  %4344 = vmatpush1.msra.mxu0 %v4314
  %4345 = vmatprep.subr.mxu0 0.0
  %4346 = vmatpush1.msra.mxu0 %v4315
  %4347 = vmatprep.subr.mxu0 0.0
  %4348 = vmatpush1.msra.mxu0 %v4316
  %4349 = vmatprep.subr.mxu0 0.0
  %4350 = vmatpush1.msra.mxu0 %v4317
  %4351 = vmatprep.subr.mxu0 0.0
  %4352 = vmatpush1.msra.mxu0 %v4318
  %4353 = vmatprep.subr.mxu0 0.0
  %4354 = vmatpush1.msra.mxu0 %v4319
  %4355 = vmatprep.subr.mxu0 0.0
  %4356 = vmatpush1.msra.mxu0 %v4320
  %4357 = vmatprep.subr.mxu0 0.0
  %4358 = vmatpush1.msra.mxu0 %v4321
  %4359 = vmatprep.subr.mxu0 0.0
  %4360 = vmatpush1.msra.mxu0 %v4322
  %4361 = vmatprep.subr.mxu0 0.0
  %4362 = vmatpush1.msra.mxu0 %v4323
  %4363 = vmatprep.subr.mxu0 0.0
  %4364 = vmatpush1.msra.mxu0 0.0
  %4365 = vmatprep.subr.mxu0 0.0
  %4366 = vmatpush1.msra.mxu0 0.0
  %4367 = vmatprep.subr.mxu0 0.0
  %4368 = vmatpush1.msra.mxu0 0.0
  %4369 = vmatprep.subr.mxu0 0.0
  %4370 = vmatpush1.msra.mxu0 0.0
  %4371 = vmatprep.subr.mxu0 0.0
  %4372 = vmatpush1.msra.mxu0 0.0
  %4373 = vmatprep.subr.mxu0 0.0
  %4374 = vmatpush1.msra.mxu0 0.0
  %4375 = vmatprep.subr.mxu0 0.0
  %4376 = vmatpush1.msra.mxu0 0.0
  %4377 = vmatprep.subr.mxu0 0.0
  %4378 = vmatpush1.msra.mxu0 0.0
  %4379 = vmatprep.subr.mxu0 0.0
  %4380 = vmatpush1.msra.mxu0 0.0
  %4381 = vmatprep.subr.mxu0 0.0
  %4382 = vmatpush1.msra.mxu0 0.0
  %4383 = vmatprep.subr.mxu0 0.0
  %4384 = vmatpush1.msra.mxu0 0.0
  %4385 = vmatprep.subr.mxu0 0.0
  %4386 = vmatpush1.msra.mxu0 0.0
  %4387 = vmatprep.subr.mxu0 0.0
  %4388 = vmatpush1.msra.mxu0 0.0
  %4389 = vmatprep.subr.mxu0 0.0
  %4390 = vmatpush1.msra.mxu0 0.0
  %4391 = vmatprep.subr.mxu0 0.0
  %4392 = vmatpush1.msra.mxu0 0.0
  %4393 = vmatprep.subr.mxu0 0.0
  %4394 = vmatpush1.msra.mxu0 0.0
  %4395 = vmatprep.mubr.f32.mxu0 0.0
  %4396 = vmatmul.mubr.f32.gmra.mrb[0].mxu0 %v4307
  %v4397 = vpop.f32.mrb[0].mxu0
  %v4398 = vadd.f32 %v4329, %v4397
  %v4399 = vpop.f32.mrb[0].mxu0
  %4400 = vdwg.mxu0
  %4401 = vst [vmem:[%s14] sm:$0xff] %v4398
  // Predicated region
  $region54: #{rnn_finder_forward.1} parent=0 // pred_check
    _
  $region55: #{rnn_finder_forward.1} parent=0 // pred_check_branch
    %4403 = sbr.rel (0) target = $region57
  $region56: #{rnn_finder_forward.1} parent=0 // pred_region
    _
  $region57: #{rnn_finder_forward.1} parent=0 // pred_fallthru
    _
  // Predicated region
  $region58: #{rnn_finder_forward.1} parent=0 // pred_check
    _
  $region59: #{rnn_finder_forward.1} parent=0 // pred_check_branch
    %4405 = sbr.rel (0) target = $region61
  $region60: #{rnn_finder_forward.1} parent=0 // pred_region
    _
  $region61: #{rnn_finder_forward.1} parent=0 // pred_fallthru
    _
  // Predicated region
  $region62: #{rnn_finder_forward.1} parent=0 // pred_check
    _
  $region63: #{rnn_finder_forward.1} parent=0 // pred_check_branch
    %4407 = sbr.rel (0) target = $region65
  $region64: #{rnn_finder_forward.1} parent=0 // pred_region
    _
  $region65: #{rnn_finder_forward.1} parent=0 // pred_fallthru
    _
  // Predicated region
  $region66: #{rnn_finder_forward.1} parent=0 // pred_check
    _
  $region67: #{rnn_finder_forward.1} parent=0 // pred_check_branch
    %4409 = sbr.rel (0) target = $region69
  $region68: #{rnn_finder_forward.1} parent=0 // pred_region
    _
  $region69: #{rnn_finder_forward.1} parent=0 // pred_fallthru
    _

</llo_original>
